<compile_context>
chip_gen: v5e
topology: v5e:2x2
jax: 0.10.0
libtpu: 0.0.40
codegen_flags: <defaults>
</compile_context>

<pallas_src>
import functools

import jax
import jax.numpy as jnp
from jax.experimental import pallas as pl
from jax.experimental.pallas import tpu as pltpu


def _layernorm_f32(x, gamma, beta, eps):
    # PyTorch nn.LayerNorm: biased variance, eps added to var before rsqrt.
    mu = jnp.mean(x, axis=-1, keepdims=True)
    var = jnp.mean((x - mu) ** 2, axis=-1, keepdims=True)
    return (x - mu) * jax.lax.rsqrt(var + eps) * gamma + beta


def block_kernel(x_ref,
                 ln1_g_ref, ln1_b_ref,
                 wq_ref, bq_ref, wk_ref, bk_ref, wv_ref, bv_ref,
                 wo_ref, bo_ref,
                 ln2_g_ref, ln2_b_ref,
                 w1_ref, b1_ref, w2_ref, b2_ref,
                 o_ref,
                 *, heads, eps, gelu_type):
    f32 = jnp.float32
    bf16 = jnp.bfloat16

    x = x_ref[0].astype(f32)                     # (S, D) residual stream, f32
    S, D = x.shape

    # ---- norm1 (f32 statistics) ----
    xn = _layernorm_f32(x, ln1_g_ref[0], ln1_b_ref[0], eps)

    # ---- head-major q/k/v projections ----
    # Weights are stored host-side as (H, D, Dh), so the projection outputs are
    # already (H, S, Dh): no lane slicing / stacking / transposes in the kernel.
    # (1/sqrt(scale) is folded into wq/bq host-side.)
    # TODO(synk): the per-head batched matmul has N=Dh output lanes per MXU pass;
    #   for very large Dh-sensitive configs, evaluate fusing q/k/v into one
    #   (H, D, 3*Dh) batched matmul (or a fused (S,3D) matmul + tile-aligned relayout).
    xnh = jnp.broadcast_to(xn.astype(bf16), (heads, S, D))
    q3 = jnp.einsum('hsd,hde->hse', xnh, wq_ref[...],
                    preferred_element_type=f32) + bq_ref[...]          # (H, S, Dh)
    k3 = jnp.einsum('hsd,hde->hse', xnh, wk_ref[...],
                    preferred_element_type=f32) + bk_ref[...]
    v3 = jnp.einsum('hsd,hde->hse', xnh, wv_ref[...],
                    preferred_element_type=f32) + bv_ref[...]

    # ---- attention: rank-3 batched einsums over heads, EUP-reciprocal softmax ----
    # TODO(synk): for S >~ 512, block over KV tiles (online softmax) instead of
    #   materializing the full (H, S, S) f32 score tensor.
    s = jnp.einsum('hqd,hkd->hqk', q3.astype(bf16), k3.astype(bf16),
                   preferred_element_type=f32)                          # (H, S, S)
    s = s - jnp.max(s, axis=-1, keepdims=True)
    probs = jnp.exp(s)
    probs = probs * pl.reciprocal(jnp.sum(probs, axis=-1, keepdims=True), approx=True)
    o3 = jnp.einsum('hqk,hkd->hqd', probs.astype(bf16), v3.astype(bf16),
                    preferred_element_type=f32)                         # (H, S, Dh)

    # ---- output projection with the head merge folded in:
    #      sum_h o3[h] @ wo[h]  ==  concat_heads(o3) @ wo  (no lane concat) ----
    ph = jnp.einsum('hqd,hdo->hqo', o3.astype(bf16), wo_ref[...],
                    preferred_element_type=f32)                         # (H, S, D)
    attn = jnp.sum(ph, axis=0) + bo_ref[0]
    x = x + attn

    # ---- norm2 + position-wise feed forward + residual ----
    xn2 = _layernorm_f32(x, ln2_g_ref[0], ln2_b_ref[0], eps)
    hf = jnp.dot(xn2.astype(bf16), w1_ref[...], preferred_element_type=f32) + b1_ref[0]
    if gelu_type == 'exact':
        hf = 0.5 * hf * (1.0 + jax.lax.erf(hf * 0.7071067811865476))    # F.gelu (erf)
    else:
        hf = hf * jax.nn.sigmoid(1.702 * hf)                            # quick_gelu
    # TODO(synk): for ViT-L on v7x (64 MiB VMEM), stream w1/w2 over FF-column chunks
    #   (extra "arbitrary" grid axis or pltpu.emit_pipeline) instead of full residency.
    hf = jnp.dot(hf.astype(bf16), w2_ref[...], preferred_element_type=f32) + b2_ref[0]
    x = x + hf

    o_ref[0] = x.astype(o_ref.dtype)


_PARAM_ORDER = ('ln1_g', 'ln1_b',
                'wq3', 'bq3', 'wk3', 'bk3', 'wv3', 'bv3',
                'wo3', 'bo',
                'ln2_g', 'ln2_b',
                'w1', 'b1', 'w2', 'b2')


def _vmem_limit_bytes(p, *, S, D, heads, weight_buffers):
    """Per-generation VMEM budget including the f32 intermediates."""
    FF = p['w1'].shape[1]
    Dh = D // heads
    try:
        cap = int(pltpu.get_tpu_info().vmem_capacity_bytes)
    except Exception:
        cap = 64 * 1024 * 1024                        # conservative (v7x physical)
    weight_bytes = sum(int(v.size) * v.dtype.itemsize for v in p.values())
    act_io = 2 * 2 * S * D * 4                        # x/out tiles, double-buffered
    interm = (2 * heads * S * D                       # broadcast xn (bf16)
              + (4 + 2) * 3 * heads * S * Dh          # q/k/v f32 + bf16 copies
              + (4 + 4 + 2) * heads * S * S           # scores, probs f32, probs bf16
              + 4 * heads * S * D                     # per-head proj partials f32
              + 4 * 6 * S * D                         # xn/xn2/residual/attn temps f32
              + (4 + 2) * S * FF)                     # FFN hidden f32 + bf16
    need = weight_buffers * weight_bytes + act_io + interm
    return int(min(cap * 9 // 10, max(32 * 1024 * 1024, need * 3 // 2)))


def block_forward(x, p, *, heads, eps, gelu_type, single_buffer_weights):
    B, S, D = x.shape
    assert D % heads == 0

    def wspec(arr):
        zero = (0,) * arr.ndim
        idx = lambda b, _z=zero: _z       # constant index_map: fetched once across B
        if single_buffer_weights:
            # Revisited block -> one VMEM buffer is enough (halves weight residency).
            return pl.BlockSpec(arr.shape, idx, pipeline_mode=pl.Buffered(1))
        return pl.BlockSpec(arr.shape, idx)

    in_specs = ([pl.BlockSpec((1, S, D), lambda b: (b, 0, 0))]
                + [wspec(p[k]) for k in _PARAM_ORDER])
    out_spec = pl.BlockSpec((1, S, D), lambda b: (b, 0, 0))

    kern = functools.partial(block_kernel, heads=heads, eps=eps, gelu_type=gelu_type)
    vmem_limit = _vmem_limit_bytes(
        p, S=S, D=D, heads=heads,
        weight_buffers=1 if single_buffer_weights else 2)

    # TODO(synk): on v5e, carry the residual stream in bf16 between blocks (or fuse
    #   the depth loop into one pallas_call) to cut inter-layer HBM traffic.
    return pl.pallas_call(
        kern,
        out_shape=jax.ShapeDtypeStruct((B, S, D), x.dtype),
        grid=(B,),
        in_specs=in_specs,
        out_specs=out_spec,
        compiler_params=pltpu.CompilerParams(
            dimension_semantics=("parallel",),
            vmem_limit_bytes=vmem_limit),
    )(x, *[p[k] for k in _PARAM_ORDER])


def transformer_forward(x, params, *, heads, eps, gelu_type):
    single_buffer = True
    out = x
    for p in params:
        if single_buffer:
            try:
                out = block_forward(out, p, heads=heads, eps=eps, gelu_type=gelu_type,
                                    single_buffer_weights=True)
                continue
            except Exception:
                # pl.Buffered(1) not supported by this jax/libtpu build: fall back to
                # the default double-buffered weight windows (correctness unchanged).
                single_buffer = False
        out = block_forward(out, p, heads=heads, eps=eps, gelu_type=gelu_type,
                            single_buffer_weights=False)
    return out


def to_kernel_params(p, *, heads, scale):
    """Rearrange torch-style params to kernel layout.

    * q/k/v weights -> (H, D, Dh) bf16 (head-major batched projections),
      biases -> (H, 1, Dh) f32;  1/sqrt(scale) folded into the q weight/bias.
    * wo -> (H, Dh, D) bf16 so the head merge folds into a batched projection.
    * FFN / LN params unchanged (weights bf16, biases & LN affine f32).
    """
    bf16 = jnp.bfloat16
    D = p['wq'].shape[0]
    Dh = D // heads
    inv = 1.0 / (float(scale) ** 0.5)

    def heads_w(w):                                   # (D, D) -> (H, D, Dh)
        return jnp.transpose(w.reshape(D, heads, Dh), (1, 0, 2))

    def heads_b(b):                                   # (1, D) -> (H, 1, Dh)
        return b.reshape(heads, Dh)[:, None, :]

    return dict(
        ln1_g=p['ln1_g'], ln1_b=p['ln1_b'],
        wq3=(heads_w(p['wq']) * inv).astype(bf16),
        bq3=heads_b(p['bq']) * inv,
        wk3=heads_w(p['wk']).astype(bf16),
        bk3=heads_b(p['bk']),
        wv3=heads_w(p['wv']).astype(bf16),
        bv3=heads_b(p['bv']),
        wo3=p['wo'].reshape(heads, Dh, D).astype(bf16),
        bo=p['bo'],
        ln2_g=p['ln2_g'], ln2_b=p['ln2_b'],
        w1=p['w1'].astype(bf16), b1=p['b1'],
        w2=p['w2'].astype(bf16), b2=p['b2'],
    )


# ---------------- pure-JAX reference (correctness check, full f32) ----------------
def _ref_block(x, p, *, heads, scale, eps, gelu_type):
    B, S, D = x.shape
    Dh = D // heads

    def ln(z, g, b):
        mu = jnp.mean(z, -1, keepdims=True)
        var = jnp.mean((z - mu) ** 2, -1, keepdims=True)
        return (z - mu) / jnp.sqrt(var + eps) * g + b

    xn = ln(x, p['ln1_g'][0], p['ln1_b'][0])
    q = xn @ p['wq'] + p['bq'][0]
    k = xn @ p['wk'] + p['bk'][0]
    v = xn @ p['wv'] + p['bv'][0]
    split = lambda z: z.reshape(B, S, heads, Dh).transpose(0, 2, 1, 3)
    q, k, v = split(q), split(k), split(v)
    s = (q @ k.transpose(0, 1, 3, 2)) / (scale ** 0.5)
    s = jax.nn.softmax(s, axis=-1)
    h = (s @ v).transpose(0, 2, 1, 3).reshape(B, S, D)
    h = h @ p['wo'] + p['bo'][0]
    x = x + h
    xn2 = ln(x, p['ln2_g'][0], p['ln2_b'][0])
    hf = xn2 @ p['w1'] + p['b1'][0]
    if gelu_type == 'exact':
        hf = 0.5 * hf * (1.0 + jax.lax.erf(hf / jnp.sqrt(2.0)))
    else:
        hf = hf * jax.nn.sigmoid(1.702 * hf)
    hf = hf @ p['w2'] + p['b2'][0]
    return x + hf


def _ref_transformer(x, params, **kw):
    for p in params:
        x = _ref_block(x, p, **kw)
    return x


# ---------------- deterministic parameter construction ----------------
def init_params(key, depth, dim, ff_dim):
    params = []
    for d in range(depth):
        ks = jax.random.split(jax.random.fold_in(key, d), 6)
        std = 0.02
        p = dict(
            ln1_g=jnp.ones((1, dim), jnp.float32),
            ln1_b=jnp.zeros((1, dim), jnp.float32),
            wq=std * jax.random.normal(ks[0], (dim, dim), jnp.float32),
            bq=jnp.zeros((1, dim), jnp.float32),
            wk=std * jax.random.normal(ks[1], (dim, dim), jnp.float32),
            bk=jnp.zeros((1, dim), jnp.float32),
            wv=std * jax.random.normal(ks[2], (dim, dim), jnp.float32),
            bv=jnp.zeros((1, dim), jnp.float32),
            wo=std * jax.random.normal(ks[3], (dim, dim), jnp.float32),
            bo=jnp.zeros((1, dim), jnp.float32),
            ln2_g=jnp.ones((1, dim), jnp.float32),
            ln2_b=jnp.zeros((1, dim), jnp.float32),
            w1=std * jax.random.normal(ks[4], (dim, ff_dim), jnp.float32),
            b1=jnp.zeros((1, ff_dim), jnp.float32),
            w2=std * jax.random.normal(ks[5], (ff_dim, dim), jnp.float32),
            b2=jnp.zeros((1, dim), jnp.float32),
        )
        params.append(p)
    return params


if __name__ == "__main__":
    # Transformer(dim=32, depth=2, heads=4, ff_dim=64, eps=1e-6,
    #             att_scale='per_head', gelu_type='quick')
    B, S, D = 2, 8, 32
    depth, heads, ff_dim = 2, 4, 64
    eps = 1e-6
    att_scale = 'per_head'
    gelu_type = 'quick'           # 'exact' (erf) gelu also implemented in-kernel
    scale = D // heads if att_scale == 'per_head' else D

    key = jax.random.PRNGKey(0)
    kx, kp = jax.random.split(key)
    x = jax.random.normal(kx, (B, S, D), jnp.float32)
    params = init_params(kp, depth, D, ff_dim)
    kparams = [to_kernel_params(p, heads=heads, scale=scale) for p in params]

    out = transformer_forward(x, kparams, heads=heads, eps=eps, gelu_type=gelu_type)
    out = jax.block_until_ready(out)

    ref = _ref_transformer(x, params, heads=heads, scale=scale, eps=eps,
                           gelu_type=gelu_type)
    assert out.shape == (B, S, D)
    assert jnp.allclose(out, ref, atol=1e-2, rtol=1e-2), "mismatch vs. reference"

    print("KERNEL_OK")
</pallas_src>

<mosaic_0001>
module attributes {stable_mosaic.version = 11 : i64} {
  func.func @block_kernel(%arg0: i32, %arg1: memref<1x8x32xf32, #tpu.memory_space<vmem>>, %arg2: memref<1x32xf32, #tpu.memory_space<vmem>>, %arg3: memref<1x32xf32, #tpu.memory_space<vmem>>, %arg4: memref<4x32x8xbf16, #tpu.memory_space<vmem>>, %arg5: memref<4x1x8xf32, #tpu.memory_space<vmem>>, %arg6: memref<4x32x8xbf16, #tpu.memory_space<vmem>>, %arg7: memref<4x1x8xf32, #tpu.memory_space<vmem>>, %arg8: memref<4x32x8xbf16, #tpu.memory_space<vmem>>, %arg9: memref<4x1x8xf32, #tpu.memory_space<vmem>>, %arg10: memref<4x8x32xbf16, #tpu.memory_space<vmem>>, %arg11: memref<1x32xf32, #tpu.memory_space<vmem>>, %arg12: memref<1x32xf32, #tpu.memory_space<vmem>>, %arg13: memref<1x32xf32, #tpu.memory_space<vmem>>, %arg14: memref<32x64xbf16, #tpu.memory_space<vmem>>, %arg15: memref<1x64xf32, #tpu.memory_space<vmem>>, %arg16: memref<64x32xbf16, #tpu.memory_space<vmem>>, %arg17: memref<1x32xf32, #tpu.memory_space<vmem>>, %arg18: memref<1x8x32xf32, #tpu.memory_space<vmem>>) attributes {dimension_semantics = [#tpu.dimension_semantics<parallel>], iteration_bounds = array<i64: 2>, scalar_prefetch = 0 : i64, scratch_operands = 0 : i64, tpu.core_type = #tpu.core_type<tc>, window_params = [{transform_indices = @transform_0, window_bounds = array<i64: 1, 8, 32>}, {pipeline_mode = #tpu.pipeline_mode<synchronous>, transform_indices = @transform_1, window_bounds = array<i64: 1, 32>}, {pipeline_mode = #tpu.pipeline_mode<synchronous>, transform_indices = @transform_2, window_bounds = array<i64: 1, 32>}, {pipeline_mode = #tpu.pipeline_mode<synchronous>, transform_indices = @transform_3, window_bounds = array<i64: 4, 32, 8>}, {pipeline_mode = #tpu.pipeline_mode<synchronous>, transform_indices = @transform_4, window_bounds = array<i64: 4, 1, 8>}, {pipeline_mode = #tpu.pipeline_mode<synchronous>, transform_indices = @transform_5, window_bounds = array<i64: 4, 32, 8>}, {pipeline_mode = #tpu.pipeline_mode<synchronous>, transform_indices = @transform_6, window_bounds = array<i64: 4, 1, 8>}, {pipeline_mode = #tpu.pipeline_mode<synchronous>, transform_indices = @transform_7, window_bounds = array<i64: 4, 32, 8>}, {pipeline_mode = #tpu.pipeline_mode<synchronous>, transform_indices = @transform_8, window_bounds = array<i64: 4, 1, 8>}, {pipeline_mode = #tpu.pipeline_mode<synchronous>, transform_indices = @transform_9, window_bounds = array<i64: 4, 8, 32>}, {pipeline_mode = #tpu.pipeline_mode<synchronous>, transform_indices = @transform_10, window_bounds = array<i64: 1, 32>}, {pipeline_mode = #tpu.pipeline_mode<synchronous>, transform_indices = @transform_11, window_bounds = array<i64: 1, 32>}, {pipeline_mode = #tpu.pipeline_mode<synchronous>, transform_indices = @transform_12, window_bounds = array<i64: 1, 32>}, {pipeline_mode = #tpu.pipeline_mode<synchronous>, transform_indices = @transform_13, window_bounds = array<i64: 32, 64>}, {pipeline_mode = #tpu.pipeline_mode<synchronous>, transform_indices = @transform_14, window_bounds = array<i64: 1, 64>}, {pipeline_mode = #tpu.pipeline_mode<synchronous>, transform_indices = @transform_15, window_bounds = array<i64: 64, 32>}, {pipeline_mode = #tpu.pipeline_mode<synchronous>, transform_indices = @transform_16, window_bounds = array<i64: 1, 32>}, {transform_indices = @transform_17, window_bounds = array<i64: 1, 8, 32>}]} {
    %c0 = arith.constant 0 : index
    %c0_0 = arith.constant 0 : index
    %c0_1 = arith.constant 0 : index
    %0 = vector.load %arg1[%c0, %c0_0, %c0_1] : memref<1x8x32xf32, #tpu.memory_space<vmem>>, vector<1x8x32xf32>
    %1 = vector.shape_cast %0 : vector<1x8x32xf32> to vector<8x32xf32>
    %c0_2 = arith.constant 0 : index
    %c0_3 = arith.constant 0 : index
    %2 = vector.load %arg2[%c0_2, %c0_3] : memref<1x32xf32, #tpu.memory_space<vmem>>, vector<1x32xf32>
    %3 = vector.shape_cast %2 : vector<1x32xf32> to vector<32xf32>
    %c0_4 = arith.constant 0 : index
    %c0_5 = arith.constant 0 : index
    %4 = vector.load %arg3[%c0_4, %c0_5] : memref<1x32xf32, #tpu.memory_space<vmem>>, vector<1x32xf32>
    %5 = vector.shape_cast %4 : vector<1x32xf32> to vector<32xf32>
    %cst = arith.constant dense<0.000000e+00> : vector<8xf32>
    %6 = vector.multi_reduction <add>, %1, %cst [1] : vector<8x32xf32> to vector<8xf32>
    %7 = vector.shape_cast %6 : vector<8xf32> to vector<8x1xf32>
    %cst_6 = arith.constant 3.200000e+01 : f32
    %8 = vector.broadcast %cst_6 : f32 to vector<8x1xf32>
    %9 = arith.divf %7, %8 : vector<8x1xf32>
    %10 = vector.broadcast %9 : vector<8x1xf32> to vector<8x32xf32>
    %11 = arith.subf %1, %10 : vector<8x32xf32>
    %12 = arith.mulf %11, %11 : vector<8x32xf32>
    %cst_7 = arith.constant dense<0.000000e+00> : vector<8xf32>
    %13 = vector.multi_reduction <add>, %12, %cst_7 [1] : vector<8x32xf32> to vector<8xf32>
    %14 = vector.shape_cast %13 : vector<8xf32> to vector<8x1xf32>
    %cst_8 = arith.constant 3.200000e+01 : f32
    %15 = vector.broadcast %cst_8 : f32 to vector<8x1xf32>
    %16 = arith.divf %14, %15 : vector<8x1xf32>
    %17 = vector.broadcast %9 : vector<8x1xf32> to vector<8x32xf32>
    %18 = arith.subf %1, %17 : vector<8x32xf32>
    %cst_9 = arith.constant 9.99999997E-7 : f32
    %19 = vector.broadcast %cst_9 : f32 to vector<8x1xf32>
    %20 = arith.addf %16, %19 : vector<8x1xf32>
    %21 = math.rsqrt %20 : vector<8x1xf32>
    %22 = vector.broadcast %21 : vector<8x1xf32> to vector<8x32xf32>
    %23 = arith.mulf %18, %22 : vector<8x32xf32>
    %24 = vector.shape_cast %3 : vector<32xf32> to vector<1x32xf32>
    %25 = vector.broadcast %24 : vector<1x32xf32> to vector<8x32xf32>
    %26 = arith.mulf %23, %25 : vector<8x32xf32>
    %27 = vector.shape_cast %5 : vector<32xf32> to vector<1x32xf32>
    %28 = vector.broadcast %27 : vector<1x32xf32> to vector<8x32xf32>
    %29 = arith.addf %26, %28 : vector<8x32xf32>
    %30 = arith.truncf %29 : vector<8x32xf32> to vector<8x32xbf16>
    %31 = vector.shape_cast %30 : vector<8x32xbf16> to vector<1x8x32xbf16>
    %32 = vector.broadcast %31 : vector<1x8x32xbf16> to vector<4x8x32xbf16>
    %c0_10 = arith.constant 0 : index
    %c0_11 = arith.constant 0 : index
    %c0_12 = arith.constant 0 : index
    %33 = vector.load %arg4[%c0_10, %c0_11, %c0_12] : memref<4x32x8xbf16, #tpu.memory_space<vmem>>, vector<4x32x8xbf16>
    "tpu.trace_start"() <{level = 10 : i32, message = "hsd,hde->hse"}> : () -> ()
    %cst_13 = arith.constant dense<0.000000e+00> : vector<4x8x8xf32>
    %34 = tpu.matmul %32, %33, %cst_13 {dimension_numbers = #tpu.dot_dimension_numbers<[2], [1], [1], [2], [0, 0, 0, 1, 1, 2], [0], [0]>} : vector<4x8x32xbf16>, vector<4x32x8xbf16>, vector<4x8x8xf32> -> vector<4x8x8xf32>
    "tpu.trace_stop"() : () -> ()
    %c0_14 = arith.constant 0 : index
    %c0_15 = arith.constant 0 : index
    %c0_16 = arith.constant 0 : index
    %35 = vector.load %arg5[%c0_14, %c0_15, %c0_16] : memref<4x1x8xf32, #tpu.memory_space<vmem>>, vector<4x1x8xf32>
    %36 = vector.broadcast %35 : vector<4x1x8xf32> to vector<4x8x8xf32>
    %37 = arith.addf %34, %36 : vector<4x8x8xf32>
    %c0_17 = arith.constant 0 : index
    %c0_18 = arith.constant 0 : index
    %c0_19 = arith.constant 0 : index
    %38 = vector.load %arg6[%c0_17, %c0_18, %c0_19] : memref<4x32x8xbf16, #tpu.memory_space<vmem>>, vector<4x32x8xbf16>
    "tpu.trace_start"() <{level = 10 : i32, message = "hsd,hde->hse"}> : () -> ()
    %cst_20 = arith.constant dense<0.000000e+00> : vector<4x8x8xf32>
    %39 = tpu.matmul %32, %38, %cst_20 {dimension_numbers = #tpu.dot_dimension_numbers<[2], [1], [1], [2], [0, 0, 0, 1, 1, 2], [0], [0]>} : vector<4x8x32xbf16>, vector<4x32x8xbf16>, vector<4x8x8xf32> -> vector<4x8x8xf32>
    "tpu.trace_stop"() : () -> ()
    %c0_21 = arith.constant 0 : index
    %c0_22 = arith.constant 0 : index
    %c0_23 = arith.constant 0 : index
    %40 = vector.load %arg7[%c0_21, %c0_22, %c0_23] : memref<4x1x8xf32, #tpu.memory_space<vmem>>, vector<4x1x8xf32>
    %41 = vector.broadcast %40 : vector<4x1x8xf32> to vector<4x8x8xf32>
    %42 = arith.addf %39, %41 : vector<4x8x8xf32>
    %c0_24 = arith.constant 0 : index
    %c0_25 = arith.constant 0 : index
    %c0_26 = arith.constant 0 : index
    %43 = vector.load %arg8[%c0_24, %c0_25, %c0_26] : memref<4x32x8xbf16, #tpu.memory_space<vmem>>, vector<4x32x8xbf16>
    "tpu.trace_start"() <{level = 10 : i32, message = "hsd,hde->hse"}> : () -> ()
    %cst_27 = arith.constant dense<0.000000e+00> : vector<4x8x8xf32>
    %44 = tpu.matmul %32, %43, %cst_27 {dimension_numbers = #tpu.dot_dimension_numbers<[2], [1], [1], [2], [0, 0, 0, 1, 1, 2], [0], [0]>} : vector<4x8x32xbf16>, vector<4x32x8xbf16>, vector<4x8x8xf32> -> vector<4x8x8xf32>
    "tpu.trace_stop"() : () -> ()
    %c0_28 = arith.constant 0 : index
    %c0_29 = arith.constant 0 : index
    %c0_30 = arith.constant 0 : index
    %45 = vector.load %arg9[%c0_28, %c0_29, %c0_30] : memref<4x1x8xf32, #tpu.memory_space<vmem>>, vector<4x1x8xf32>
    %46 = vector.broadcast %45 : vector<4x1x8xf32> to vector<4x8x8xf32>
    %47 = arith.addf %44, %46 : vector<4x8x8xf32>
    %48 = arith.truncf %37 : vector<4x8x8xf32> to vector<4x8x8xbf16>
    %49 = arith.truncf %42 : vector<4x8x8xf32> to vector<4x8x8xbf16>
    "tpu.trace_start"() <{level = 10 : i32, message = "hqd,hkd->hqk"}> : () -> ()
    %cst_31 = arith.constant dense<0.000000e+00> : vector<4x8x8xf32>
    %50 = tpu.matmul %48, %49, %cst_31 {dimension_numbers = #tpu.dot_dimension_numbers<[2], [2], [1], [1], [0, 0, 0, 1, 1, 1], [0], [0]>} : vector<4x8x8xbf16>, vector<4x8x8xbf16>, vector<4x8x8xf32> -> vector<4x8x8xf32>
    "tpu.trace_stop"() : () -> ()
    %cst_32 = arith.constant dense<0xFF800000> : vector<4x8xf32>
    %51 = vector.multi_reduction <maximumf>, %50, %cst_32 [2] : vector<4x8x8xf32> to vector<4x8xf32>
    %52 = vector.shape_cast %51 : vector<4x8xf32> to vector<4x8x1xf32>
    %53 = vector.broadcast %52 : vector<4x8x1xf32> to vector<4x8x8xf32>
    %54 = arith.subf %50, %53 : vector<4x8x8xf32>
    %55 = math.exp %54 : vector<4x8x8xf32>
    %cst_33 = arith.constant dense<0.000000e+00> : vector<4x8xf32>
    %56 = vector.multi_reduction <add>, %55, %cst_33 [2] : vector<4x8x8xf32> to vector<4x8xf32>
    %57 = vector.shape_cast %56 : vector<4x8xf32> to vector<4x8x1xf32>
    %58 = tpu.reciprocal %57 {approx = true} : vector<4x8x1xf32> -> vector<4x8x1xf32>
    %59 = vector.broadcast %58 : vector<4x8x1xf32> to vector<4x8x8xf32>
    %60 = arith.mulf %55, %59 : vector<4x8x8xf32>
    %61 = arith.truncf %60 : vector<4x8x8xf32> to vector<4x8x8xbf16>
    %62 = arith.truncf %47 : vector<4x8x8xf32> to vector<4x8x8xbf16>
    "tpu.trace_start"() <{level = 10 : i32, message = "hqk,hkd->hqd"}> : () -> ()
    %cst_34 = arith.constant dense<0.000000e+00> : vector<4x8x8xf32>
    %63 = tpu.matmul %61, %62, %cst_34 {dimension_numbers = #tpu.dot_dimension_numbers<[2], [1], [1], [2], [0, 0, 0, 1, 1, 2], [0], [0]>} : vector<4x8x8xbf16>, vector<4x8x8xbf16>, vector<4x8x8xf32> -> vector<4x8x8xf32>
    "tpu.trace_stop"() : () -> ()
    %64 = arith.truncf %63 : vector<4x8x8xf32> to vector<4x8x8xbf16>
    %c0_35 = arith.constant 0 : index
    %c0_36 = arith.constant 0 : index
    %c0_37 = arith.constant 0 : index
    %65 = vector.load %arg10[%c0_35, %c0_36, %c0_37] : memref<4x8x32xbf16, #tpu.memory_space<vmem>>, vector<4x8x32xbf16>
    "tpu.trace_start"() <{level = 10 : i32, message = "hqd,hdo->hqo"}> : () -> ()
    %cst_38 = arith.constant dense<0.000000e+00> : vector<4x8x32xf32>
    %66 = tpu.matmul %64, %65, %cst_38 {dimension_numbers = #tpu.dot_dimension_numbers<[2], [1], [1], [2], [0, 0, 0, 1, 1, 2], [0], [0]>} : vector<4x8x8xbf16>, vector<4x8x32xbf16>, vector<4x8x32xf32> -> vector<4x8x32xf32>
    "tpu.trace_stop"() : () -> ()
    %cst_39 = arith.constant dense<0.000000e+00> : vector<8x32xf32>
    %67 = vector.multi_reduction <add>, %66, %cst_39 [0] : vector<4x8x32xf32> to vector<8x32xf32>
    %c0_40 = arith.constant 0 : index
    %c0_41 = arith.constant 0 : index
    %68 = vector.load %arg11[%c0_40, %c0_41] : memref<1x32xf32, #tpu.memory_space<vmem>>, vector<1x32xf32>
    %69 = vector.shape_cast %68 : vector<1x32xf32> to vector<32xf32>
    %70 = vector.shape_cast %69 : vector<32xf32> to vector<1x32xf32>
    %71 = vector.broadcast %70 : vector<1x32xf32> to vector<8x32xf32>
    %72 = arith.addf %67, %71 : vector<8x32xf32>
    %73 = arith.addf %1, %72 : vector<8x32xf32>
    %c0_42 = arith.constant 0 : index
    %c0_43 = arith.constant 0 : index
    %74 = vector.load %arg12[%c0_42, %c0_43] : memref<1x32xf32, #tpu.memory_space<vmem>>, vector<1x32xf32>
    %75 = vector.shape_cast %74 : vector<1x32xf32> to vector<32xf32>
    %c0_44 = arith.constant 0 : index
    %c0_45 = arith.constant 0 : index
    %76 = vector.load %arg13[%c0_44, %c0_45] : memref<1x32xf32, #tpu.memory_space<vmem>>, vector<1x32xf32>
    %77 = vector.shape_cast %76 : vector<1x32xf32> to vector<32xf32>
    %cst_46 = arith.constant dense<0.000000e+00> : vector<8xf32>
    %78 = vector.multi_reduction <add>, %73, %cst_46 [1] : vector<8x32xf32> to vector<8xf32>
    %79 = vector.shape_cast %78 : vector<8xf32> to vector<8x1xf32>
    %cst_47 = arith.constant 3.200000e+01 : f32
    %80 = vector.broadcast %cst_47 : f32 to vector<8x1xf32>
    %81 = arith.divf %79, %80 : vector<8x1xf32>
    %82 = vector.broadcast %81 : vector<8x1xf32> to vector<8x32xf32>
    %83 = arith.subf %73, %82 : vector<8x32xf32>
    %84 = arith.mulf %83, %83 : vector<8x32xf32>
    %cst_48 = arith.constant dense<0.000000e+00> : vector<8xf32>
    %85 = vector.multi_reduction <add>, %84, %cst_48 [1] : vector<8x32xf32> to vector<8xf32>
    %86 = vector.shape_cast %85 : vector<8xf32> to vector<8x1xf32>
    %cst_49 = arith.constant 3.200000e+01 : f32
    %87 = vector.broadcast %cst_49 : f32 to vector<8x1xf32>
    %88 = arith.divf %86, %87 : vector<8x1xf32>
    %89 = vector.broadcast %81 : vector<8x1xf32> to vector<8x32xf32>
    %90 = arith.subf %73, %89 : vector<8x32xf32>
    %cst_50 = arith.constant 9.99999997E-7 : f32
    %91 = vector.broadcast %cst_50 : f32 to vector<8x1xf32>
    %92 = arith.addf %88, %91 : vector<8x1xf32>
    %93 = math.rsqrt %92 : vector<8x1xf32>
    %94 = vector.broadcast %93 : vector<8x1xf32> to vector<8x32xf32>
    %95 = arith.mulf %90, %94 : vector<8x32xf32>
    %96 = vector.shape_cast %75 : vector<32xf32> to vector<1x32xf32>
    %97 = vector.broadcast %96 : vector<1x32xf32> to vector<8x32xf32>
    %98 = arith.mulf %95, %97 : vector<8x32xf32>
    %99 = vector.shape_cast %77 : vector<32xf32> to vector<1x32xf32>
    %100 = vector.broadcast %99 : vector<1x32xf32> to vector<8x32xf32>
    %101 = arith.addf %98, %100 : vector<8x32xf32>
    %102 = arith.truncf %101 : vector<8x32xf32> to vector<8x32xbf16>
    %c0_51 = arith.constant 0 : index
    %c0_52 = arith.constant 0 : index
    %103 = vector.load %arg14[%c0_51, %c0_52] : memref<32x64xbf16, #tpu.memory_space<vmem>>, vector<32x64xbf16>
    %cst_53 = arith.constant dense<0.000000e+00> : vector<8x64xf32>
    %104 = tpu.matmul %102, %103, %cst_53 {dimension_numbers = #tpu.dot_dimension_numbers<[1], [0], [0], [1], [0, 0, 1, 1], [], []>} : vector<8x32xbf16>, vector<32x64xbf16>, vector<8x64xf32> -> vector<8x64xf32>
    %c0_54 = arith.constant 0 : index
    %c0_55 = arith.constant 0 : index
    %105 = vector.load %arg15[%c0_54, %c0_55] : memref<1x64xf32, #tpu.memory_space<vmem>>, vector<1x64xf32>
    %106 = vector.shape_cast %105 : vector<1x64xf32> to vector<64xf32>
    %107 = vector.shape_cast %106 : vector<64xf32> to vector<1x64xf32>
    %108 = vector.broadcast %107 : vector<1x64xf32> to vector<8x64xf32>
    %109 = arith.addf %104, %108 : vector<8x64xf32>
    %cst_56 = arith.constant 1.702000e+00 : f32
    %110 = vector.broadcast %cst_56 : f32 to vector<8x64xf32>
    %111 = arith.mulf %110, %109 : vector<8x64xf32>
    %112 = arith.negf %111 : vector<8x64xf32>
    %113 = math.exp %112 : vector<8x64xf32>
    %cst_57 = arith.constant 1.000000e+00 : f32
    %114 = vector.broadcast %cst_57 : f32 to vector<8x64xf32>
    %115 = arith.addf %114, %113 : vector<8x64xf32>
    %116 = arith.divf %114, %115 : vector<8x64xf32>
    %117 = arith.mulf %109, %116 : vector<8x64xf32>
    %118 = arith.truncf %117 : vector<8x64xf32> to vector<8x64xbf16>
    %c0_58 = arith.constant 0 : index
    %c0_59 = arith.constant 0 : index
    %119 = vector.load %arg16[%c0_58, %c0_59] : memref<64x32xbf16, #tpu.memory_space<vmem>>, vector<64x32xbf16>
    %cst_60 = arith.constant dense<0.000000e+00> : vector<8x32xf32>
    %120 = tpu.matmul %118, %119, %cst_60 {dimension_numbers = #tpu.dot_dimension_numbers<[1], [0], [0], [1], [0, 0, 1, 1], [], []>} : vector<8x64xbf16>, vector<64x32xbf16>, vector<8x32xf32> -> vector<8x32xf32>
    %c0_61 = arith.constant 0 : index
    %c0_62 = arith.constant 0 : index
    %121 = vector.load %arg17[%c0_61, %c0_62] : memref<1x32xf32, #tpu.memory_space<vmem>>, vector<1x32xf32>
    %122 = vector.shape_cast %121 : vector<1x32xf32> to vector<32xf32>
    %123 = vector.shape_cast %122 : vector<32xf32> to vector<1x32xf32>
    %124 = vector.broadcast %123 : vector<1x32xf32> to vector<8x32xf32>
    %125 = arith.addf %120, %124 : vector<8x32xf32>
    %126 = arith.addf %73, %125 : vector<8x32xf32>
    %c0_63 = arith.constant 0 : index
    %c0_64 = arith.constant 0 : index
    %c0_65 = arith.constant 0 : index
    %127 = vector.load %arg18[%c0_63, %c0_64, %c0_65] : memref<1x8x32xf32, #tpu.memory_space<vmem>>, vector<1x8x32xf32>
    %128 = vector.shape_cast %127 : vector<1x8x32xf32> to vector<8x32xf32>
    %129 = vector.shape_cast %126 : vector<8x32xf32> to vector<1x8x32xf32>
    tpu.vector_store %arg18[%c0_63, %c0_64, %c0_65], %129 {strides = array<i32>} : memref<1x8x32xf32, #tpu.memory_space<vmem>>, vector<1x8x32xf32>,
    return
  }
  func.func @transform_0(%arg0: i32) -> (i32, i32, i32) {
    %c0_i32 = arith.constant 0 : i32
    %c0_i32_0 = arith.constant 0 : i32
    %c0_i32_1 = arith.constant 0 : i32
    return %arg0, %c0_i32, %c0_i32_0 : i32, i32, i32
  }
  func.func @transform_1(%arg0: i32) -> (i32, i32) {
    %c0_i32 = arith.constant 0 : i32
    %c0_i32_0 = arith.constant 0 : i32
    %c0_i32_1 = arith.constant 0 : i32
    return %c0_i32, %c0_i32_0 : i32, i32
  }
  func.func @transform_2(%arg0: i32) -> (i32, i32) {
    %c0_i32 = arith.constant 0 : i32
    %c0_i32_0 = arith.constant 0 : i32
    %c0_i32_1 = arith.constant 0 : i32
    return %c0_i32, %c0_i32_0 : i32, i32
  }
  func.func @transform_3(%arg0: i32) -> (i32, i32, i32) {
    %c0_i32 = arith.constant 0 : i32
    %c0_i32_0 = arith.constant 0 : i32
    %c0_i32_1 = arith.constant 0 : i32
    %c0_i32_2 = arith.constant 0 : i32
    return %c0_i32, %c0_i32_0, %c0_i32_1 : i32, i32, i32
  }
  func.func @transform_4(%arg0: i32) -> (i32, i32, i32) {
    %c0_i32 = arith.constant 0 : i32
    %c0_i32_0 = arith.constant 0 : i32
    %c0_i32_1 = arith.constant 0 : i32
    %c0_i32_2 = arith.constant 0 : i32
    return %c0_i32, %c0_i32_0, %c0_i32_1 : i32, i32, i32
  }
  func.func @transform_5(%arg0: i32) -> (i32, i32, i32) {
    %c0_i32 = arith.constant 0 : i32
    %c0_i32_0 = arith.constant 0 : i32
    %c0_i32_1 = arith.constant 0 : i32
    %c0_i32_2 = arith.constant 0 : i32
    return %c0_i32, %c0_i32_0, %c0_i32_1 : i32, i32, i32
  }
  func.func @transform_6(%arg0: i32) -> (i32, i32, i32) {
    %c0_i32 = arith.constant 0 : i32
    %c0_i32_0 = arith.constant 0 : i32
    %c0_i32_1 = arith.constant 0 : i32
    %c0_i32_2 = arith.constant 0 : i32
    return %c0_i32, %c0_i32_0, %c0_i32_1 : i32, i32, i32
  }
  func.func @transform_7(%arg0: i32) -> (i32, i32, i32) {
    %c0_i32 = arith.constant 0 : i32
    %c0_i32_0 = arith.constant 0 : i32
    %c0_i32_1 = arith.constant 0 : i32
    %c0_i32_2 = arith.constant 0 : i32
    return %c0_i32, %c0_i32_0, %c0_i32_1 : i32, i32, i32
  }
  func.func @transform_8(%arg0: i32) -> (i32, i32, i32) {
    %c0_i32 = arith.constant 0 : i32
    %c0_i32_0 = arith.constant 0 : i32
    %c0_i32_1 = arith.constant 0 : i32
    %c0_i32_2 = arith.constant 0 : i32
    return %c0_i32, %c0_i32_0, %c0_i32_1 : i32, i32, i32
  }
  func.func @transform_9(%arg0: i32) -> (i32, i32, i32) {
    %c0_i32 = arith.constant 0 : i32
    %c0_i32_0 = arith.constant 0 : i32
    %c0_i32_1 = arith.constant 0 : i32
    %c0_i32_2 = arith.constant 0 : i32
    return %c0_i32, %c0_i32_0, %c0_i32_1 : i32, i32, i32
  }
  func.func @transform_10(%arg0: i32) -> (i32, i32) {
    %c0_i32 = arith.constant 0 : i32
    %c0_i32_0 = arith.constant 0 : i32
    %c0_i32_1 = arith.constant 0 : i32
    return %c0_i32, %c0_i32_0 : i32, i32
  }
  func.func @transform_11(%arg0: i32) -> (i32, i32) {
    %c0_i32 = arith.constant 0 : i32
    %c0_i32_0 = arith.constant 0 : i32
    %c0_i32_1 = arith.constant 0 : i32
    return %c0_i32, %c0_i32_0 : i32, i32
  }
  func.func @transform_12(%arg0: i32) -> (i32, i32) {
    %c0_i32 = arith.constant 0 : i32
    %c0_i32_0 = arith.constant 0 : i32
    %c0_i32_1 = arith.constant 0 : i32
    return %c0_i32, %c0_i32_0 : i32, i32
  }
  func.func @transform_13(%arg0: i32) -> (i32, i32) {
    %c0_i32 = arith.constant 0 : i32
    %c0_i32_0 = arith.constant 0 : i32
    %c0_i32_1 = arith.constant 0 : i32
    return %c0_i32, %c0_i32_0 : i32, i32
  }
  func.func @transform_14(%arg0: i32) -> (i32, i32) {
    %c0_i32 = arith.constant 0 : i32
    %c0_i32_0 = arith.constant 0 : i32
    %c0_i32_1 = arith.constant 0 : i32
    return %c0_i32, %c0_i32_0 : i32, i32
  }
  func.func @transform_15(%arg0: i32) -> (i32, i32) {
    %c0_i32 = arith.constant 0 : i32
    %c0_i32_0 = arith.constant 0 : i32
    %c0_i32_1 = arith.constant 0 : i32
    return %c0_i32, %c0_i32_0 : i32, i32
  }
  func.func @transform_16(%arg0: i32) -> (i32, i32) {
    %c0_i32 = arith.constant 0 : i32
    %c0_i32_0 = arith.constant 0 : i32
    %c0_i32_1 = arith.constant 0 : i32
    return %c0_i32, %c0_i32_0 : i32, i32
  }
  func.func @transform_17(%arg0: i32) -> (i32, i32, i32) {
    %c0_i32 = arith.constant 0 : i32
    %c0_i32_0 = arith.constant 0 : i32
    %c0_i32_1 = arith.constant 0 : i32
    return %arg0, %c0_i32, %c0_i32_0 : i32, i32, i32
  }
}

module attributes {stable_mosaic.version = 11 : i64} {
  func.func @block_kernel(%arg0: i32, %arg1: memref<1x8x32xf32, #tpu.memory_space<vmem>>, %arg2: memref<1x32xf32, #tpu.memory_space<vmem>>, %arg3: memref<1x32xf32, #tpu.memory_space<vmem>>, %arg4: memref<4x32x8xbf16, #tpu.memory_space<vmem>>, %arg5: memref<4x1x8xf32, #tpu.memory_space<vmem>>, %arg6: memref<4x32x8xbf16, #tpu.memory_space<vmem>>, %arg7: memref<4x1x8xf32, #tpu.memory_space<vmem>>, %arg8: memref<4x32x8xbf16, #tpu.memory_space<vmem>>, %arg9: memref<4x1x8xf32, #tpu.memory_space<vmem>>, %arg10: memref<4x8x32xbf16, #tpu.memory_space<vmem>>, %arg11: memref<1x32xf32, #tpu.memory_space<vmem>>, %arg12: memref<1x32xf32, #tpu.memory_space<vmem>>, %arg13: memref<1x32xf32, #tpu.memory_space<vmem>>, %arg14: memref<32x64xbf16, #tpu.memory_space<vmem>>, %arg15: memref<1x64xf32, #tpu.memory_space<vmem>>, %arg16: memref<64x32xbf16, #tpu.memory_space<vmem>>, %arg17: memref<1x32xf32, #tpu.memory_space<vmem>>, %arg18: memref<1x8x32xf32, #tpu.memory_space<vmem>>) attributes {dimension_semantics = [#tpu.dimension_semantics<parallel>], iteration_bounds = array<i64: 2>, scalar_prefetch = 0 : i64, scratch_operands = 0 : i64, tpu.core_type = #tpu.core_type<tc>, window_params = [{transform_indices = @transform_0, window_bounds = array<i64: 1, 8, 32>}, {pipeline_mode = #tpu.pipeline_mode<synchronous>, transform_indices = @transform_1, window_bounds = array<i64: 1, 32>}, {pipeline_mode = #tpu.pipeline_mode<synchronous>, transform_indices = @transform_2, window_bounds = array<i64: 1, 32>}, {pipeline_mode = #tpu.pipeline_mode<synchronous>, transform_indices = @transform_3, window_bounds = array<i64: 4, 32, 8>}, {pipeline_mode = #tpu.pipeline_mode<synchronous>, transform_indices = @transform_4, window_bounds = array<i64: 4, 1, 8>}, {pipeline_mode = #tpu.pipeline_mode<synchronous>, transform_indices = @transform_5, window_bounds = array<i64: 4, 32, 8>}, {pipeline_mode = #tpu.pipeline_mode<synchronous>, transform_indices = @transform_6, window_bounds = array<i64: 4, 1, 8>}, {pipeline_mode = #tpu.pipeline_mode<synchronous>, transform_indices = @transform_7, window_bounds = array<i64: 4, 32, 8>}, {pipeline_mode = #tpu.pipeline_mode<synchronous>, transform_indices = @transform_8, window_bounds = array<i64: 4, 1, 8>}, {pipeline_mode = #tpu.pipeline_mode<synchronous>, transform_indices = @transform_9, window_bounds = array<i64: 4, 8, 32>}, {pipeline_mode = #tpu.pipeline_mode<synchronous>, transform_indices = @transform_10, window_bounds = array<i64: 1, 32>}, {pipeline_mode = #tpu.pipeline_mode<synchronous>, transform_indices = @transform_11, window_bounds = array<i64: 1, 32>}, {pipeline_mode = #tpu.pipeline_mode<synchronous>, transform_indices = @transform_12, window_bounds = array<i64: 1, 32>}, {pipeline_mode = #tpu.pipeline_mode<synchronous>, transform_indices = @transform_13, window_bounds = array<i64: 32, 64>}, {pipeline_mode = #tpu.pipeline_mode<synchronous>, transform_indices = @transform_14, window_bounds = array<i64: 1, 64>}, {pipeline_mode = #tpu.pipeline_mode<synchronous>, transform_indices = @transform_15, window_bounds = array<i64: 64, 32>}, {pipeline_mode = #tpu.pipeline_mode<synchronous>, transform_indices = @transform_16, window_bounds = array<i64: 1, 32>}, {transform_indices = @transform_17, window_bounds = array<i64: 1, 8, 32>}]} {
    %c0 = arith.constant 0 : index
    %c0_0 = arith.constant 0 : index
    %c0_1 = arith.constant 0 : index
    %0 = vector.load %arg1[%c0, %c0_0, %c0_1] : memref<1x8x32xf32, #tpu.memory_space<vmem>>, vector<1x8x32xf32>
    %1 = vector.shape_cast %0 : vector<1x8x32xf32> to vector<8x32xf32>
    %c0_2 = arith.constant 0 : index
    %c0_3 = arith.constant 0 : index
    %2 = vector.load %arg2[%c0_2, %c0_3] : memref<1x32xf32, #tpu.memory_space<vmem>>, vector<1x32xf32>
    %3 = vector.shape_cast %2 : vector<1x32xf32> to vector<32xf32>
    %c0_4 = arith.constant 0 : index
    %c0_5 = arith.constant 0 : index
    %4 = vector.load %arg3[%c0_4, %c0_5] : memref<1x32xf32, #tpu.memory_space<vmem>>, vector<1x32xf32>
    %5 = vector.shape_cast %4 : vector<1x32xf32> to vector<32xf32>
    %cst = arith.constant dense<0.000000e+00> : vector<8xf32>
    %6 = vector.multi_reduction <add>, %1, %cst [1] : vector<8x32xf32> to vector<8xf32>
    %7 = vector.shape_cast %6 : vector<8xf32> to vector<8x1xf32>
    %cst_6 = arith.constant 3.200000e+01 : f32
    %8 = vector.broadcast %cst_6 : f32 to vector<8x1xf32>
    %9 = arith.divf %7, %8 : vector<8x1xf32>
    %10 = vector.broadcast %9 : vector<8x1xf32> to vector<8x32xf32>
    %11 = arith.subf %1, %10 : vector<8x32xf32>
    %12 = arith.mulf %11, %11 : vector<8x32xf32>
    %cst_7 = arith.constant dense<0.000000e+00> : vector<8xf32>
    %13 = vector.multi_reduction <add>, %12, %cst_7 [1] : vector<8x32xf32> to vector<8xf32>
    %14 = vector.shape_cast %13 : vector<8xf32> to vector<8x1xf32>
    %cst_8 = arith.constant 3.200000e+01 : f32
    %15 = vector.broadcast %cst_8 : f32 to vector<8x1xf32>
    %16 = arith.divf %14, %15 : vector<8x1xf32>
    %17 = vector.broadcast %9 : vector<8x1xf32> to vector<8x32xf32>
    %18 = arith.subf %1, %17 : vector<8x32xf32>
    %cst_9 = arith.constant 9.99999997E-7 : f32
    %19 = vector.broadcast %cst_9 : f32 to vector<8x1xf32>
    %20 = arith.addf %16, %19 : vector<8x1xf32>
    %21 = math.rsqrt %20 : vector<8x1xf32>
    %22 = vector.broadcast %21 : vector<8x1xf32> to vector<8x32xf32>
    %23 = arith.mulf %18, %22 : vector<8x32xf32>
    %24 = vector.shape_cast %3 : vector<32xf32> to vector<1x32xf32>
    %25 = vector.broadcast %24 : vector<1x32xf32> to vector<8x32xf32>
    %26 = arith.mulf %23, %25 : vector<8x32xf32>
    %27 = vector.shape_cast %5 : vector<32xf32> to vector<1x32xf32>
    %28 = vector.broadcast %27 : vector<1x32xf32> to vector<8x32xf32>
    %29 = arith.addf %26, %28 : vector<8x32xf32>
    %30 = arith.truncf %29 : vector<8x32xf32> to vector<8x32xbf16>
    %31 = vector.shape_cast %30 : vector<8x32xbf16> to vector<1x8x32xbf16>
    %32 = vector.broadcast %31 : vector<1x8x32xbf16> to vector<4x8x32xbf16>
    %c0_10 = arith.constant 0 : index
    %c0_11 = arith.constant 0 : index
    %c0_12 = arith.constant 0 : index
    %33 = vector.load %arg4[%c0_10, %c0_11, %c0_12] : memref<4x32x8xbf16, #tpu.memory_space<vmem>>, vector<4x32x8xbf16>
    "tpu.trace_start"() <{level = 10 : i32, message = "hsd,hde->hse"}> : () -> ()
    %cst_13 = arith.constant dense<0.000000e+00> : vector<4x8x8xf32>
    %34 = tpu.matmul %32, %33, %cst_13 {dimension_numbers = #tpu.dot_dimension_numbers<[2], [1], [1], [2], [0, 0, 0, 1, 1, 2], [0], [0]>} : vector<4x8x32xbf16>, vector<4x32x8xbf16>, vector<4x8x8xf32> -> vector<4x8x8xf32>
    "tpu.trace_stop"() : () -> ()
    %c0_14 = arith.constant 0 : index
    %c0_15 = arith.constant 0 : index
    %c0_16 = arith.constant 0 : index
    %35 = vector.load %arg5[%c0_14, %c0_15, %c0_16] : memref<4x1x8xf32, #tpu.memory_space<vmem>>, vector<4x1x8xf32>
    %36 = vector.broadcast %35 : vector<4x1x8xf32> to vector<4x8x8xf32>
    %37 = arith.addf %34, %36 : vector<4x8x8xf32>
    %c0_17 = arith.constant 0 : index
    %c0_18 = arith.constant 0 : index
    %c0_19 = arith.constant 0 : index
    %38 = vector.load %arg6[%c0_17, %c0_18, %c0_19] : memref<4x32x8xbf16, #tpu.memory_space<vmem>>, vector<4x32x8xbf16>
    "tpu.trace_start"() <{level = 10 : i32, message = "hsd,hde->hse"}> : () -> ()
    %cst_20 = arith.constant dense<0.000000e+00> : vector<4x8x8xf32>
    %39 = tpu.matmul %32, %38, %cst_20 {dimension_numbers = #tpu.dot_dimension_numbers<[2], [1], [1], [2], [0, 0, 0, 1, 1, 2], [0], [0]>} : vector<4x8x32xbf16>, vector<4x32x8xbf16>, vector<4x8x8xf32> -> vector<4x8x8xf32>
    "tpu.trace_stop"() : () -> ()
    %c0_21 = arith.constant 0 : index
    %c0_22 = arith.constant 0 : index
    %c0_23 = arith.constant 0 : index
    %40 = vector.load %arg7[%c0_21, %c0_22, %c0_23] : memref<4x1x8xf32, #tpu.memory_space<vmem>>, vector<4x1x8xf32>
    %41 = vector.broadcast %40 : vector<4x1x8xf32> to vector<4x8x8xf32>
    %42 = arith.addf %39, %41 : vector<4x8x8xf32>
    %c0_24 = arith.constant 0 : index
    %c0_25 = arith.constant 0 : index
    %c0_26 = arith.constant 0 : index
    %43 = vector.load %arg8[%c0_24, %c0_25, %c0_26] : memref<4x32x8xbf16, #tpu.memory_space<vmem>>, vector<4x32x8xbf16>
    "tpu.trace_start"() <{level = 10 : i32, message = "hsd,hde->hse"}> : () -> ()
    %cst_27 = arith.constant dense<0.000000e+00> : vector<4x8x8xf32>
    %44 = tpu.matmul %32, %43, %cst_27 {dimension_numbers = #tpu.dot_dimension_numbers<[2], [1], [1], [2], [0, 0, 0, 1, 1, 2], [0], [0]>} : vector<4x8x32xbf16>, vector<4x32x8xbf16>, vector<4x8x8xf32> -> vector<4x8x8xf32>
    "tpu.trace_stop"() : () -> ()
    %c0_28 = arith.constant 0 : index
    %c0_29 = arith.constant 0 : index
    %c0_30 = arith.constant 0 : index
    %45 = vector.load %arg9[%c0_28, %c0_29, %c0_30] : memref<4x1x8xf32, #tpu.memory_space<vmem>>, vector<4x1x8xf32>
    %46 = vector.broadcast %45 : vector<4x1x8xf32> to vector<4x8x8xf32>
    %47 = arith.addf %44, %46 : vector<4x8x8xf32>
    %48 = arith.truncf %37 : vector<4x8x8xf32> to vector<4x8x8xbf16>
    %49 = arith.truncf %42 : vector<4x8x8xf32> to vector<4x8x8xbf16>
    "tpu.trace_start"() <{level = 10 : i32, message = "hqd,hkd->hqk"}> : () -> ()
    %cst_31 = arith.constant dense<0.000000e+00> : vector<4x8x8xf32>
    %50 = tpu.matmul %48, %49, %cst_31 {dimension_numbers = #tpu.dot_dimension_numbers<[2], [2], [1], [1], [0, 0, 0, 1, 1, 1], [0], [0]>} : vector<4x8x8xbf16>, vector<4x8x8xbf16>, vector<4x8x8xf32> -> vector<4x8x8xf32>
    "tpu.trace_stop"() : () -> ()
    %cst_32 = arith.constant dense<0xFF800000> : vector<4x8xf32>
    %51 = vector.multi_reduction <maximumf>, %50, %cst_32 [2] : vector<4x8x8xf32> to vector<4x8xf32>
    %52 = vector.shape_cast %51 : vector<4x8xf32> to vector<4x8x1xf32>
    %53 = vector.broadcast %52 : vector<4x8x1xf32> to vector<4x8x8xf32>
    %54 = arith.subf %50, %53 : vector<4x8x8xf32>
    %55 = math.exp %54 : vector<4x8x8xf32>
    %cst_33 = arith.constant dense<0.000000e+00> : vector<4x8xf32>
    %56 = vector.multi_reduction <add>, %55, %cst_33 [2] : vector<4x8x8xf32> to vector<4x8xf32>
    %57 = vector.shape_cast %56 : vector<4x8xf32> to vector<4x8x1xf32>
    %58 = tpu.reciprocal %57 {approx = true} : vector<4x8x1xf32> -> vector<4x8x1xf32>
    %59 = vector.broadcast %58 : vector<4x8x1xf32> to vector<4x8x8xf32>
    %60 = arith.mulf %55, %59 : vector<4x8x8xf32>
    %61 = arith.truncf %60 : vector<4x8x8xf32> to vector<4x8x8xbf16>
    %62 = arith.truncf %47 : vector<4x8x8xf32> to vector<4x8x8xbf16>
    "tpu.trace_start"() <{level = 10 : i32, message = "hqk,hkd->hqd"}> : () -> ()
    %cst_34 = arith.constant dense<0.000000e+00> : vector<4x8x8xf32>
    %63 = tpu.matmul %61, %62, %cst_34 {dimension_numbers = #tpu.dot_dimension_numbers<[2], [1], [1], [2], [0, 0, 0, 1, 1, 2], [0], [0]>} : vector<4x8x8xbf16>, vector<4x8x8xbf16>, vector<4x8x8xf32> -> vector<4x8x8xf32>
    "tpu.trace_stop"() : () -> ()
    %64 = arith.truncf %63 : vector<4x8x8xf32> to vector<4x8x8xbf16>
    %c0_35 = arith.constant 0 : index
    %c0_36 = arith.constant 0 : index
    %c0_37 = arith.constant 0 : index
    %65 = vector.load %arg10[%c0_35, %c0_36, %c0_37] : memref<4x8x32xbf16, #tpu.memory_space<vmem>>, vector<4x8x32xbf16>
    "tpu.trace_start"() <{level = 10 : i32, message = "hqd,hdo->hqo"}> : () -> ()
    %cst_38 = arith.constant dense<0.000000e+00> : vector<4x8x32xf32>
    %66 = tpu.matmul %64, %65, %cst_38 {dimension_numbers = #tpu.dot_dimension_numbers<[2], [1], [1], [2], [0, 0, 0, 1, 1, 2], [0], [0]>} : vector<4x8x8xbf16>, vector<4x8x32xbf16>, vector<4x8x32xf32> -> vector<4x8x32xf32>
    "tpu.trace_stop"() : () -> ()
    %cst_39 = arith.constant dense<0.000000e+00> : vector<8x32xf32>
    %67 = vector.multi_reduction <add>, %66, %cst_39 [0] : vector<4x8x32xf32> to vector<8x32xf32>
    %c0_40 = arith.constant 0 : index
    %c0_41 = arith.constant 0 : index
    %68 = vector.load %arg11[%c0_40, %c0_41] : memref<1x32xf32, #tpu.memory_space<vmem>>, vector<1x32xf32>
    %69 = vector.shape_cast %68 : vector<1x32xf32> to vector<32xf32>
    %70 = vector.shape_cast %69 : vector<32xf32> to vector<1x32xf32>
    %71 = vector.broadcast %70 : vector<1x32xf32> to vector<8x32xf32>
    %72 = arith.addf %67, %71 : vector<8x32xf32>
    %73 = arith.addf %1, %72 : vector<8x32xf32>
    %c0_42 = arith.constant 0 : index
    %c0_43 = arith.constant 0 : index
    %74 = vector.load %arg12[%c0_42, %c0_43] : memref<1x32xf32, #tpu.memory_space<vmem>>, vector<1x32xf32>
    %75 = vector.shape_cast %74 : vector<1x32xf32> to vector<32xf32>
    %c0_44 = arith.constant 0 : index
    %c0_45 = arith.constant 0 : index
    %76 = vector.load %arg13[%c0_44, %c0_45] : memref<1x32xf32, #tpu.memory_space<vmem>>, vector<1x32xf32>
    %77 = vector.shape_cast %76 : vector<1x32xf32> to vector<32xf32>
    %cst_46 = arith.constant dense<0.000000e+00> : vector<8xf32>
    %78 = vector.multi_reduction <add>, %73, %cst_46 [1] : vector<8x32xf32> to vector<8xf32>
    %79 = vector.shape_cast %78 : vector<8xf32> to vector<8x1xf32>
    %cst_47 = arith.constant 3.200000e+01 : f32
    %80 = vector.broadcast %cst_47 : f32 to vector<8x1xf32>
    %81 = arith.divf %79, %80 : vector<8x1xf32>
    %82 = vector.broadcast %81 : vector<8x1xf32> to vector<8x32xf32>
    %83 = arith.subf %73, %82 : vector<8x32xf32>
    %84 = arith.mulf %83, %83 : vector<8x32xf32>
    %cst_48 = arith.constant dense<0.000000e+00> : vector<8xf32>
    %85 = vector.multi_reduction <add>, %84, %cst_48 [1] : vector<8x32xf32> to vector<8xf32>
    %86 = vector.shape_cast %85 : vector<8xf32> to vector<8x1xf32>
    %cst_49 = arith.constant 3.200000e+01 : f32
    %87 = vector.broadcast %cst_49 : f32 to vector<8x1xf32>
    %88 = arith.divf %86, %87 : vector<8x1xf32>
    %89 = vector.broadcast %81 : vector<8x1xf32> to vector<8x32xf32>
    %90 = arith.subf %73, %89 : vector<8x32xf32>
    %cst_50 = arith.constant 9.99999997E-7 : f32
    %91 = vector.broadcast %cst_50 : f32 to vector<8x1xf32>
    %92 = arith.addf %88, %91 : vector<8x1xf32>
    %93 = math.rsqrt %92 : vector<8x1xf32>
    %94 = vector.broadcast %93 : vector<8x1xf32> to vector<8x32xf32>
    %95 = arith.mulf %90, %94 : vector<8x32xf32>
    %96 = vector.shape_cast %75 : vector<32xf32> to vector<1x32xf32>
    %97 = vector.broadcast %96 : vector<1x32xf32> to vector<8x32xf32>
    %98 = arith.mulf %95, %97 : vector<8x32xf32>
    %99 = vector.shape_cast %77 : vector<32xf32> to vector<1x32xf32>
    %100 = vector.broadcast %99 : vector<1x32xf32> to vector<8x32xf32>
    %101 = arith.addf %98, %100 : vector<8x32xf32>
    %102 = arith.truncf %101 : vector<8x32xf32> to vector<8x32xbf16>
    %c0_51 = arith.constant 0 : index
    %c0_52 = arith.constant 0 : index
    %103 = vector.load %arg14[%c0_51, %c0_52] : memref<32x64xbf16, #tpu.memory_space<vmem>>, vector<32x64xbf16>
    %cst_53 = arith.constant dense<0.000000e+00> : vector<8x64xf32>
    %104 = tpu.matmul %102, %103, %cst_53 {dimension_numbers = #tpu.dot_dimension_numbers<[1], [0], [0], [1], [0, 0, 1, 1], [], []>} : vector<8x32xbf16>, vector<32x64xbf16>, vector<8x64xf32> -> vector<8x64xf32>
    %c0_54 = arith.constant 0 : index
    %c0_55 = arith.constant 0 : index
    %105 = vector.load %arg15[%c0_54, %c0_55] : memref<1x64xf32, #tpu.memory_space<vmem>>, vector<1x64xf32>
    %106 = vector.shape_cast %105 : vector<1x64xf32> to vector<64xf32>
    %107 = vector.shape_cast %106 : vector<64xf32> to vector<1x64xf32>
    %108 = vector.broadcast %107 : vector<1x64xf32> to vector<8x64xf32>
    %109 = arith.addf %104, %108 : vector<8x64xf32>
    %cst_56 = arith.constant 1.702000e+00 : f32
    %110 = vector.broadcast %cst_56 : f32 to vector<8x64xf32>
    %111 = arith.mulf %110, %109 : vector<8x64xf32>
    %112 = arith.negf %111 : vector<8x64xf32>
    %113 = math.exp %112 : vector<8x64xf32>
    %cst_57 = arith.constant 1.000000e+00 : f32
    %114 = vector.broadcast %cst_57 : f32 to vector<8x64xf32>
    %115 = arith.addf %114, %113 : vector<8x64xf32>
    %116 = arith.divf %114, %115 : vector<8x64xf32>
    %117 = arith.mulf %109, %116 : vector<8x64xf32>
    %118 = arith.truncf %117 : vector<8x64xf32> to vector<8x64xbf16>
    %c0_58 = arith.constant 0 : index
    %c0_59 = arith.constant 0 : index
    %119 = vector.load %arg16[%c0_58, %c0_59] : memref<64x32xbf16, #tpu.memory_space<vmem>>, vector<64x32xbf16>
    %cst_60 = arith.constant dense<0.000000e+00> : vector<8x32xf32>
    %120 = tpu.matmul %118, %119, %cst_60 {dimension_numbers = #tpu.dot_dimension_numbers<[1], [0], [0], [1], [0, 0, 1, 1], [], []>} : vector<8x64xbf16>, vector<64x32xbf16>, vector<8x32xf32> -> vector<8x32xf32>
    %c0_61 = arith.constant 0 : index
    %c0_62 = arith.constant 0 : index
    %121 = vector.load %arg17[%c0_61, %c0_62] : memref<1x32xf32, #tpu.memory_space<vmem>>, vector<1x32xf32>
    %122 = vector.shape_cast %121 : vector<1x32xf32> to vector<32xf32>
    %123 = vector.shape_cast %122 : vector<32xf32> to vector<1x32xf32>
    %124 = vector.broadcast %123 : vector<1x32xf32> to vector<8x32xf32>
    %125 = arith.addf %120, %124 : vector<8x32xf32>
    %126 = arith.addf %73, %125 : vector<8x32xf32>
    %c0_63 = arith.constant 0 : index
    %c0_64 = arith.constant 0 : index
    %c0_65 = arith.constant 0 : index
    %127 = vector.load %arg18[%c0_63, %c0_64, %c0_65] : memref<1x8x32xf32, #tpu.memory_space<vmem>>, vector<1x8x32xf32>
    %128 = vector.shape_cast %127 : vector<1x8x32xf32> to vector<8x32xf32>
    %129 = vector.shape_cast %126 : vector<8x32xf32> to vector<1x8x32xf32>
    tpu.vector_store %arg18[%c0_63, %c0_64, %c0_65], %129 {strides = array<i32>} : memref<1x8x32xf32, #tpu.memory_space<vmem>>, vector<1x8x32xf32>,
    return
  }
  func.func @transform_0(%arg0: i32) -> (i32, i32, i32) {
    %c0_i32 = arith.constant 0 : i32
    %c0_i32_0 = arith.constant 0 : i32
    %c0_i32_1 = arith.constant 0 : i32
    return %arg0, %c0_i32, %c0_i32_0 : i32, i32, i32
  }
  func.func @transform_1(%arg0: i32) -> (i32, i32) {
    %c0_i32 = arith.constant 0 : i32
    %c0_i32_0 = arith.constant 0 : i32
    %c0_i32_1 = arith.constant 0 : i32
    return %c0_i32, %c0_i32_0 : i32, i32
  }
  func.func @transform_2(%arg0: i32) -> (i32, i32) {
    %c0_i32 = arith.constant 0 : i32
    %c0_i32_0 = arith.constant 0 : i32
    %c0_i32_1 = arith.constant 0 : i32
    return %c0_i32, %c0_i32_0 : i32, i32
  }
  func.func @transform_3(%arg0: i32) -> (i32, i32, i32) {
    %c0_i32 = arith.constant 0 : i32
    %c0_i32_0 = arith.constant 0 : i32
    %c0_i32_1 = arith.constant 0 : i32
    %c0_i32_2 = arith.constant 0 : i32
    return %c0_i32, %c0_i32_0, %c0_i32_1 : i32, i32, i32
  }
  func.func @transform_4(%arg0: i32) -> (i32, i32, i32) {
    %c0_i32 = arith.constant 0 : i32
    %c0_i32_0 = arith.constant 0 : i32
    %c0_i32_1 = arith.constant 0 : i32
    %c0_i32_2 = arith.constant 0 : i32
    return %c0_i32, %c0_i32_0, %c0_i32_1 : i32, i32, i32
  }
  func.func @transform_5(%arg0: i32) -> (i32, i32, i32) {
    %c0_i32 = arith.constant 0 : i32
    %c0_i32_0 = arith.constant 0 : i32
    %c0_i32_1 = arith.constant 0 : i32
    %c0_i32_2 = arith.constant 0 : i32
    return %c0_i32, %c0_i32_0, %c0_i32_1 : i32, i32, i32
  }
  func.func @transform_6(%arg0: i32) -> (i32, i32, i32) {
    %c0_i32 = arith.constant 0 : i32
    %c0_i32_0 = arith.constant 0 : i32
    %c0_i32_1 = arith.constant 0 : i32
    %c0_i32_2 = arith.constant 0 : i32
    return %c0_i32, %c0_i32_0, %c0_i32_1 : i32, i32, i32
  }
  func.func @transform_7(%arg0: i32) -> (i32, i32, i32) {
    %c0_i32 = arith.constant 0 : i32
    %c0_i32_0 = arith.constant 0 : i32
    %c0_i32_1 = arith.constant 0 : i32
    %c0_i32_2 = arith.constant 0 : i32
    return %c0_i32, %c0_i32_0, %c0_i32_1 : i32, i32, i32
  }
  func.func @transform_8(%arg0: i32) -> (i32, i32, i32) {
    %c0_i32 = arith.constant 0 : i32
    %c0_i32_0 = arith.constant 0 : i32
    %c0_i32_1 = arith.constant 0 : i32
    %c0_i32_2 = arith.constant 0 : i32
    return %c0_i32, %c0_i32_0, %c0_i32_1 : i32, i32, i32
  }
  func.func @transform_9(%arg0: i32) -> (i32, i32, i32) {
    %c0_i32 = arith.constant 0 : i32
    %c0_i32_0 = arith.constant 0 : i32
    %c0_i32_1 = arith.constant 0 : i32
    %c0_i32_2 = arith.constant 0 : i32
    return %c0_i32, %c0_i32_0, %c0_i32_1 : i32, i32, i32
  }
  func.func @transform_10(%arg0: i32) -> (i32, i32) {
    %c0_i32 = arith.constant 0 : i32
    %c0_i32_0 = arith.constant 0 : i32
    %c0_i32_1 = arith.constant 0 : i32
    return %c0_i32, %c0_i32_0 : i32, i32
  }
  func.func @transform_11(%arg0: i32) -> (i32, i32) {
    %c0_i32 = arith.constant 0 : i32
    %c0_i32_0 = arith.constant 0 : i32
    %c0_i32_1 = arith.constant 0 : i32
    return %c0_i32, %c0_i32_0 : i32, i32
  }
  func.func @transform_12(%arg0: i32) -> (i32, i32) {
    %c0_i32 = arith.constant 0 : i32
    %c0_i32_0 = arith.constant 0 : i32
    %c0_i32_1 = arith.constant 0 : i32
    return %c0_i32, %c0_i32_0 : i32, i32
  }
  func.func @transform_13(%arg0: i32) -> (i32, i32) {
    %c0_i32 = arith.constant 0 : i32
    %c0_i32_0 = arith.constant 0 : i32
    %c0_i32_1 = arith.constant 0 : i32
    return %c0_i32, %c0_i32_0 : i32, i32
  }
  func.func @transform_14(%arg0: i32) -> (i32, i32) {
    %c0_i32 = arith.constant 0 : i32
    %c0_i32_0 = arith.constant 0 : i32
    %c0_i32_1 = arith.constant 0 : i32
    return %c0_i32, %c0_i32_0 : i32, i32
  }
  func.func @transform_15(%arg0: i32) -> (i32, i32) {
    %c0_i32 = arith.constant 0 : i32
    %c0_i32_0 = arith.constant 0 : i32
    %c0_i32_1 = arith.constant 0 : i32
    return %c0_i32, %c0_i32_0 : i32, i32
  }
  func.func @transform_16(%arg0: i32) -> (i32, i32) {
    %c0_i32 = arith.constant 0 : i32
    %c0_i32_0 = arith.constant 0 : i32
    %c0_i32_1 = arith.constant 0 : i32
    return %c0_i32, %c0_i32_0 : i32, i32
  }
  func.func @transform_17(%arg0: i32) -> (i32, i32, i32) {
    %c0_i32 = arith.constant 0 : i32
    %c0_i32_0 = arith.constant 0 : i32
    %c0_i32_1 = arith.constant 0 : i32
    return %arg0, %c0_i32, %c0_i32_0 : i32, i32, i32
  }
}

</mosaic_0001>

<llo_original>
// kernel: tpu_custom_call.1
$region0: #{tpu_custom_call.1}
  #allocation0 [shape = 'u32[]', space=smem, size = 0x4, offset = 0x4, fixed_abs, tag = 'smem constant byte address 0x4 - core index']
  #allocation1 [shape = 'u32[72,128]{1,0:T(1,128)}', space=vmem, size = 0x9000, scoped, tag = 'internal scratch']
  %s0 = inlined_call_operand.vmem [shape: f32[2,8,32], index: 0, kind: input, shape index: {}]
  %s1 = inlined_call_operand.vmem [shape: f32[1,32], index: 1, kind: input, shape index: {}]
  %s2 = inlined_call_operand.vmem [shape: f32[1,32], index: 2, kind: input, shape index: {}]
  %s3 = inlined_call_operand.vmem [shape: bf16[4,32,8], index: 3, kind: input, shape index: {}]
  %s4 = inlined_call_operand.vmem [shape: f32[4,1,8], index: 4, kind: input, shape index: {}]
  %s5 = inlined_call_operand.vmem [shape: bf16[4,32,8], index: 5, kind: input, shape index: {}]
  %s6 = inlined_call_operand.vmem [shape: f32[4,1,8], index: 6, kind: input, shape index: {}]
  %s7 = inlined_call_operand.vmem [shape: bf16[4,32,8], index: 7, kind: input, shape index: {}]
  %s8 = inlined_call_operand.vmem [shape: f32[4,1,8], index: 8, kind: input, shape index: {}]
  %s9 = inlined_call_operand.vmem [shape: bf16[4,8,32], index: 9, kind: input, shape index: {}]
  %s10 = inlined_call_operand.vmem [shape: f32[1,32], index: 10, kind: input, shape index: {}]
  %s11 = inlined_call_operand.vmem [shape: f32[1,32], index: 11, kind: input, shape index: {}]
  %s12 = inlined_call_operand.vmem [shape: f32[1,32], index: 12, kind: input, shape index: {}]
  %s13 = inlined_call_operand.vmem [shape: bf16[32,64], index: 13, kind: input, shape index: {}]
  %s14 = inlined_call_operand.vmem [shape: f32[1,64], index: 14, kind: input, shape index: {}]
  %s15 = inlined_call_operand.vmem [shape: bf16[64,32], index: 15, kind: input, shape index: {}]
  %s16 = inlined_call_operand.vmem [shape: f32[1,32], index: 16, kind: input, shape index: {}]
  %s17 = inlined_call_operand.hbm [shape: f32[2,8,32], index: 17, kind: output, shape index: {}]
  %s18 = sld [smem:[#allocation0]]
  $region101: #{tpu_custom_call.1} parent=0
    _
  %s20 = ssub.s32 1, %s18
  %s21 = scalar_select 0, %s20, %s18
  $region1: #{tpu_custom_call.1} parent=0
    #allocation2 [shape = 'u8[8192]{0}', space=vmem, size = 0x2000, scoped, tag = 'output window, operand 0']
    #allocation3 [shape = 's32[2]{0}', space=sflag, size = 0x8, scoped, tag = 'scoped memory for tpu_custom_call.1']
    %22 = vsyncpa [#allocation3], 0
    %s23 = scalar_lea.sflag [#allocation3], 1
    %24 = vsyncpa %s23, 0
    loop: start=0, step=1, limit=4
    $region2: #{tpu_custom_call.1} parent=1 // loop_pre_header
      _
    $region3: #{tpu_custom_call.1} parent=1 // loop_header
      %s26 = sphi 0, %s30
      %p27 = scmp.ge.s32.totalorder %s26, 4
      %s36 = sphi 0, %s38
      %s39 = sphi 0, %s36
      %s40 = sphi 0, %s39
      %s56 = sphi 0, %s40
      %s60 = sphi 0, %s60
      %s62 = sphi 0, %s60
      %s63 = sphi 0, %s62
      %s77 = sphi 0, %s63
      %s81 = sphi 0, %s81
      %s83 = sphi 0, %s81
      %s84 = sphi 0, %s83
      %s98 = sphi 0, %s84
      %s102 = sphi 0, %s102
      %s104 = sphi 0, %s102
      %s105 = sphi 0, %s104
      %s119 = sphi 0, %s105
      %s123 = sphi 0, %s123
      %s125 = sphi 0, %s123
      %s126 = sphi 0, %s125
      %s140 = sphi 0, %s126
      %s144 = sphi 0, %s144
      %s146 = sphi 0, %s144
      %s147 = sphi 0, %s146
      %s161 = sphi 0, %s147
      %s165 = sphi 0, %s165
      %s167 = sphi 0, %s165
      %s168 = sphi 0, %s167
      %s182 = sphi 0, %s168
      %s186 = sphi 0, %s186
      %s188 = sphi 0, %s186
      %s189 = sphi 0, %s188
      %s203 = sphi 0, %s189
      %s207 = sphi 0, %s207
      %s209 = sphi 0, %s207
      %s210 = sphi 0, %s209
      %s224 = sphi 0, %s210
      %s228 = sphi 0, %s228
      %s230 = sphi 0, %s228
      %s231 = sphi 0, %s230
      %s245 = sphi 0, %s231
      %s249 = sphi 0, %s249
      %s251 = sphi 0, %s249
      %s252 = sphi 0, %s251
      %s266 = sphi 0, %s252
      %s270 = sphi 0, %s270
      %s272 = sphi 0, %s270
      %s273 = sphi 0, %s272
      %s287 = sphi 0, %s273
      %s291 = sphi 0, %s291
      %s293 = sphi 0, %s291
      %s294 = sphi 0, %s293
      %s308 = sphi 0, %s294
      %s312 = sphi 0, %s312
      %s314 = sphi 0, %s312
      %s315 = sphi 0, %s314
      %s329 = sphi 0, %s315
      %s333 = sphi 0, %s333
      %s335 = sphi 0, %s333
      %s336 = sphi 0, %s335
      %s350 = sphi 0, %s336
      %s354 = sphi 0, %s354
      %s356 = sphi 0, %s354
      %s357 = sphi 0, %s356
      %s371 = sphi 0, %s357
      %s375 = sphi 0, %s375
      %s377 = sphi 0, %s375
      %s378 = sphi 0, %s377
      %s392 = sphi 0, %s378
      %s398 = sphi 0, %s400
      %s401 = sphi 0, %s398
      %s402 = sphi 0, %s401
      %s418 = sphi 0, %s402
    $region4: #{tpu_custom_call.1} parent=1 // loop_header_branch
      %29 = sbr.rel (%p27) target = $region8
    $region5: #{tpu_custom_call.1} parent=1 // loop_body
      %s31 = ssub.s32 %s26, 1
      %s32 = ssub.s32 %s26, 2
      %s33 = sadd.s32 %s26, 1
      %s34 = ssub.s32 %s26, %s33
      %p35 = scmp.eq.s32.totalorder %s34, 0
      %s37 = sadd.s32 %s36, 1
      %s38 = scalar_select %p35, %s36, %s37
      %p41 = pneg %p35
      %p42 = scmp.eq.s32.totalorder %s26, 1
      %p43 = por %p41, %p42
      %p44 = scmp.ne.s32.totalorder %s36, %s39
      %p45 = scmp.eq.s32.totalorder %s26, 0
      %p46 = por %p44, %p45
      %p47 = scmp.ne.s32.totalorder %s36, %s39
      %p48 = scmp.eq.s32.totalorder %s31, 1
      %p49 = por %p47, %p48
      %p50 = scmp.ne.s32.totalorder %s39, %s40
      %p51 = scmp.eq.s32.totalorder %s31, 0
      %p52 = por %p50, %p51
      %p53 = scmp.ne.s32.totalorder %s39, %s40
      %p54 = scmp.eq.s32.totalorder %s32, 1
      %p55 = por %p53, %p54
      %p57 = scmp.ne.s32.totalorder %s40, %s56
      %p58 = scmp.eq.s32.totalorder %s32, 0
      %p59 = por %p57, %p58
      %s61 = sadd.s32 %s60, 1
      %p64 = scmp.eq.s32.totalorder %s26, 1
      %p65 = scmp.ne.s32.totalorder %s60, %s62
      %p66 = scmp.eq.s32.totalorder %s26, 0
      %p67 = por %p65, %p66
      %p68 = scmp.ne.s32.totalorder %s60, %s62
      %p69 = scmp.eq.s32.totalorder %s31, 1
      %p70 = por %p68, %p69
      %p71 = scmp.ne.s32.totalorder %s62, %s63
      %p72 = scmp.eq.s32.totalorder %s31, 0
      %p73 = por %p71, %p72
      %p74 = scmp.ne.s32.totalorder %s62, %s63
      %p75 = scmp.eq.s32.totalorder %s32, 1
      %p76 = por %p74, %p75
      %p78 = scmp.ne.s32.totalorder %s63, %s77
      %p79 = scmp.eq.s32.totalorder %s32, 0
      %p80 = por %p78, %p79
      %s82 = sadd.s32 %s81, 1
      %p85 = scmp.eq.s32.totalorder %s26, 1
      %p86 = scmp.ne.s32.totalorder %s81, %s83
      %p87 = scmp.eq.s32.totalorder %s26, 0
      %p88 = por %p86, %p87
      %p89 = scmp.ne.s32.totalorder %s81, %s83
      %p90 = scmp.eq.s32.totalorder %s31, 1
      %p91 = por %p89, %p90
      %p92 = scmp.ne.s32.totalorder %s83, %s84
      %p93 = scmp.eq.s32.totalorder %s31, 0
      %p94 = por %p92, %p93
      %p95 = scmp.ne.s32.totalorder %s83, %s84
      %p96 = scmp.eq.s32.totalorder %s32, 1
      %p97 = por %p95, %p96
      %p99 = scmp.ne.s32.totalorder %s84, %s98
      %p100 = scmp.eq.s32.totalorder %s32, 0
      %p101 = por %p99, %p100
      %s103 = sadd.s32 %s102, 1
      %p106 = scmp.eq.s32.totalorder %s26, 1
      %p107 = scmp.ne.s32.totalorder %s102, %s104
      %p108 = scmp.eq.s32.totalorder %s26, 0
      %p109 = por %p107, %p108
      %p110 = scmp.ne.s32.totalorder %s102, %s104
      %p111 = scmp.eq.s32.totalorder %s31, 1
      %p112 = por %p110, %p111
      %p113 = scmp.ne.s32.totalorder %s104, %s105
      %p114 = scmp.eq.s32.totalorder %s31, 0
      %p115 = por %p113, %p114
      %p116 = scmp.ne.s32.totalorder %s104, %s105
      %p117 = scmp.eq.s32.totalorder %s32, 1
      %p118 = por %p116, %p117
      %p120 = scmp.ne.s32.totalorder %s105, %s119
      %p121 = scmp.eq.s32.totalorder %s32, 0
      %p122 = por %p120, %p121
      %s124 = sadd.s32 %s123, 1
      %p127 = scmp.eq.s32.totalorder %s26, 1
      %p128 = scmp.ne.s32.totalorder %s123, %s125
      %p129 = scmp.eq.s32.totalorder %s26, 0
      %p130 = por %p128, %p129
      %p131 = scmp.ne.s32.totalorder %s123, %s125
      %p132 = scmp.eq.s32.totalorder %s31, 1
      %p133 = por %p131, %p132
      %p134 = scmp.ne.s32.totalorder %s125, %s126
      %p135 = scmp.eq.s32.totalorder %s31, 0
      %p136 = por %p134, %p135
      %p137 = scmp.ne.s32.totalorder %s125, %s126
      %p138 = scmp.eq.s32.totalorder %s32, 1
      %p139 = por %p137, %p138
      %p141 = scmp.ne.s32.totalorder %s126, %s140
      %p142 = scmp.eq.s32.totalorder %s32, 0
      %p143 = por %p141, %p142
      %s145 = sadd.s32 %s144, 1
      %p148 = scmp.eq.s32.totalorder %s26, 1
      %p149 = scmp.ne.s32.totalorder %s144, %s146
      %p150 = scmp.eq.s32.totalorder %s26, 0
      %p151 = por %p149, %p150
      %p152 = scmp.ne.s32.totalorder %s144, %s146
      %p153 = scmp.eq.s32.totalorder %s31, 1
      %p154 = por %p152, %p153
      %p155 = scmp.ne.s32.totalorder %s146, %s147
      %p156 = scmp.eq.s32.totalorder %s31, 0
      %p157 = por %p155, %p156
      %p158 = scmp.ne.s32.totalorder %s146, %s147
      %p159 = scmp.eq.s32.totalorder %s32, 1
      %p160 = por %p158, %p159
      %p162 = scmp.ne.s32.totalorder %s147, %s161
      %p163 = scmp.eq.s32.totalorder %s32, 0
      %p164 = por %p162, %p163
      %s166 = sadd.s32 %s165, 1
      %p169 = scmp.eq.s32.totalorder %s26, 1
      %p170 = scmp.ne.s32.totalorder %s165, %s167
      %p171 = scmp.eq.s32.totalorder %s26, 0
      %p172 = por %p170, %p171
      %p173 = scmp.ne.s32.totalorder %s165, %s167
      %p174 = scmp.eq.s32.totalorder %s31, 1
      %p175 = por %p173, %p174
      %p176 = scmp.ne.s32.totalorder %s167, %s168
      %p177 = scmp.eq.s32.totalorder %s31, 0
      %p178 = por %p176, %p177
      %p179 = scmp.ne.s32.totalorder %s167, %s168
      %p180 = scmp.eq.s32.totalorder %s32, 1
      %p181 = por %p179, %p180
      %p183 = scmp.ne.s32.totalorder %s168, %s182
      %p184 = scmp.eq.s32.totalorder %s32, 0
      %p185 = por %p183, %p184
      %s187 = sadd.s32 %s186, 1
      %p190 = scmp.eq.s32.totalorder %s26, 1
      %p191 = scmp.ne.s32.totalorder %s186, %s188
      %p192 = scmp.eq.s32.totalorder %s26, 0
      %p193 = por %p191, %p192
      %p194 = scmp.ne.s32.totalorder %s186, %s188
      %p195 = scmp.eq.s32.totalorder %s31, 1
      %p196 = por %p194, %p195
      %p197 = scmp.ne.s32.totalorder %s188, %s189
      %p198 = scmp.eq.s32.totalorder %s31, 0
      %p199 = por %p197, %p198
      %p200 = scmp.ne.s32.totalorder %s188, %s189
      %p201 = scmp.eq.s32.totalorder %s32, 1
      %p202 = por %p200, %p201
      %p204 = scmp.ne.s32.totalorder %s189, %s203
      %p205 = scmp.eq.s32.totalorder %s32, 0
      %p206 = por %p204, %p205
      %s208 = sadd.s32 %s207, 1
      %p211 = scmp.eq.s32.totalorder %s26, 1
      %p212 = scmp.ne.s32.totalorder %s207, %s209
      %p213 = scmp.eq.s32.totalorder %s26, 0
      %p214 = por %p212, %p213
      %p215 = scmp.ne.s32.totalorder %s207, %s209
      %p216 = scmp.eq.s32.totalorder %s31, 1
      %p217 = por %p215, %p216
      %p218 = scmp.ne.s32.totalorder %s209, %s210
      %p219 = scmp.eq.s32.totalorder %s31, 0
      %p220 = por %p218, %p219
      %p221 = scmp.ne.s32.totalorder %s209, %s210
      %p222 = scmp.eq.s32.totalorder %s32, 1
      %p223 = por %p221, %p222
      %p225 = scmp.ne.s32.totalorder %s210, %s224
      %p226 = scmp.eq.s32.totalorder %s32, 0
      %p227 = por %p225, %p226
      %s229 = sadd.s32 %s228, 1
      %p232 = scmp.eq.s32.totalorder %s26, 1
      %p233 = scmp.ne.s32.totalorder %s228, %s230
      %p234 = scmp.eq.s32.totalorder %s26, 0
      %p235 = por %p233, %p234
      %p236 = scmp.ne.s32.totalorder %s228, %s230
      %p237 = scmp.eq.s32.totalorder %s31, 1
      %p238 = por %p236, %p237
      %p239 = scmp.ne.s32.totalorder %s230, %s231
      %p240 = scmp.eq.s32.totalorder %s31, 0
      %p241 = por %p239, %p240
      %p242 = scmp.ne.s32.totalorder %s230, %s231
      %p243 = scmp.eq.s32.totalorder %s32, 1
      %p244 = por %p242, %p243
      %p246 = scmp.ne.s32.totalorder %s231, %s245
      %p247 = scmp.eq.s32.totalorder %s32, 0
      %p248 = por %p246, %p247
      %s250 = sadd.s32 %s249, 1
      %p253 = scmp.eq.s32.totalorder %s26, 1
      %p254 = scmp.ne.s32.totalorder %s249, %s251
      %p255 = scmp.eq.s32.totalorder %s26, 0
      %p256 = por %p254, %p255
      %p257 = scmp.ne.s32.totalorder %s249, %s251
      %p258 = scmp.eq.s32.totalorder %s31, 1
      %p259 = por %p257, %p258
      %p260 = scmp.ne.s32.totalorder %s251, %s252
      %p261 = scmp.eq.s32.totalorder %s31, 0
      %p262 = por %p260, %p261
      %p263 = scmp.ne.s32.totalorder %s251, %s252
      %p264 = scmp.eq.s32.totalorder %s32, 1
      %p265 = por %p263, %p264
      %p267 = scmp.ne.s32.totalorder %s252, %s266
      %p268 = scmp.eq.s32.totalorder %s32, 0
      %p269 = por %p267, %p268
      %s271 = sadd.s32 %s270, 1
      %p274 = scmp.eq.s32.totalorder %s26, 1
      %p275 = scmp.ne.s32.totalorder %s270, %s272
      %p276 = scmp.eq.s32.totalorder %s26, 0
      %p277 = por %p275, %p276
      %p278 = scmp.ne.s32.totalorder %s270, %s272
      %p279 = scmp.eq.s32.totalorder %s31, 1
      %p280 = por %p278, %p279
      %p281 = scmp.ne.s32.totalorder %s272, %s273
      %p282 = scmp.eq.s32.totalorder %s31, 0
      %p283 = por %p281, %p282
      %p284 = scmp.ne.s32.totalorder %s272, %s273
      %p285 = scmp.eq.s32.totalorder %s32, 1
      %p286 = por %p284, %p285
      %p288 = scmp.ne.s32.totalorder %s273, %s287
      %p289 = scmp.eq.s32.totalorder %s32, 0
      %p290 = por %p288, %p289
      %s292 = sadd.s32 %s291, 1
      %p295 = scmp.eq.s32.totalorder %s26, 1
      %p296 = scmp.ne.s32.totalorder %s291, %s293
      %p297 = scmp.eq.s32.totalorder %s26, 0
      %p298 = por %p296, %p297
      %p299 = scmp.ne.s32.totalorder %s291, %s293
      %p300 = scmp.eq.s32.totalorder %s31, 1
      %p301 = por %p299, %p300
      %p302 = scmp.ne.s32.totalorder %s293, %s294
      %p303 = scmp.eq.s32.totalorder %s31, 0
      %p304 = por %p302, %p303
      %p305 = scmp.ne.s32.totalorder %s293, %s294
      %p306 = scmp.eq.s32.totalorder %s32, 1
      %p307 = por %p305, %p306
      %p309 = scmp.ne.s32.totalorder %s294, %s308
      %p310 = scmp.eq.s32.totalorder %s32, 0
      %p311 = por %p309, %p310
      %s313 = sadd.s32 %s312, 1
      %p316 = scmp.eq.s32.totalorder %s26, 1
      %p317 = scmp.ne.s32.totalorder %s312, %s314
      %p318 = scmp.eq.s32.totalorder %s26, 0
      %p319 = por %p317, %p318
      %p320 = scmp.ne.s32.totalorder %s312, %s314
      %p321 = scmp.eq.s32.totalorder %s31, 1
      %p322 = por %p320, %p321
      %p323 = scmp.ne.s32.totalorder %s314, %s315
      %p324 = scmp.eq.s32.totalorder %s31, 0
      %p325 = por %p323, %p324
      %p326 = scmp.ne.s32.totalorder %s314, %s315
      %p327 = scmp.eq.s32.totalorder %s32, 1
      %p328 = por %p326, %p327
      %p330 = scmp.ne.s32.totalorder %s315, %s329
      %p331 = scmp.eq.s32.totalorder %s32, 0
      %p332 = por %p330, %p331
      %s334 = sadd.s32 %s333, 1
      %p337 = scmp.eq.s32.totalorder %s26, 1
      %p338 = scmp.ne.s32.totalorder %s333, %s335
      %p339 = scmp.eq.s32.totalorder %s26, 0
      %p340 = por %p338, %p339
      %p341 = scmp.ne.s32.totalorder %s333, %s335
      %p342 = scmp.eq.s32.totalorder %s31, 1
      %p343 = por %p341, %p342
      %p344 = scmp.ne.s32.totalorder %s335, %s336
      %p345 = scmp.eq.s32.totalorder %s31, 0
      %p346 = por %p344, %p345
      %p347 = scmp.ne.s32.totalorder %s335, %s336
      %p348 = scmp.eq.s32.totalorder %s32, 1
      %p349 = por %p347, %p348
      %p351 = scmp.ne.s32.totalorder %s336, %s350
      %p352 = scmp.eq.s32.totalorder %s32, 0
      %p353 = por %p351, %p352
      %s355 = sadd.s32 %s354, 1
      %p358 = scmp.eq.s32.totalorder %s26, 1
      %p359 = scmp.ne.s32.totalorder %s354, %s356
      %p360 = scmp.eq.s32.totalorder %s26, 0
      %p361 = por %p359, %p360
      %p362 = scmp.ne.s32.totalorder %s354, %s356
      %p363 = scmp.eq.s32.totalorder %s31, 1
      %p364 = por %p362, %p363
      %p365 = scmp.ne.s32.totalorder %s356, %s357
      %p366 = scmp.eq.s32.totalorder %s31, 0
      %p367 = por %p365, %p366
      %p368 = scmp.ne.s32.totalorder %s356, %s357
      %p369 = scmp.eq.s32.totalorder %s32, 1
      %p370 = por %p368, %p369
      %p372 = scmp.ne.s32.totalorder %s357, %s371
      %p373 = scmp.eq.s32.totalorder %s32, 0
      %p374 = por %p372, %p373
      %s376 = sadd.s32 %s375, 1
      %p379 = scmp.eq.s32.totalorder %s26, 1
      %p380 = scmp.ne.s32.totalorder %s375, %s377
      %p381 = scmp.eq.s32.totalorder %s26, 0
      %p382 = por %p380, %p381
      %p383 = scmp.ne.s32.totalorder %s375, %s377
      %p384 = scmp.eq.s32.totalorder %s31, 1
      %p385 = por %p383, %p384
      %p386 = scmp.ne.s32.totalorder %s377, %s378
      %p387 = scmp.eq.s32.totalorder %s31, 0
      %p388 = por %p386, %p387
      %p389 = scmp.ne.s32.totalorder %s377, %s378
      %p390 = scmp.eq.s32.totalorder %s32, 1
      %p391 = por %p389, %p390
      %p393 = scmp.ne.s32.totalorder %s378, %s392
      %p394 = scmp.eq.s32.totalorder %s32, 0
      %p395 = por %p393, %p394
      %s396 = ssub.s32 %s26, %s33
      %p397 = scmp.eq.s32.totalorder %s396, 0
      %s399 = sadd.s32 %s398, 1
      %s400 = scalar_select %p397, %s398, %s399
      %p403 = pneg %p397
      %p404 = scmp.eq.s32.totalorder %s26, 1
      %p405 = por %p403, %p404
      %p406 = scmp.ne.s32.totalorder %s398, %s401
      %p407 = scmp.eq.s32.totalorder %s26, 0
      %p408 = por %p406, %p407
      %p409 = scmp.ne.s32.totalorder %s398, %s401
      %p410 = scmp.eq.s32.totalorder %s31, 1
      %p411 = por %p409, %p410
      %p412 = scmp.ne.s32.totalorder %s401, %s402
      %p413 = scmp.eq.s32.totalorder %s31, 0
      %p414 = por %p412, %p413
      %p415 = scmp.ne.s32.totalorder %s401, %s402
      %p416 = scmp.eq.s32.totalorder %s32, 1
      %p417 = por %p415, %p416
      %p419 = scmp.ne.s32.totalorder %s402, %s418
      %p420 = scmp.eq.s32.totalorder %s32, 0
      %p421 = por %p419, %p420
      %p422 = scmp.le.s32.totalorder 1, %s26
      %p423 = scmp.lt.s32.totalorder %s26, 3
      %p424 = pnand %p422, %p423
      %p425 = pneg %p424
      // Predicated region
      $region9: #{tpu_custom_call.1} parent=5 // pred_check
        _
      $region10: #{tpu_custom_call.1} parent=5 // pred_check_branch
        %427 = sbr.rel (%p424) target = $region12
      $region11: #{tpu_custom_call.1} parent=5 // pred_region
        %s428 = ssub.s32 %s26, 1
        // Predicated region
        $region13: #{tpu_custom_call.1} parent=11 // pred_check
          %p429 = pneg %p73
        $region14: #{tpu_custom_call.1} parent=11 // pred_check_branch
          %431 = sbr.rel (%p429) target = $region16
        $region15: #{tpu_custom_call.1} parent=11 // pred_region
          _
        $region16: #{tpu_custom_call.1} parent=11 // pred_fallthru
          _
        // Predicated region
        $region17: #{tpu_custom_call.1} parent=11 // pred_check
          %p432 = pneg %p94
        $region18: #{tpu_custom_call.1} parent=11 // pred_check_branch
          %434 = sbr.rel (%p432) target = $region20
        $region19: #{tpu_custom_call.1} parent=11 // pred_region
          _
        $region20: #{tpu_custom_call.1} parent=11 // pred_fallthru
          _
        // Predicated region
        $region21: #{tpu_custom_call.1} parent=11 // pred_check
          %p435 = pneg %p115
        $region22: #{tpu_custom_call.1} parent=11 // pred_check_branch
          %437 = sbr.rel (%p435) target = $region24
        $region23: #{tpu_custom_call.1} parent=11 // pred_region
          _
        $region24: #{tpu_custom_call.1} parent=11 // pred_fallthru
          _
        // Predicated region
        $region25: #{tpu_custom_call.1} parent=11 // pred_check
          %p438 = pneg %p136
        $region26: #{tpu_custom_call.1} parent=11 // pred_check_branch
          %440 = sbr.rel (%p438) target = $region28
        $region27: #{tpu_custom_call.1} parent=11 // pred_region
          _
        $region28: #{tpu_custom_call.1} parent=11 // pred_fallthru
          _
        // Predicated region
        $region29: #{tpu_custom_call.1} parent=11 // pred_check
          %p441 = pneg %p157
        $region30: #{tpu_custom_call.1} parent=11 // pred_check_branch
          %443 = sbr.rel (%p441) target = $region32
        $region31: #{tpu_custom_call.1} parent=11 // pred_region
          _
        $region32: #{tpu_custom_call.1} parent=11 // pred_fallthru
          _
        // Predicated region
        $region33: #{tpu_custom_call.1} parent=11 // pred_check
          %p444 = pneg %p178
        $region34: #{tpu_custom_call.1} parent=11 // pred_check_branch
          %446 = sbr.rel (%p444) target = $region36
        $region35: #{tpu_custom_call.1} parent=11 // pred_region
          _
        $region36: #{tpu_custom_call.1} parent=11 // pred_fallthru
          _
        // Predicated region
        $region37: #{tpu_custom_call.1} parent=11 // pred_check
          %p447 = pneg %p199
        $region38: #{tpu_custom_call.1} parent=11 // pred_check_branch
          %449 = sbr.rel (%p447) target = $region40
        $region39: #{tpu_custom_call.1} parent=11 // pred_region
          _
        $region40: #{tpu_custom_call.1} parent=11 // pred_fallthru
          _
        // Predicated region
        $region41: #{tpu_custom_call.1} parent=11 // pred_check
          %p450 = pneg %p220
        $region42: #{tpu_custom_call.1} parent=11 // pred_check_branch
          %452 = sbr.rel (%p450) target = $region44
        $region43: #{tpu_custom_call.1} parent=11 // pred_region
          _
        $region44: #{tpu_custom_call.1} parent=11 // pred_fallthru
          _
        // Predicated region
        $region45: #{tpu_custom_call.1} parent=11 // pred_check
          %p453 = pneg %p241
        $region46: #{tpu_custom_call.1} parent=11 // pred_check_branch
          %455 = sbr.rel (%p453) target = $region48
        $region47: #{tpu_custom_call.1} parent=11 // pred_region
          _
        $region48: #{tpu_custom_call.1} parent=11 // pred_fallthru
          _
        // Predicated region
        $region49: #{tpu_custom_call.1} parent=11 // pred_check
          %p456 = pneg %p262
        $region50: #{tpu_custom_call.1} parent=11 // pred_check_branch
          %458 = sbr.rel (%p456) target = $region52
        $region51: #{tpu_custom_call.1} parent=11 // pred_region
          _
        $region52: #{tpu_custom_call.1} parent=11 // pred_fallthru
          _
        // Predicated region
        $region53: #{tpu_custom_call.1} parent=11 // pred_check
          %p459 = pneg %p283
        $region54: #{tpu_custom_call.1} parent=11 // pred_check_branch
          %461 = sbr.rel (%p459) target = $region56
        $region55: #{tpu_custom_call.1} parent=11 // pred_region
          _
        $region56: #{tpu_custom_call.1} parent=11 // pred_fallthru
          _
        // Predicated region
        $region57: #{tpu_custom_call.1} parent=11 // pred_check
          %p462 = pneg %p304
        $region58: #{tpu_custom_call.1} parent=11 // pred_check_branch
          %464 = sbr.rel (%p462) target = $region60
        $region59: #{tpu_custom_call.1} parent=11 // pred_region
          _
        $region60: #{tpu_custom_call.1} parent=11 // pred_fallthru
          _
        // Predicated region
        $region61: #{tpu_custom_call.1} parent=11 // pred_check
          %p465 = pneg %p325
        $region62: #{tpu_custom_call.1} parent=11 // pred_check_branch
          %467 = sbr.rel (%p465) target = $region64
        $region63: #{tpu_custom_call.1} parent=11 // pred_region
          _
        $region64: #{tpu_custom_call.1} parent=11 // pred_fallthru
          _
        // Predicated region
        $region65: #{tpu_custom_call.1} parent=11 // pred_check
          %p468 = pneg %p346
        $region66: #{tpu_custom_call.1} parent=11 // pred_check_branch
          %470 = sbr.rel (%p468) target = $region68
        $region67: #{tpu_custom_call.1} parent=11 // pred_region
          _
        $region68: #{tpu_custom_call.1} parent=11 // pred_fallthru
          _
        // Predicated region
        $region69: #{tpu_custom_call.1} parent=11 // pred_check
          %p471 = pneg %p367
        $region70: #{tpu_custom_call.1} parent=11 // pred_check_branch
          %473 = sbr.rel (%p471) target = $region72
        $region71: #{tpu_custom_call.1} parent=11 // pred_region
          _
        $region72: #{tpu_custom_call.1} parent=11 // pred_fallthru
          _
        // Predicated region
        $region73: #{tpu_custom_call.1} parent=11 // pred_check
          %p474 = pneg %p388
        $region74: #{tpu_custom_call.1} parent=11 // pred_check_branch
          %476 = sbr.rel (%p474) target = $region76
        $region75: #{tpu_custom_call.1} parent=11 // pred_region
          _
        $region76: #{tpu_custom_call.1} parent=11 // pred_fallthru
          _
      $region12: #{tpu_custom_call.1} parent=5 // pred_fallthru
        _
      %p477 = scmp.lt.s32.totalorder %s26, 2
      // Predicated region
      $region77: #{tpu_custom_call.1} parent=5 // pred_check
        %p478 = pneg %p477
      $region78: #{tpu_custom_call.1} parent=5 // pred_check_branch
        %480 = sbr.rel (%p478) target = $region80
      $region79: #{tpu_custom_call.1} parent=5 // pred_region
        // Predicated region
        $region81: #{tpu_custom_call.1} parent=79 // pred_check
          %p481 = pneg %p46
        $region82: #{tpu_custom_call.1} parent=79 // pred_check_branch
          %483 = sbr.rel (%p481) target = $region84
        $region83: #{tpu_custom_call.1} parent=79 // pred_region
          %p484 = scmp.lt.s32.totalorder %s26, 1
          %s485 = scalar_select %p484, %s26, 1
          %s486 = smul.addr %s485, 8
          %s487 = scalar_lea.vmem %s0, %s486
        $region84: #{tpu_custom_call.1} parent=79 // pred_fallthru
          _
      $region80: #{tpu_custom_call.1} parent=5 // pred_fallthru
        _
      %p488 = scmp.le.s32.totalorder 1, %s26
      %p489 = scmp.lt.s32.totalorder %s26, 3
      %p490 = pnand %p488, %p489
      %p491 = pneg %p490
      // Predicated region
      $region85: #{tpu_custom_call.1} parent=5 // pred_check
        _
      $region86: #{tpu_custom_call.1} parent=5 // pred_check_branch
        %493 = sbr.rel (%p490) target = $region88
      $region87: #{tpu_custom_call.1} parent=5 // pred_region
        %s494 = ssub.s32 %s26, 1
        %p495 = scmp.lt.s32.totalorder %s31, 1
        %s496 = scalar_select %p495, %s31, 1
        %s497 = smul.addr %s496, 8
        %s498 = scalar_lea.vmem %s0, %s497
        %p499 = pneg %p52
        %p500 = pneg %p49
        %p501 = pneg %p73
        %p502 = pneg %p70
        %p503 = pneg %p94
        %p504 = pneg %p91
        %p505 = pneg %p115
        %p506 = pneg %p112
        %p507 = pneg %p136
        %p508 = pneg %p133
        %p509 = pneg %p157
        %p510 = pneg %p154
        %p511 = pneg %p178
        %p512 = pneg %p175
        %p513 = pneg %p199
        %p514 = pneg %p196
        %p515 = pneg %p220
        %p516 = pneg %p217
        %p517 = pneg %p241
        %p518 = pneg %p238
        %p519 = pneg %p262
        %p520 = pneg %p259
        %p521 = pneg %p283
        %p522 = pneg %p280
        %p523 = pneg %p304
        %p524 = pneg %p301
        %p525 = pneg %p325
        %p526 = pneg %p322
        %p527 = pneg %p346
        %p528 = pneg %p343
        %p529 = pneg %p367
        %p530 = pneg %p364
        %p531 = pneg %p388
        %p532 = pneg %p385
        %p533 = pneg %p414
        %p534 = pneg %p411
        %s535 = sand.u32 %s401, 1
        %s536 = scalar_lea.sflag [#allocation3], %s535
        %s537 = sand.u32 %s401, 1
        %s538 = smul.addr %s537, 8
        %s539 = scalar_lea.vmem [#allocation2], %s538
        %p540 = scmp.lt.s32.totalorder %s31, 1
        %s541 = scalar_select %p540, %s31, 1
        %s542 = smul.addr %s541, 8
        %s543 = scalar_lea.vmem %s0, %s542
        %v545 = vld [vmem:[%s543] sm:$0xff]
        %v546 = vld [vmem:[%s1] sm:$0x1]
        %v547 = vld [vmem:[%s2] sm:$0x1]
        %vm548 = vcmask 261120
        %v549 = vsel %vm548, %v545, 0.0
        %550 = vadd.xlane.f32.xlu0 %v549
        %v551 = vpop.xlane.xlu0 %550
        %v552 = vrcp.pop 32.0
        %v553 = vmul.f32 32.0, %v552
        %v554 = vsub.f32 1.0, %v553
        %v555 = vmul.f32 %v552, %v554
        %v556 = vadd.f32 %v552, %v555
        %vm557 = vweird.f32 %v552
        %v558 = vsel %vm557, %v552, %v556
        %v559 = vmul.f32 %v551, %v558
        %v560 = vsub.f32 %v545, %v559
        %v561 = vmul.f32 %v560, %v560
        %v562 = vsel %vm548, %v561, 0.0
        %563 = vadd.xlane.f32.xlu0 %v562
        %v564 = vpop.xlane.xlu0 %563
        %v565 = vmul.f32 %v564, %v558
        %v566 = vadd.f32 %v565, 1e-06
        %v567 = vrsqrt.pop %v566
        %v568 = vmul.f32 %v567, %v566
        %v569 = vmul.f32 %v568, %v567
        %v570 = vmul.f32 0.5, %v569
        %v571 = vsub.f32 1.5, %v570
        %v572 = vmul.f32 %v567, %v571
        %vm573 = vweird.f32 %v566
        %vm574 = vweird.f32 %v567
        %vm575 = vmor %vm573, %vm574
        %v576 = vsel %vm575, %v567, %v572
        %v577 = vmul.f32 %v560, %v576
        %v579 = vperm.slane %v546, 0
        %v581 = vmul.f32 %v577, %v579
        %v583 = vperm.slane %v547, 0
        %v585 = vadd.f32 %v581, %v583
        %v586 = vpack.c.bf16 %v585, %v585
        %v587 = vld [vmem:[%s3] sm:$0xf]
        %v588 = vld [vmem:[%s3 + $0x4] sm:$0xf]
        %v589 = vld [vmem:[%s3 + $0x8] sm:$0xf]
        %v590 = vld [vmem:[%s3 + $0xc] sm:$0xf]
        %v591 = vld [vmem:[%s3 + $0x10] sm:$0xf]
        %v592 = vld [vmem:[%s3 + $0x14] sm:$0xf]
        %v593 = vld [vmem:[%s3 + $0x18] sm:$0xf]
        %v594 = vld [vmem:[%s3 + $0x1c] sm:$0xf]
        %v595 = vld [vmem:[%s3 + $0x20] sm:$0xf]
        %v596 = vld [vmem:[%s3 + $0x24] sm:$0xf]
        %v597 = vld [vmem:[%s3 + $0x28] sm:$0xf]
        %v598 = vld [vmem:[%s3 + $0x2c] sm:$0xf]
        %v599 = vld [vmem:[%s3 + $0x30] sm:$0xf]
        %v600 = vld [vmem:[%s3 + $0x34] sm:$0xf]
        %v601 = vld [vmem:[%s3 + $0x38] sm:$0xf]
        %v602 = vld [vmem:[%s3 + $0x3c] sm:$0xf]
        %v603 = vld [vmem:[%s4] sm:$0x1]
        %v604 = vld [vmem:[%s4 + $0x1] sm:$0x1]
        %v605 = vld [vmem:[%s4 + $0x2] sm:$0x1]
        %v606 = vld [vmem:[%s4 + $0x3] sm:$0x1]
        %v611 = vperm.slane %v603, 0
        %v612 = vperm.slane %v604, 0
        %v613 = vperm.slane %v605, 0
        %v614 = vperm.slane %v606, 0
        %v623 = vunpack.c.l.b16 %v587
        %v624 = vunpack.c.l.b16 %v588
        %v625 = vunpack.c.l.b16 %v589
        %v626 = vunpack.c.l.b16 %v590
        %v627 = vpack.c.b16 %v624, %v623
        %v628 = vpack.c.b16 %v626, %v625
        %v632 = vsel %vm548, %v586, 0
        %634 = vmatpush.bf16.msra.mxu0 0
        %635 = vmatpush.bf16.msra.mxu0 0
        %636 = vmatpush.bf16.msra.mxu0 0
        %637 = vmatpush.bf16.msra.mxu0 0
        %638 = vmatpush.bf16.msra.mxu0 0
        %639 = vmatpush.bf16.msra.mxu0 0
        %640 = vmatpush.bf16.msra.mxu0 %v628
        %641 = vmatpush.bf16.msra.mxu0 %v627
        %642 = vmatmul.bf16.gmra.mxu0 %v632
        %v643 = vpop.f32.mrf.mxu0
        %v644 = vadd.f32 %v611, %v643
        %v645 = vpop.f32.mrf.mxu0
        %646 = vdwg.mxu0
        %v651 = vunpack.c.l.b16 %v591
        %v652 = vunpack.c.l.b16 %v592
        %v653 = vunpack.c.l.b16 %v593
        %v654 = vunpack.c.l.b16 %v594
        %v655 = vpack.c.b16 %v652, %v651
        %v656 = vpack.c.b16 %v654, %v653
        %659 = vmatpush.bf16.msra.mxu0 0
        %660 = vmatpush.bf16.msra.mxu0 0
        %661 = vmatpush.bf16.msra.mxu0 0
        %662 = vmatpush.bf16.msra.mxu0 0
        %663 = vmatpush.bf16.msra.mxu0 0
        %664 = vmatpush.bf16.msra.mxu0 0
        %665 = vmatpush.bf16.msra.mxu0 %v656
        %666 = vmatpush.bf16.msra.mxu0 %v655
        %667 = vmatmul.bf16.gmra.mxu0 %v632
        %v668 = vpop.f32.mrf.mxu0
        %v669 = vadd.f32 %v612, %v668
        %v670 = vpop.f32.mrf.mxu0
        %671 = vdwg.mxu0
        %v676 = vunpack.c.l.b16 %v595
        %v677 = vunpack.c.l.b16 %v596
        %v678 = vunpack.c.l.b16 %v597
        %v679 = vunpack.c.l.b16 %v598
        %v680 = vpack.c.b16 %v677, %v676
        %v681 = vpack.c.b16 %v679, %v678
        %684 = vmatpush.bf16.msra.mxu0 0
        %685 = vmatpush.bf16.msra.mxu0 0
        %686 = vmatpush.bf16.msra.mxu0 0
        %687 = vmatpush.bf16.msra.mxu0 0
        %688 = vmatpush.bf16.msra.mxu0 0
        %689 = vmatpush.bf16.msra.mxu0 0
        %690 = vmatpush.bf16.msra.mxu0 %v681
        %691 = vmatpush.bf16.msra.mxu0 %v680
        %692 = vmatmul.bf16.gmra.mxu0 %v632
        %v693 = vpop.f32.mrf.mxu0
        %v694 = vadd.f32 %v613, %v693
        %v695 = vpop.f32.mrf.mxu0
        %696 = vdwg.mxu0
        %v701 = vunpack.c.l.b16 %v599
        %v702 = vunpack.c.l.b16 %v600
        %v703 = vunpack.c.l.b16 %v601
        %v704 = vunpack.c.l.b16 %v602
        %v705 = vpack.c.b16 %v702, %v701
        %v706 = vpack.c.b16 %v704, %v703
        %709 = vmatpush.bf16.msra.mxu0 0
        %710 = vmatpush.bf16.msra.mxu0 0
        %711 = vmatpush.bf16.msra.mxu0 0
        %712 = vmatpush.bf16.msra.mxu0 0
        %713 = vmatpush.bf16.msra.mxu0 0
        %714 = vmatpush.bf16.msra.mxu0 0
        %715 = vmatpush.bf16.msra.mxu0 %v706
        %716 = vmatpush.bf16.msra.mxu0 %v705
        %717 = vmatmul.bf16.gmra.mxu0 %v632
        %v718 = vpop.f32.mrf.mxu0
        %v719 = vadd.f32 %v614, %v718
        %v720 = vpop.f32.mrf.mxu0
        %721 = vdwg.mxu0
        %v722 = vld [vmem:[%s5] sm:$0xf]
        %v723 = vld [vmem:[%s5 + $0x4] sm:$0xf]
        %v724 = vld [vmem:[%s5 + $0x8] sm:$0xf]
        %v725 = vld [vmem:[%s5 + $0xc] sm:$0xf]
        %v726 = vld [vmem:[%s5 + $0x10] sm:$0xf]
        %v727 = vld [vmem:[%s5 + $0x14] sm:$0xf]
        %v728 = vld [vmem:[%s5 + $0x18] sm:$0xf]
        %v729 = vld [vmem:[%s5 + $0x1c] sm:$0xf]
        %v730 = vld [vmem:[%s5 + $0x20] sm:$0xf]
        %v731 = vld [vmem:[%s5 + $0x24] sm:$0xf]
        %v732 = vld [vmem:[%s5 + $0x28] sm:$0xf]
        %v733 = vld [vmem:[%s5 + $0x2c] sm:$0xf]
        %v734 = vld [vmem:[%s5 + $0x30] sm:$0xf]
        %v735 = vld [vmem:[%s5 + $0x34] sm:$0xf]
        %v736 = vld [vmem:[%s5 + $0x38] sm:$0xf]
        %v737 = vld [vmem:[%s5 + $0x3c] sm:$0xf]
        %v738 = vld [vmem:[%s6] sm:$0x1]
        %v739 = vld [vmem:[%s6 + $0x1] sm:$0x1]
        %v740 = vld [vmem:[%s6 + $0x2] sm:$0x1]
        %v741 = vld [vmem:[%s6 + $0x3] sm:$0x1]
        %v746 = vperm.slane %v738, 0
        %v747 = vperm.slane %v739, 0
        %v748 = vperm.slane %v740, 0
        %v749 = vperm.slane %v741, 0
        %v758 = vunpack.c.l.b16 %v722
        %v759 = vunpack.c.l.b16 %v723
        %v760 = vunpack.c.l.b16 %v724
        %v761 = vunpack.c.l.b16 %v725
        %v762 = vpack.c.b16 %v759, %v758
        %v763 = vpack.c.b16 %v761, %v760
        %766 = vmatpush.bf16.msra.mxu0 0
        %767 = vmatpush.bf16.msra.mxu0 0
        %768 = vmatpush.bf16.msra.mxu0 0
        %769 = vmatpush.bf16.msra.mxu0 0
        %770 = vmatpush.bf16.msra.mxu0 0
        %771 = vmatpush.bf16.msra.mxu0 0
        %772 = vmatpush.bf16.msra.mxu0 %v763
        %773 = vmatpush.bf16.msra.mxu0 %v762
        %774 = vmatmul.bf16.gmra.mxu0 %v632
        %v775 = vpop.f32.mrf.mxu0
        %v776 = vadd.f32 %v746, %v775
        %v777 = vpop.f32.mrf.mxu0
        %778 = vdwg.mxu0
        %v783 = vunpack.c.l.b16 %v726
        %v784 = vunpack.c.l.b16 %v727
        %v785 = vunpack.c.l.b16 %v728
        %v786 = vunpack.c.l.b16 %v729
        %v787 = vpack.c.b16 %v784, %v783
        %v788 = vpack.c.b16 %v786, %v785
        %791 = vmatpush.bf16.msra.mxu0 0
        %792 = vmatpush.bf16.msra.mxu0 0
        %793 = vmatpush.bf16.msra.mxu0 0
        %794 = vmatpush.bf16.msra.mxu0 0
        %795 = vmatpush.bf16.msra.mxu0 0
        %796 = vmatpush.bf16.msra.mxu0 0
        %797 = vmatpush.bf16.msra.mxu0 %v788
        %798 = vmatpush.bf16.msra.mxu0 %v787
        %799 = vmatmul.bf16.gmra.mxu0 %v632
        %v800 = vpop.f32.mrf.mxu0
        %v801 = vadd.f32 %v747, %v800
        %v802 = vpop.f32.mrf.mxu0
        %803 = vdwg.mxu0
        %v808 = vunpack.c.l.b16 %v730
        %v809 = vunpack.c.l.b16 %v731
        %v810 = vunpack.c.l.b16 %v732
        %v811 = vunpack.c.l.b16 %v733
        %v812 = vpack.c.b16 %v809, %v808
        %v813 = vpack.c.b16 %v811, %v810
        %816 = vmatpush.bf16.msra.mxu0 0
        %817 = vmatpush.bf16.msra.mxu0 0
        %818 = vmatpush.bf16.msra.mxu0 0
        %819 = vmatpush.bf16.msra.mxu0 0
        %820 = vmatpush.bf16.msra.mxu0 0
        %821 = vmatpush.bf16.msra.mxu0 0
        %822 = vmatpush.bf16.msra.mxu0 %v813
        %823 = vmatpush.bf16.msra.mxu0 %v812
        %824 = vmatmul.bf16.gmra.mxu0 %v632
        %v825 = vpop.f32.mrf.mxu0
        %v826 = vadd.f32 %v748, %v825
        %v827 = vpop.f32.mrf.mxu0
        %828 = vdwg.mxu0
        %v833 = vunpack.c.l.b16 %v734
        %v834 = vunpack.c.l.b16 %v735
        %v835 = vunpack.c.l.b16 %v736
        %v836 = vunpack.c.l.b16 %v737
        %v837 = vpack.c.b16 %v834, %v833
        %v838 = vpack.c.b16 %v836, %v835
        %841 = vmatpush.bf16.msra.mxu0 0
        %842 = vmatpush.bf16.msra.mxu0 0
        %843 = vmatpush.bf16.msra.mxu0 0
        %844 = vmatpush.bf16.msra.mxu0 0
        %845 = vmatpush.bf16.msra.mxu0 0
        %846 = vmatpush.bf16.msra.mxu0 0
        %847 = vmatpush.bf16.msra.mxu0 %v838
        %848 = vmatpush.bf16.msra.mxu0 %v837
        %849 = vmatmul.bf16.gmra.mxu0 %v632
        %v850 = vpop.f32.mrf.mxu0
        %v851 = vadd.f32 %v749, %v850
        %v852 = vpop.f32.mrf.mxu0
        %853 = vdwg.mxu0
        %v854 = vld [vmem:[%s7] sm:$0xf]
        %v855 = vld [vmem:[%s7 + $0x4] sm:$0xf]
        %v856 = vld [vmem:[%s7 + $0x8] sm:$0xf]
        %v857 = vld [vmem:[%s7 + $0xc] sm:$0xf]
        %v858 = vld [vmem:[%s7 + $0x10] sm:$0xf]
        %v859 = vld [vmem:[%s7 + $0x14] sm:$0xf]
        %v860 = vld [vmem:[%s7 + $0x18] sm:$0xf]
        %v861 = vld [vmem:[%s7 + $0x1c] sm:$0xf]
        %v862 = vld [vmem:[%s7 + $0x20] sm:$0xf]
        %v863 = vld [vmem:[%s7 + $0x24] sm:$0xf]
        %v864 = vld [vmem:[%s7 + $0x28] sm:$0xf]
        %v865 = vld [vmem:[%s7 + $0x2c] sm:$0xf]
        %v866 = vld [vmem:[%s7 + $0x30] sm:$0xf]
        %v867 = vld [vmem:[%s7 + $0x34] sm:$0xf]
        %v868 = vld [vmem:[%s7 + $0x38] sm:$0xf]
        %v869 = vld [vmem:[%s7 + $0x3c] sm:$0xf]
        %v870 = vld [vmem:[%s8] sm:$0x1]
        %v871 = vld [vmem:[%s8 + $0x1] sm:$0x1]
        %v872 = vld [vmem:[%s8 + $0x2] sm:$0x1]
        %v873 = vld [vmem:[%s8 + $0x3] sm:$0x1]
        %v878 = vperm.slane %v870, 0
        %v879 = vperm.slane %v871, 0
        %v880 = vperm.slane %v872, 0
        %v881 = vperm.slane %v873, 0
        %v890 = vunpack.c.l.b16 %v854
        %v891 = vunpack.c.l.b16 %v855
        %v892 = vunpack.c.l.b16 %v856
        %v893 = vunpack.c.l.b16 %v857
        %v894 = vpack.c.b16 %v891, %v890
        %v895 = vpack.c.b16 %v893, %v892
        %898 = vmatpush.bf16.msra.mxu0 0
        %899 = vmatpush.bf16.msra.mxu0 0
        %900 = vmatpush.bf16.msra.mxu0 0
        %901 = vmatpush.bf16.msra.mxu0 0
        %902 = vmatpush.bf16.msra.mxu0 0
        %903 = vmatpush.bf16.msra.mxu0 0
        %904 = vmatpush.bf16.msra.mxu0 %v895
        %905 = vmatpush.bf16.msra.mxu0 %v894
        %906 = vmatmul.bf16.gmra.mxu0 %v632
        %v907 = vpop.f32.mrf.mxu0
        %v908 = vadd.f32 %v878, %v907
        %v909 = vpop.f32.mrf.mxu0
        %910 = vdwg.mxu0
        %v915 = vunpack.c.l.b16 %v858
        %v916 = vunpack.c.l.b16 %v859
        %v917 = vunpack.c.l.b16 %v860
        %v918 = vunpack.c.l.b16 %v861
        %v919 = vpack.c.b16 %v916, %v915
        %v920 = vpack.c.b16 %v918, %v917
        %923 = vmatpush.bf16.msra.mxu0 0
        %924 = vmatpush.bf16.msra.mxu0 0
        %925 = vmatpush.bf16.msra.mxu0 0
        %926 = vmatpush.bf16.msra.mxu0 0
        %927 = vmatpush.bf16.msra.mxu0 0
        %928 = vmatpush.bf16.msra.mxu0 0
        %929 = vmatpush.bf16.msra.mxu0 %v920
        %930 = vmatpush.bf16.msra.mxu0 %v919
        %931 = vmatmul.bf16.gmra.mxu0 %v632
        %v932 = vpop.f32.mrf.mxu0
        %v933 = vadd.f32 %v879, %v932
        %v934 = vpop.f32.mrf.mxu0
        %935 = vdwg.mxu0
        %v940 = vunpack.c.l.b16 %v862
        %v941 = vunpack.c.l.b16 %v863
        %v942 = vunpack.c.l.b16 %v864
        %v943 = vunpack.c.l.b16 %v865
        %v944 = vpack.c.b16 %v941, %v940
        %v945 = vpack.c.b16 %v943, %v942
        %948 = vmatpush.bf16.msra.mxu0 0
        %949 = vmatpush.bf16.msra.mxu0 0
        %950 = vmatpush.bf16.msra.mxu0 0
        %951 = vmatpush.bf16.msra.mxu0 0
        %952 = vmatpush.bf16.msra.mxu0 0
        %953 = vmatpush.bf16.msra.mxu0 0
        %954 = vmatpush.bf16.msra.mxu0 %v945
        %955 = vmatpush.bf16.msra.mxu0 %v944
        %956 = vmatmul.bf16.gmra.mxu0 %v632
        %v957 = vpop.f32.mrf.mxu0
        %v958 = vadd.f32 %v880, %v957
        %v959 = vpop.f32.mrf.mxu0
        %960 = vdwg.mxu0
        %v965 = vunpack.c.l.b16 %v866
        %v966 = vunpack.c.l.b16 %v867
        %v967 = vunpack.c.l.b16 %v868
        %v968 = vunpack.c.l.b16 %v869
        %v969 = vpack.c.b16 %v966, %v965
        %v970 = vpack.c.b16 %v968, %v967
        %973 = vmatpush.bf16.msra.mxu0 0
        %974 = vmatpush.bf16.msra.mxu0 0
        %975 = vmatpush.bf16.msra.mxu0 0
        %976 = vmatpush.bf16.msra.mxu0 0
        %977 = vmatpush.bf16.msra.mxu0 0
        %978 = vmatpush.bf16.msra.mxu0 0
        %979 = vmatpush.bf16.msra.mxu0 %v970
        %980 = vmatpush.bf16.msra.mxu0 %v969
        %981 = vmatmul.bf16.gmra.mxu0 %v632
        %v982 = vpop.f32.mrf.mxu0
        %v983 = vadd.f32 %v881, %v982
        %v984 = vpop.f32.mrf.mxu0
        %985 = vdwg.mxu0
        %v986 = vpack.c.bf16 %v644, %v644
        %v987 = vpack.c.bf16 %v669, %v669
        %v988 = vpack.c.bf16 %v694, %v694
        %v989 = vpack.c.bf16 %v719, %v719
        %v990 = vpack.c.bf16 %v776, %v776
        %v991 = vpack.c.bf16 %v801, %v801
        %v992 = vpack.c.bf16 %v826, %v826
        %v993 = vpack.c.bf16 %v851, %v851
        %vm994 = vcmask 64512
        %v996 = vsel %vm994, %v986, 0
        %v999 = vsel %vm994, %v990, 0
        %1001 = vmatpush.bf16.xpose.msra.mxu0 0
        %1002 = vmatpush.bf16.xpose.msra.mxu0 0
        %1003 = vmatpush.bf16.xpose.msra.mxu0 0
        %1004 = vmatpush.bf16.xpose.msra.mxu0 0
        %1005 = vmatpush.bf16.xpose.msra.mxu0 0
        %1006 = vmatpush.bf16.xpose.msra.mxu0 0
        %1007 = vmatpush.bf16.xpose.msra.mxu0 0
        %1008 = vmatpush.bf16.xpose.msra.mxu0 %v999
        %1009 = vmatmul.bf16.gmra.mxu0 %v996
        %v1010 = vpop.f32.mrf.mxu0
        %v1011 = vadd.f32 0.0, %v1010
        %v1012 = vpop.f32.mrf.mxu0
        %1013 = vdwg.mxu0
        %v1015 = vsel %vm994, %v987, 0
        %v1018 = vsel %vm994, %v991, 0
        %1020 = vmatpush.bf16.xpose.msra.mxu0 0
        %1021 = vmatpush.bf16.xpose.msra.mxu0 0
        %1022 = vmatpush.bf16.xpose.msra.mxu0 0
        %1023 = vmatpush.bf16.xpose.msra.mxu0 0
        %1024 = vmatpush.bf16.xpose.msra.mxu0 0
        %1025 = vmatpush.bf16.xpose.msra.mxu0 0
        %1026 = vmatpush.bf16.xpose.msra.mxu0 0
        %1027 = vmatpush.bf16.xpose.msra.mxu0 %v1018
        %1028 = vmatmul.bf16.gmra.mxu0 %v1015
        %v1029 = vpop.f32.mrf.mxu0
        %v1030 = vadd.f32 0.0, %v1029
        %v1031 = vpop.f32.mrf.mxu0
        %1032 = vdwg.mxu0
        %v1034 = vsel %vm994, %v988, 0
        %v1037 = vsel %vm994, %v992, 0
        %1039 = vmatpush.bf16.xpose.msra.mxu0 0
        %1040 = vmatpush.bf16.xpose.msra.mxu0 0
        %1041 = vmatpush.bf16.xpose.msra.mxu0 0
        %1042 = vmatpush.bf16.xpose.msra.mxu0 0
        %1043 = vmatpush.bf16.xpose.msra.mxu0 0
        %1044 = vmatpush.bf16.xpose.msra.mxu0 0
        %1045 = vmatpush.bf16.xpose.msra.mxu0 0
        %1046 = vmatpush.bf16.xpose.msra.mxu0 %v1037
        %1047 = vmatmul.bf16.gmra.mxu0 %v1034
        %v1048 = vpop.f32.mrf.mxu0
        %v1049 = vadd.f32 0.0, %v1048
        %v1050 = vpop.f32.mrf.mxu0
        %1051 = vdwg.mxu0
        %v1053 = vsel %vm994, %v989, 0
        %v1056 = vsel %vm994, %v993, 0
        %1058 = vmatpush.bf16.xpose.msra.mxu0 0
        %1059 = vmatpush.bf16.xpose.msra.mxu0 0
        %1060 = vmatpush.bf16.xpose.msra.mxu0 0
        %1061 = vmatpush.bf16.xpose.msra.mxu0 0
        %1062 = vmatpush.bf16.xpose.msra.mxu0 0
        %1063 = vmatpush.bf16.xpose.msra.mxu0 0
        %1064 = vmatpush.bf16.xpose.msra.mxu0 0
        %1065 = vmatpush.bf16.xpose.msra.mxu0 %v1056
        %1066 = vmatmul.bf16.gmra.mxu0 %v1053
        %v1067 = vpop.f32.mrf.mxu0
        %v1068 = vadd.f32 0.0, %v1067
        %v1069 = vpop.f32.mrf.mxu0
        %1070 = vdwg.mxu0
        %v1071 = vsel %vm994, %v1011, -inf
        %1072 = vmax.xlane.f32.xlu0 %v1071
        %v1073 = vpop.xlane.xlu0 %1072
        %v1074 = vsel %vm994, %v1030, -inf
        %1075 = vmax.xlane.f32.xlu0 %v1074
        %v1076 = vpop.xlane.xlu0 %1075
        %v1077 = vsel %vm994, %v1049, -inf
        %1078 = vmax.xlane.f32.xlu0 %v1077
        %v1079 = vpop.xlane.xlu0 %1078
        %v1080 = vsel %vm994, %v1068, -inf
        %1081 = vmax.xlane.f32.xlu0 %v1080
        %v1082 = vpop.xlane.xlu0 %1081
        %v1083 = vsub.f32 %v1011, %v1073
        %v1084 = vsub.f32 %v1030, %v1076
        %v1085 = vsub.f32 %v1049, %v1079
        %v1086 = vsub.f32 %v1068, %v1082
        %v1087 = vmul.f32 %v1083, 1.442695
        %v1088 = vpow.pop %v1087
        %v1089 = vmul.f32 %v1084, 1.442695
        %v1090 = vpow.pop %v1089
        %v1091 = vmul.f32 %v1085, 1.442695
        %v1092 = vpow.pop %v1091
        %v1093 = vmul.f32 %v1086, 1.442695
        %v1094 = vpow.pop %v1093
        %v1095 = vsel %vm994, %v1088, 0.0
        %1096 = vadd.xlane.f32.xlu0 %v1095
        %v1097 = vpop.xlane.xlu0 %1096
        %v1098 = vsel %vm994, %v1090, 0.0
        %1099 = vadd.xlane.f32.xlu0 %v1098
        %v1100 = vpop.xlane.xlu0 %1099
        %v1101 = vsel %vm994, %v1092, 0.0
        %1102 = vadd.xlane.f32.xlu0 %v1101
        %v1103 = vpop.xlane.xlu0 %1102
        %v1104 = vsel %vm994, %v1094, 0.0
        %1105 = vadd.xlane.f32.xlu0 %v1104
        %v1106 = vpop.xlane.xlu0 %1105
        %v1107 = vrcp.pop %v1097
        %v1108 = vrcp.pop %v1100
        %v1109 = vrcp.pop %v1103
        %v1110 = vrcp.pop %v1106
        %v1111 = vmul.f32 %v1088, %v1107
        %v1112 = vmul.f32 %v1090, %v1108
        %v1113 = vmul.f32 %v1092, %v1109
        %v1114 = vmul.f32 %v1094, %v1110
        %v1115 = vpack.c.bf16 %v1111, %v1111
        %v1116 = vpack.c.bf16 %v1112, %v1112
        %v1117 = vpack.c.bf16 %v1113, %v1113
        %v1118 = vpack.c.bf16 %v1114, %v1114
        %v1119 = vpack.c.bf16 %v908, %v908
        %v1120 = vpack.c.bf16 %v933, %v933
        %v1121 = vpack.c.bf16 %v958, %v958
        %v1122 = vpack.c.bf16 %v983, %v983
        %v1124 = vsel %vm994, %v1115, 0
        %vm1126 = vcmask 1043456
        %v1128 = vsel %vm1126, %v1119, 0
        %1130 = vmatpush.bf16.msra.mxu0 0
        %1131 = vmatpush.bf16.msra.mxu0 0
        %1132 = vmatpush.bf16.msra.mxu0 0
        %1133 = vmatpush.bf16.msra.mxu0 0
        %1134 = vmatpush.bf16.msra.mxu0 0
        %1135 = vmatpush.bf16.msra.mxu0 0
        %1136 = vmatpush.bf16.msra.mxu0 0
        %1137 = vmatpush.bf16.msra.mxu0 %v1128
        %1138 = vmatmul.bf16.gmra.mxu0 %v1124
        %v1139 = vpop.f32.mrf.mxu0
        %v1140 = vadd.f32 0.0, %v1139
        %v1141 = vpop.f32.mrf.mxu0
        %1142 = vdwg.mxu0
        %v1144 = vsel %vm994, %v1116, 0
        %v1147 = vsel %vm1126, %v1120, 0
        %1149 = vmatpush.bf16.msra.mxu0 0
        %1150 = vmatpush.bf16.msra.mxu0 0
        %1151 = vmatpush.bf16.msra.mxu0 0
        %1152 = vmatpush.bf16.msra.mxu0 0
        %1153 = vmatpush.bf16.msra.mxu0 0
        %1154 = vmatpush.bf16.msra.mxu0 0
        %1155 = vmatpush.bf16.msra.mxu0 0
        %1156 = vmatpush.bf16.msra.mxu0 %v1147
        %1157 = vmatmul.bf16.gmra.mxu0 %v1144
        %v1158 = vpop.f32.mrf.mxu0
        %v1159 = vadd.f32 0.0, %v1158
        %v1160 = vpop.f32.mrf.mxu0
        %1161 = vdwg.mxu0
        %v1163 = vsel %vm994, %v1117, 0
        %v1166 = vsel %vm1126, %v1121, 0
        %1168 = vmatpush.bf16.msra.mxu0 0
        %1169 = vmatpush.bf16.msra.mxu0 0
        %1170 = vmatpush.bf16.msra.mxu0 0
        %1171 = vmatpush.bf16.msra.mxu0 0
        %1172 = vmatpush.bf16.msra.mxu0 0
        %1173 = vmatpush.bf16.msra.mxu0 0
        %1174 = vmatpush.bf16.msra.mxu0 0
        %1175 = vmatpush.bf16.msra.mxu0 %v1166
        %1176 = vmatmul.bf16.gmra.mxu0 %v1163
        %v1177 = vpop.f32.mrf.mxu0
        %v1178 = vadd.f32 0.0, %v1177
        %v1179 = vpop.f32.mrf.mxu0
        %1180 = vdwg.mxu0
        %v1182 = vsel %vm994, %v1118, 0
        %v1185 = vsel %vm1126, %v1122, 0
        %1187 = vmatpush.bf16.msra.mxu0 0
        %1188 = vmatpush.bf16.msra.mxu0 0
        %1189 = vmatpush.bf16.msra.mxu0 0
        %1190 = vmatpush.bf16.msra.mxu0 0
        %1191 = vmatpush.bf16.msra.mxu0 0
        %1192 = vmatpush.bf16.msra.mxu0 0
        %1193 = vmatpush.bf16.msra.mxu0 0
        %1194 = vmatpush.bf16.msra.mxu0 %v1185
        %1195 = vmatmul.bf16.gmra.mxu0 %v1182
        %v1196 = vpop.f32.mrf.mxu0
        %v1197 = vadd.f32 0.0, %v1196
        %v1198 = vpop.f32.mrf.mxu0
        %1199 = vdwg.mxu0
        %v1200 = vpack.c.bf16 %v1140, %v1140
        %v1201 = vpack.c.bf16 %v1159, %v1159
        %v1202 = vpack.c.bf16 %v1178, %v1178
        %v1203 = vpack.c.bf16 %v1197, %v1197
        %v1204 = vld [vmem:[%s9] sm:$0xf]
        %v1205 = vld [vmem:[%s9 + $0x4] sm:$0xf]
        %v1206 = vld [vmem:[%s9 + $0x8] sm:$0xf]
        %v1207 = vld [vmem:[%s9 + $0xc] sm:$0xf]
        %v1209 = vsel %vm994, %v1200, 0
        %v1212 = vsel %vm1126, %v1204, 0
        %1214 = vmatpush.bf16.msra.mxu0 0
        %1215 = vmatpush.bf16.msra.mxu0 0
        %1216 = vmatpush.bf16.msra.mxu0 0
        %1217 = vmatpush.bf16.msra.mxu0 0
        %1218 = vmatpush.bf16.msra.mxu0 0
        %1219 = vmatpush.bf16.msra.mxu0 0
        %1220 = vmatpush.bf16.msra.mxu0 0
        %1221 = vmatpush.bf16.msra.mxu0 %v1212
        %1222 = vmatmul.bf16.gmra.mxu0 %v1209
        %v1223 = vpop.f32.mrf.mxu0
        %v1224 = vadd.f32 0.0, %v1223
        %v1225 = vpop.f32.mrf.mxu0
        %1226 = vdwg.mxu0
        %v1228 = vsel %vm994, %v1201, 0
        %v1231 = vsel %vm1126, %v1205, 0
        %1233 = vmatpush.bf16.msra.mxu0 0
        %1234 = vmatpush.bf16.msra.mxu0 0
        %1235 = vmatpush.bf16.msra.mxu0 0
        %1236 = vmatpush.bf16.msra.mxu0 0
        %1237 = vmatpush.bf16.msra.mxu0 0
        %1238 = vmatpush.bf16.msra.mxu0 0
        %1239 = vmatpush.bf16.msra.mxu0 0
        %1240 = vmatpush.bf16.msra.mxu0 %v1231
        %1241 = vmatmul.bf16.gmra.mxu0 %v1228
        %v1242 = vpop.f32.mrf.mxu0
        %v1243 = vadd.f32 0.0, %v1242
        %v1244 = vpop.f32.mrf.mxu0
        %1245 = vdwg.mxu0
        %v1247 = vsel %vm994, %v1202, 0
        %v1250 = vsel %vm1126, %v1206, 0
        %1252 = vmatpush.bf16.msra.mxu0 0
        %1253 = vmatpush.bf16.msra.mxu0 0
        %1254 = vmatpush.bf16.msra.mxu0 0
        %1255 = vmatpush.bf16.msra.mxu0 0
        %1256 = vmatpush.bf16.msra.mxu0 0
        %1257 = vmatpush.bf16.msra.mxu0 0
        %1258 = vmatpush.bf16.msra.mxu0 0
        %1259 = vmatpush.bf16.msra.mxu0 %v1250
        %1260 = vmatmul.bf16.gmra.mxu0 %v1247
        %v1261 = vpop.f32.mrf.mxu0
        %v1262 = vadd.f32 0.0, %v1261
        %v1263 = vpop.f32.mrf.mxu0
        %1264 = vdwg.mxu0
        %v1266 = vsel %vm994, %v1203, 0
        %v1269 = vsel %vm1126, %v1207, 0
        %1271 = vmatpush.bf16.msra.mxu0 0
        %1272 = vmatpush.bf16.msra.mxu0 0
        %1273 = vmatpush.bf16.msra.mxu0 0
        %1274 = vmatpush.bf16.msra.mxu0 0
        %1275 = vmatpush.bf16.msra.mxu0 0
        %1276 = vmatpush.bf16.msra.mxu0 0
        %1277 = vmatpush.bf16.msra.mxu0 0
        %1278 = vmatpush.bf16.msra.mxu0 %v1269
        %1279 = vmatmul.bf16.gmra.mxu0 %v1266
        %v1280 = vpop.f32.mrf.mxu0
        %v1281 = vadd.f32 0.0, %v1280
        %v1282 = vpop.f32.mrf.mxu0
        %1283 = vdwg.mxu0
        %v1284 = vsel %vm548, %v1224, 0.0
        %v1285 = vsel %vm548, %v1243, 0.0
        %v1286 = vadd.f32 %v1284, %v1285
        %v1287 = vsel %vm548, %v1262, 0.0
        %v1288 = vadd.f32 %v1286, %v1287
        %v1289 = vsel %vm548, %v1281, 0.0
        %v1290 = vadd.f32 %v1288, %v1289
        %v1291 = vld [vmem:[%s10] sm:$0x1]
        %v1293 = vperm.slane %v1291, 0
        %v1295 = vadd.f32 %v1290, %v1293
        %v1296 = vadd.f32 %v545, %v1295
        %v1297 = vld [vmem:[%s11] sm:$0x1]
        %v1298 = vld [vmem:[%s12] sm:$0x1]
        %v1299 = vsel %vm548, %v1296, 0.0
        %1300 = vadd.xlane.f32.xlu0 %v1299
        %v1301 = vpop.xlane.xlu0 %1300
        %v1302 = vmul.f32 %v1301, %v558
        %v1303 = vsub.f32 %v1296, %v1302
        %v1304 = vmul.f32 %v1303, %v1303
        %v1305 = vsel %vm548, %v1304, 0.0
        %1306 = vadd.xlane.f32.xlu0 %v1305
        %v1307 = vpop.xlane.xlu0 %1306
        %v1308 = vmul.f32 %v1307, %v558
        %v1309 = vadd.f32 %v1308, 1e-06
        %v1310 = vrsqrt.pop %v1309
        %v1311 = vmul.f32 %v1310, %v1309
        %v1312 = vmul.f32 %v1311, %v1310
        %v1313 = vmul.f32 0.5, %v1312
        %v1314 = vsub.f32 1.5, %v1313
        %v1315 = vmul.f32 %v1310, %v1314
        %vm1316 = vweird.f32 %v1309
        %vm1317 = vweird.f32 %v1310
        %vm1318 = vmor %vm1316, %vm1317
        %v1319 = vsel %vm1318, %v1310, %v1315
        %v1320 = vmul.f32 %v1303, %v1319
        %v1322 = vperm.slane %v1297, 0
        %v1324 = vmul.f32 %v1320, %v1322
        %v1326 = vperm.slane %v1298, 0
        %v1328 = vadd.f32 %v1324, %v1326
        %v1329 = vpack.c.bf16 %v1328, %v1328
        %v1330 = vld [vmem:[%s13] sm:$0xf]
        %v1331 = vld [vmem:[%s13 + $0x4] sm:$0xf]
        %v1332 = vld [vmem:[%s13 + $0x8] sm:$0xf]
        %v1333 = vld [vmem:[%s13 + $0xc] sm:$0xf]
        %v1334 = vld [vmem:[%s14] sm:$0x1]
        %v1336 = vperm.slane %v1334, 0
        %v1342 = vunpack.c.l.b16 %v1330
        %v1343 = vunpack.c.l.b16 %v1331
        %v1344 = vunpack.c.l.b16 %v1332
        %v1345 = vunpack.c.l.b16 %v1333
        %v1346 = vpack.c.b16 %v1343, %v1342
        %v1347 = vpack.c.b16 %v1345, %v1344
        %v1351 = vsel %vm548, %v1329, 0
        %1353 = vmatpush.bf16.msra.mxu0 0
        %1354 = vmatpush.bf16.msra.mxu0 0
        %1355 = vmatpush.bf16.msra.mxu0 0
        %1356 = vmatpush.bf16.msra.mxu0 0
        %1357 = vmatpush.bf16.msra.mxu0 0
        %1358 = vmatpush.bf16.msra.mxu0 0
        %1359 = vmatpush.bf16.msra.mxu0 %v1347
        %1360 = vmatpush.bf16.msra.mxu0 %v1346
        %1361 = vmatmul.bf16.gmra.mxu0 %v1351
        %v1362 = vpop.f32.mrf.mxu0
        %v1363 = vadd.f32 %v1336, %v1362
        %v1364 = vpop.f32.mrf.mxu0
        %1365 = vdwg.mxu0
        %v1366 = vmul.f32 %v1363, 1.702
        %v1367 = vxor.u32 %v1366, 2147483648
        %v1368 = vmul.f32 %v1367, 1.442695
        %v1369 = vpow.pop %v1368
        %v1370 = vadd.f32 %v1369, 1.0
        %v1371 = vrcp.pop %v1370
        %v1372 = vmul.f32 %v1370, %v1371
        %v1373 = vsub.f32 1.0, %v1372
        %v1374 = vmul.f32 %v1371, %v1373
        %v1375 = vadd.f32 %v1371, %v1374
        %vm1376 = vweird.f32 %v1370
        %vm1377 = vweird.f32 %v1371
        %vm1378 = vmor %vm1376, %vm1377
        %v1379 = vsel %vm1378, %v1371, %v1375
        %v1380 = vand.u32 2147483647, %v1370
        %vm1381 = vcmp.eq.f32.partialorder %v1380, 8.507059e+37
        %v1382 = vand.u32 %v1370, 2147483648
        %v1383 = vor.u32 1.1754944e-38, %v1382
        %v1384 = vsel %vm1381, %v1383, %v1379
        %v1385 = vmul.f32 1.0, %v1384
        %v1386 = vmul.f32 %v1363, %v1385
        %v1387 = vpack.c.bf16 %v1386, %v1386
        %v1388 = vld [vmem:[%s15] sm:$0xf]
        %v1389 = vld [vmem:[%s15 + $0x4] sm:$0xf]
        %v1390 = vld [vmem:[%s15 + $0x8] sm:$0xf]
        %v1391 = vld [vmem:[%s15 + $0xc] sm:$0xf]
        %v1392 = vld [vmem:[%s15 + $0x10] sm:$0xf]
        %v1393 = vld [vmem:[%s15 + $0x14] sm:$0xf]
        %v1394 = vld [vmem:[%s15 + $0x18] sm:$0xf]
        %v1395 = vld [vmem:[%s15 + $0x1c] sm:$0xf]
        %v1396 = vld [vmem:[%s16] sm:$0x1]
        %v1398 = vperm.slane %v1396, 0
        %v1408 = vunpack.c.l.b16 %v1388
        %v1409 = vunpack.c.l.b16 %v1389
        %v1410 = vunpack.c.l.b16 %v1390
        %v1411 = vunpack.c.l.b16 %v1391
        %v1412 = vunpack.c.l.b16 %v1392
        %v1413 = vunpack.c.l.b16 %v1393
        %v1414 = vunpack.c.l.b16 %v1394
        %v1415 = vunpack.c.l.b16 %v1395
        %v1416 = vpack.c.b16 %v1409, %v1408
        %v1417 = vpack.c.b16 %v1411, %v1410
        %v1418 = vpack.c.b16 %v1413, %v1412
        %v1419 = vpack.c.b16 %v1415, %v1414
        %vm1424 = vcmask 523264
        %v1426 = vsel %vm1424, %v1387, 0
        %1428 = vmatpush.bf16.msra.mxu0 0
        %1429 = vmatpush.bf16.msra.mxu0 0
        %1430 = vmatpush.bf16.msra.mxu0 0
        %1431 = vmatpush.bf16.msra.mxu0 0
        %1432 = vmatpush.bf16.msra.mxu0 %v1419
        %1433 = vmatpush.bf16.msra.mxu0 %v1418
        %1434 = vmatpush.bf16.msra.mxu0 %v1417
        %1435 = vmatpush.bf16.msra.mxu0 %v1416
        %1436 = vmatmul.bf16.gmra.mxu0 %v1426
        %v1437 = vpop.f32.mrf.mxu0
        %v1438 = vadd.f32 %v1398, %v1437
        %v1439 = vpop.f32.mrf.mxu0
        %1440 = vdwg.mxu0
        %v1441 = vadd.f32 %v1296, %v1438
        %1442 = vst.msk [vmem:[%s539] sm:$0xff] %vm548, %v1441
        %s1443 = sand.u32 %s401, 1
        %s1444 = scalar_lea.sflag [#allocation3], %s1443
        %s1445 = sand.u32 %s401, 1
        %s1446 = smul.addr %s1445, 8
        %s1447 = scalar_lea.vmem [#allocation2], %s1446
        // Predicated region
        $region89: #{tpu_custom_call.1} parent=87 // pred_check
          %p1448 = pneg %p411
        $region90: #{tpu_custom_call.1} parent=87 // pred_check_branch
          %1450 = sbr.rel (%p1448) target = $region92
        $region91: #{tpu_custom_call.1} parent=87 // pred_region
          %1452 = vsyncadd %s1444, 0
          %s1453 = smul.addr %s31, 8
          %s1454 = scalar_lea.hbm %s17, %s1453
          %s1456 = sshll.u32 %s1447, 4
          %s1457 = int_to_ptr.vmem [resolvable:$true] %s1456
          %s1458 = sshll.u32 %s1454, 4
          %s1459 = int_to_ptr.hbm [resolvable:$true] %s1458
          %1461 = dma.vmem_to_hbm [thread:$0]  %s1457, 128, %s1459, %s1444
        $region92: #{tpu_custom_call.1} parent=87 // pred_fallthru
          _
      $region88: #{tpu_custom_call.1} parent=5 // pred_fallthru
        _
      %p1462 = scmp.le.s32.totalorder 2, %s26
      // Predicated region
      $region93: #{tpu_custom_call.1} parent=5 // pred_check
        %p1463 = pneg %p1462
      $region94: #{tpu_custom_call.1} parent=5 // pred_check_branch
        %1465 = sbr.rel (%p1463) target = $region96
      $region95: #{tpu_custom_call.1} parent=5 // pred_region
        %s1466 = ssub.s32 %s26, 2
        // Predicated region
        $region97: #{tpu_custom_call.1} parent=95 // pred_check
          %p1467 = pneg %p417
        $region98: #{tpu_custom_call.1} parent=95 // pred_check_branch
          %1469 = sbr.rel (%p1467) target = $region100
        $region99: #{tpu_custom_call.1} parent=95 // pred_region
          %s1470 = sand.u32 %s402, 1
          %s1471 = scalar_lea.sflag [#allocation3], %s1470
          %s1472 = sand.u32 %s402, 1
          %s1473 = smul.addr %s1472, 8
          %s1474 = scalar_lea.vmem [#allocation2], %s1473
          %1476 = dma.done %s1471, 128
        $region100: #{tpu_custom_call.1} parent=95 // pred_fallthru
          _
      $region96: #{tpu_custom_call.1} parent=5 // pred_fallthru
        _
    $region6: #{tpu_custom_call.1} parent=1 // loop_footer
      %s30 = sadd.s32 1, %s26
    $region7: #{tpu_custom_call.1} parent=1 // loop_footer_branch
      %25 = sbr.rel target = $region3
    $region8: #{tpu_custom_call.1} parent=1 // loop_exit
      _
    %1477 = vsyncpa [#allocation3], 1
    %s1478 = scalar_lea.sflag [#allocation3], 1
    %1479 = vsyncpa %s1478, 1

// kernel: tpu_custom_call.1
$region0: #{tpu_custom_call.1}
  #allocation0 [shape = 'u32[]', space=smem, size = 0x4, offset = 0x4, fixed_abs, tag = 'smem constant byte address 0x4 - core index']
  #allocation1 [shape = 'u32[72,128]{1,0:T(1,128)}', space=vmem, size = 0x9000, scoped, tag = 'internal scratch']
  %s0 = inlined_call_operand.vmem [shape: f32[2,8,32], index: 0, kind: input, shape index: {}]
  %s1 = inlined_call_operand.vmem [shape: f32[1,32], index: 1, kind: input, shape index: {}]
  %s2 = inlined_call_operand.vmem [shape: f32[1,32], index: 2, kind: input, shape index: {}]
  %s3 = inlined_call_operand.vmem [shape: bf16[4,32,8], index: 3, kind: input, shape index: {}]
  %s4 = inlined_call_operand.vmem [shape: f32[4,1,8], index: 4, kind: input, shape index: {}]
  %s5 = inlined_call_operand.vmem [shape: bf16[4,32,8], index: 5, kind: input, shape index: {}]
  %s6 = inlined_call_operand.vmem [shape: f32[4,1,8], index: 6, kind: input, shape index: {}]
  %s7 = inlined_call_operand.vmem [shape: bf16[4,32,8], index: 7, kind: input, shape index: {}]
  %s8 = inlined_call_operand.vmem [shape: f32[4,1,8], index: 8, kind: input, shape index: {}]
  %s9 = inlined_call_operand.vmem [shape: bf16[4,8,32], index: 9, kind: input, shape index: {}]
  %s10 = inlined_call_operand.vmem [shape: f32[1,32], index: 10, kind: input, shape index: {}]
  %s11 = inlined_call_operand.vmem [shape: f32[1,32], index: 11, kind: input, shape index: {}]
  %s12 = inlined_call_operand.vmem [shape: f32[1,32], index: 12, kind: input, shape index: {}]
  %s13 = inlined_call_operand.vmem [shape: bf16[32,64], index: 13, kind: input, shape index: {}]
  %s14 = inlined_call_operand.vmem [shape: f32[1,64], index: 14, kind: input, shape index: {}]
  %s15 = inlined_call_operand.vmem [shape: bf16[64,32], index: 15, kind: input, shape index: {}]
  %s16 = inlined_call_operand.vmem [shape: f32[1,32], index: 16, kind: input, shape index: {}]
  %s17 = inlined_call_operand.hbm [shape: f32[2,8,32], index: 17, kind: output, shape index: {}]
  %s18 = sld [smem:[#allocation0]]
  $region101: #{tpu_custom_call.1} parent=0
    _
  %s20 = ssub.s32 1, %s18
  %s21 = scalar_select 0, %s20, %s18
  $region1: #{tpu_custom_call.1} parent=0
    #allocation2 [shape = 'u8[8192]{0}', space=vmem, size = 0x2000, scoped, tag = 'output window, operand 0']
    #allocation3 [shape = 's32[2]{0}', space=sflag, size = 0x8, scoped, tag = 'scoped memory for tpu_custom_call.1']
    %22 = vsyncpa [#allocation3], 0
    %s23 = scalar_lea.sflag [#allocation3], 1
    %24 = vsyncpa %s23, 0
    loop: start=0, step=1, limit=4
    $region2: #{tpu_custom_call.1} parent=1 // loop_pre_header
      _
    $region3: #{tpu_custom_call.1} parent=1 // loop_header
      %s26 = sphi 0, %s30
      %p27 = scmp.ge.s32.totalorder %s26, 4
      %s36 = sphi 0, %s38
      %s39 = sphi 0, %s36
      %s40 = sphi 0, %s39
      %s56 = sphi 0, %s40
      %s60 = sphi 0, %s60
      %s62 = sphi 0, %s60
      %s63 = sphi 0, %s62
      %s77 = sphi 0, %s63
      %s81 = sphi 0, %s81
      %s83 = sphi 0, %s81
      %s84 = sphi 0, %s83
      %s98 = sphi 0, %s84
      %s102 = sphi 0, %s102
      %s104 = sphi 0, %s102
      %s105 = sphi 0, %s104
      %s119 = sphi 0, %s105
      %s123 = sphi 0, %s123
      %s125 = sphi 0, %s123
      %s126 = sphi 0, %s125
      %s140 = sphi 0, %s126
      %s144 = sphi 0, %s144
      %s146 = sphi 0, %s144
      %s147 = sphi 0, %s146
      %s161 = sphi 0, %s147
      %s165 = sphi 0, %s165
      %s167 = sphi 0, %s165
      %s168 = sphi 0, %s167
      %s182 = sphi 0, %s168
      %s186 = sphi 0, %s186
      %s188 = sphi 0, %s186
      %s189 = sphi 0, %s188
      %s203 = sphi 0, %s189
      %s207 = sphi 0, %s207
      %s209 = sphi 0, %s207
      %s210 = sphi 0, %s209
      %s224 = sphi 0, %s210
      %s228 = sphi 0, %s228
      %s230 = sphi 0, %s228
      %s231 = sphi 0, %s230
      %s245 = sphi 0, %s231
      %s249 = sphi 0, %s249
      %s251 = sphi 0, %s249
      %s252 = sphi 0, %s251
      %s266 = sphi 0, %s252
      %s270 = sphi 0, %s270
      %s272 = sphi 0, %s270
      %s273 = sphi 0, %s272
      %s287 = sphi 0, %s273
      %s291 = sphi 0, %s291
      %s293 = sphi 0, %s291
      %s294 = sphi 0, %s293
      %s308 = sphi 0, %s294
      %s312 = sphi 0, %s312
      %s314 = sphi 0, %s312
      %s315 = sphi 0, %s314
      %s329 = sphi 0, %s315
      %s333 = sphi 0, %s333
      %s335 = sphi 0, %s333
      %s336 = sphi 0, %s335
      %s350 = sphi 0, %s336
      %s354 = sphi 0, %s354
      %s356 = sphi 0, %s354
      %s357 = sphi 0, %s356
      %s371 = sphi 0, %s357
      %s375 = sphi 0, %s375
      %s377 = sphi 0, %s375
      %s378 = sphi 0, %s377
      %s392 = sphi 0, %s378
      %s398 = sphi 0, %s400
      %s401 = sphi 0, %s398
      %s402 = sphi 0, %s401
      %s418 = sphi 0, %s402
    $region4: #{tpu_custom_call.1} parent=1 // loop_header_branch
      %29 = sbr.rel (%p27) target = $region8
    $region5: #{tpu_custom_call.1} parent=1 // loop_body
      %s31 = ssub.s32 %s26, 1
      %s32 = ssub.s32 %s26, 2
      %s33 = sadd.s32 %s26, 1
      %s34 = ssub.s32 %s26, %s33
      %p35 = scmp.eq.s32.totalorder %s34, 0
      %s37 = sadd.s32 %s36, 1
      %s38 = scalar_select %p35, %s36, %s37
      %p41 = pneg %p35
      %p42 = scmp.eq.s32.totalorder %s26, 1
      %p43 = por %p41, %p42
      %p44 = scmp.ne.s32.totalorder %s36, %s39
      %p45 = scmp.eq.s32.totalorder %s26, 0
      %p46 = por %p44, %p45
      %p47 = scmp.ne.s32.totalorder %s36, %s39
      %p48 = scmp.eq.s32.totalorder %s31, 1
      %p49 = por %p47, %p48
      %p50 = scmp.ne.s32.totalorder %s39, %s40
      %p51 = scmp.eq.s32.totalorder %s31, 0
      %p52 = por %p50, %p51
      %p53 = scmp.ne.s32.totalorder %s39, %s40
      %p54 = scmp.eq.s32.totalorder %s32, 1
      %p55 = por %p53, %p54
      %p57 = scmp.ne.s32.totalorder %s40, %s56
      %p58 = scmp.eq.s32.totalorder %s32, 0
      %p59 = por %p57, %p58
      %s61 = sadd.s32 %s60, 1
      %p64 = scmp.eq.s32.totalorder %s26, 1
      %p65 = scmp.ne.s32.totalorder %s60, %s62
      %p66 = scmp.eq.s32.totalorder %s26, 0
      %p67 = por %p65, %p66
      %p68 = scmp.ne.s32.totalorder %s60, %s62
      %p69 = scmp.eq.s32.totalorder %s31, 1
      %p70 = por %p68, %p69
      %p71 = scmp.ne.s32.totalorder %s62, %s63
      %p72 = scmp.eq.s32.totalorder %s31, 0
      %p73 = por %p71, %p72
      %p74 = scmp.ne.s32.totalorder %s62, %s63
      %p75 = scmp.eq.s32.totalorder %s32, 1
      %p76 = por %p74, %p75
      %p78 = scmp.ne.s32.totalorder %s63, %s77
      %p79 = scmp.eq.s32.totalorder %s32, 0
      %p80 = por %p78, %p79
      %s82 = sadd.s32 %s81, 1
      %p85 = scmp.eq.s32.totalorder %s26, 1
      %p86 = scmp.ne.s32.totalorder %s81, %s83
      %p87 = scmp.eq.s32.totalorder %s26, 0
      %p88 = por %p86, %p87
      %p89 = scmp.ne.s32.totalorder %s81, %s83
      %p90 = scmp.eq.s32.totalorder %s31, 1
      %p91 = por %p89, %p90
      %p92 = scmp.ne.s32.totalorder %s83, %s84
      %p93 = scmp.eq.s32.totalorder %s31, 0
      %p94 = por %p92, %p93
      %p95 = scmp.ne.s32.totalorder %s83, %s84
      %p96 = scmp.eq.s32.totalorder %s32, 1
      %p97 = por %p95, %p96
      %p99 = scmp.ne.s32.totalorder %s84, %s98
      %p100 = scmp.eq.s32.totalorder %s32, 0
      %p101 = por %p99, %p100
      %s103 = sadd.s32 %s102, 1
      %p106 = scmp.eq.s32.totalorder %s26, 1
      %p107 = scmp.ne.s32.totalorder %s102, %s104
      %p108 = scmp.eq.s32.totalorder %s26, 0
      %p109 = por %p107, %p108
      %p110 = scmp.ne.s32.totalorder %s102, %s104
      %p111 = scmp.eq.s32.totalorder %s31, 1
      %p112 = por %p110, %p111
      %p113 = scmp.ne.s32.totalorder %s104, %s105
      %p114 = scmp.eq.s32.totalorder %s31, 0
      %p115 = por %p113, %p114
      %p116 = scmp.ne.s32.totalorder %s104, %s105
      %p117 = scmp.eq.s32.totalorder %s32, 1
      %p118 = por %p116, %p117
      %p120 = scmp.ne.s32.totalorder %s105, %s119
      %p121 = scmp.eq.s32.totalorder %s32, 0
      %p122 = por %p120, %p121
      %s124 = sadd.s32 %s123, 1
      %p127 = scmp.eq.s32.totalorder %s26, 1
      %p128 = scmp.ne.s32.totalorder %s123, %s125
      %p129 = scmp.eq.s32.totalorder %s26, 0
      %p130 = por %p128, %p129
      %p131 = scmp.ne.s32.totalorder %s123, %s125
      %p132 = scmp.eq.s32.totalorder %s31, 1
      %p133 = por %p131, %p132
      %p134 = scmp.ne.s32.totalorder %s125, %s126
      %p135 = scmp.eq.s32.totalorder %s31, 0
      %p136 = por %p134, %p135
      %p137 = scmp.ne.s32.totalorder %s125, %s126
      %p138 = scmp.eq.s32.totalorder %s32, 1
      %p139 = por %p137, %p138
      %p141 = scmp.ne.s32.totalorder %s126, %s140
      %p142 = scmp.eq.s32.totalorder %s32, 0
      %p143 = por %p141, %p142
      %s145 = sadd.s32 %s144, 1
      %p148 = scmp.eq.s32.totalorder %s26, 1
      %p149 = scmp.ne.s32.totalorder %s144, %s146
      %p150 = scmp.eq.s32.totalorder %s26, 0
      %p151 = por %p149, %p150
      %p152 = scmp.ne.s32.totalorder %s144, %s146
      %p153 = scmp.eq.s32.totalorder %s31, 1
      %p154 = por %p152, %p153
      %p155 = scmp.ne.s32.totalorder %s146, %s147
      %p156 = scmp.eq.s32.totalorder %s31, 0
      %p157 = por %p155, %p156
      %p158 = scmp.ne.s32.totalorder %s146, %s147
      %p159 = scmp.eq.s32.totalorder %s32, 1
      %p160 = por %p158, %p159
      %p162 = scmp.ne.s32.totalorder %s147, %s161
      %p163 = scmp.eq.s32.totalorder %s32, 0
      %p164 = por %p162, %p163
      %s166 = sadd.s32 %s165, 1
      %p169 = scmp.eq.s32.totalorder %s26, 1
      %p170 = scmp.ne.s32.totalorder %s165, %s167
      %p171 = scmp.eq.s32.totalorder %s26, 0
      %p172 = por %p170, %p171
      %p173 = scmp.ne.s32.totalorder %s165, %s167
      %p174 = scmp.eq.s32.totalorder %s31, 1
      %p175 = por %p173, %p174
      %p176 = scmp.ne.s32.totalorder %s167, %s168
      %p177 = scmp.eq.s32.totalorder %s31, 0
      %p178 = por %p176, %p177
      %p179 = scmp.ne.s32.totalorder %s167, %s168
      %p180 = scmp.eq.s32.totalorder %s32, 1
      %p181 = por %p179, %p180
      %p183 = scmp.ne.s32.totalorder %s168, %s182
      %p184 = scmp.eq.s32.totalorder %s32, 0
      %p185 = por %p183, %p184
      %s187 = sadd.s32 %s186, 1
      %p190 = scmp.eq.s32.totalorder %s26, 1
      %p191 = scmp.ne.s32.totalorder %s186, %s188
      %p192 = scmp.eq.s32.totalorder %s26, 0
      %p193 = por %p191, %p192
      %p194 = scmp.ne.s32.totalorder %s186, %s188
      %p195 = scmp.eq.s32.totalorder %s31, 1
      %p196 = por %p194, %p195
      %p197 = scmp.ne.s32.totalorder %s188, %s189
      %p198 = scmp.eq.s32.totalorder %s31, 0
      %p199 = por %p197, %p198
      %p200 = scmp.ne.s32.totalorder %s188, %s189
      %p201 = scmp.eq.s32.totalorder %s32, 1
      %p202 = por %p200, %p201
      %p204 = scmp.ne.s32.totalorder %s189, %s203
      %p205 = scmp.eq.s32.totalorder %s32, 0
      %p206 = por %p204, %p205
      %s208 = sadd.s32 %s207, 1
      %p211 = scmp.eq.s32.totalorder %s26, 1
      %p212 = scmp.ne.s32.totalorder %s207, %s209
      %p213 = scmp.eq.s32.totalorder %s26, 0
      %p214 = por %p212, %p213
      %p215 = scmp.ne.s32.totalorder %s207, %s209
      %p216 = scmp.eq.s32.totalorder %s31, 1
      %p217 = por %p215, %p216
      %p218 = scmp.ne.s32.totalorder %s209, %s210
      %p219 = scmp.eq.s32.totalorder %s31, 0
      %p220 = por %p218, %p219
      %p221 = scmp.ne.s32.totalorder %s209, %s210
      %p222 = scmp.eq.s32.totalorder %s32, 1
      %p223 = por %p221, %p222
      %p225 = scmp.ne.s32.totalorder %s210, %s224
      %p226 = scmp.eq.s32.totalorder %s32, 0
      %p227 = por %p225, %p226
      %s229 = sadd.s32 %s228, 1
      %p232 = scmp.eq.s32.totalorder %s26, 1
      %p233 = scmp.ne.s32.totalorder %s228, %s230
      %p234 = scmp.eq.s32.totalorder %s26, 0
      %p235 = por %p233, %p234
      %p236 = scmp.ne.s32.totalorder %s228, %s230
      %p237 = scmp.eq.s32.totalorder %s31, 1
      %p238 = por %p236, %p237
      %p239 = scmp.ne.s32.totalorder %s230, %s231
      %p240 = scmp.eq.s32.totalorder %s31, 0
      %p241 = por %p239, %p240
      %p242 = scmp.ne.s32.totalorder %s230, %s231
      %p243 = scmp.eq.s32.totalorder %s32, 1
      %p244 = por %p242, %p243
      %p246 = scmp.ne.s32.totalorder %s231, %s245
      %p247 = scmp.eq.s32.totalorder %s32, 0
      %p248 = por %p246, %p247
      %s250 = sadd.s32 %s249, 1
      %p253 = scmp.eq.s32.totalorder %s26, 1
      %p254 = scmp.ne.s32.totalorder %s249, %s251
      %p255 = scmp.eq.s32.totalorder %s26, 0
      %p256 = por %p254, %p255
      %p257 = scmp.ne.s32.totalorder %s249, %s251
      %p258 = scmp.eq.s32.totalorder %s31, 1
      %p259 = por %p257, %p258
      %p260 = scmp.ne.s32.totalorder %s251, %s252
      %p261 = scmp.eq.s32.totalorder %s31, 0
      %p262 = por %p260, %p261
      %p263 = scmp.ne.s32.totalorder %s251, %s252
      %p264 = scmp.eq.s32.totalorder %s32, 1
      %p265 = por %p263, %p264
      %p267 = scmp.ne.s32.totalorder %s252, %s266
      %p268 = scmp.eq.s32.totalorder %s32, 0
      %p269 = por %p267, %p268
      %s271 = sadd.s32 %s270, 1
      %p274 = scmp.eq.s32.totalorder %s26, 1
      %p275 = scmp.ne.s32.totalorder %s270, %s272
      %p276 = scmp.eq.s32.totalorder %s26, 0
      %p277 = por %p275, %p276
      %p278 = scmp.ne.s32.totalorder %s270, %s272
      %p279 = scmp.eq.s32.totalorder %s31, 1
      %p280 = por %p278, %p279
      %p281 = scmp.ne.s32.totalorder %s272, %s273
      %p282 = scmp.eq.s32.totalorder %s31, 0
      %p283 = por %p281, %p282
      %p284 = scmp.ne.s32.totalorder %s272, %s273
      %p285 = scmp.eq.s32.totalorder %s32, 1
      %p286 = por %p284, %p285
      %p288 = scmp.ne.s32.totalorder %s273, %s287
      %p289 = scmp.eq.s32.totalorder %s32, 0
      %p290 = por %p288, %p289
      %s292 = sadd.s32 %s291, 1
      %p295 = scmp.eq.s32.totalorder %s26, 1
      %p296 = scmp.ne.s32.totalorder %s291, %s293
      %p297 = scmp.eq.s32.totalorder %s26, 0
      %p298 = por %p296, %p297
      %p299 = scmp.ne.s32.totalorder %s291, %s293
      %p300 = scmp.eq.s32.totalorder %s31, 1
      %p301 = por %p299, %p300
      %p302 = scmp.ne.s32.totalorder %s293, %s294
      %p303 = scmp.eq.s32.totalorder %s31, 0
      %p304 = por %p302, %p303
      %p305 = scmp.ne.s32.totalorder %s293, %s294
      %p306 = scmp.eq.s32.totalorder %s32, 1
      %p307 = por %p305, %p306
      %p309 = scmp.ne.s32.totalorder %s294, %s308
      %p310 = scmp.eq.s32.totalorder %s32, 0
      %p311 = por %p309, %p310
      %s313 = sadd.s32 %s312, 1
      %p316 = scmp.eq.s32.totalorder %s26, 1
      %p317 = scmp.ne.s32.totalorder %s312, %s314
      %p318 = scmp.eq.s32.totalorder %s26, 0
      %p319 = por %p317, %p318
      %p320 = scmp.ne.s32.totalorder %s312, %s314
      %p321 = scmp.eq.s32.totalorder %s31, 1
      %p322 = por %p320, %p321
      %p323 = scmp.ne.s32.totalorder %s314, %s315
      %p324 = scmp.eq.s32.totalorder %s31, 0
      %p325 = por %p323, %p324
      %p326 = scmp.ne.s32.totalorder %s314, %s315
      %p327 = scmp.eq.s32.totalorder %s32, 1
      %p328 = por %p326, %p327
      %p330 = scmp.ne.s32.totalorder %s315, %s329
      %p331 = scmp.eq.s32.totalorder %s32, 0
      %p332 = por %p330, %p331
      %s334 = sadd.s32 %s333, 1
      %p337 = scmp.eq.s32.totalorder %s26, 1
      %p338 = scmp.ne.s32.totalorder %s333, %s335
      %p339 = scmp.eq.s32.totalorder %s26, 0
      %p340 = por %p338, %p339
      %p341 = scmp.ne.s32.totalorder %s333, %s335
      %p342 = scmp.eq.s32.totalorder %s31, 1
      %p343 = por %p341, %p342
      %p344 = scmp.ne.s32.totalorder %s335, %s336
      %p345 = scmp.eq.s32.totalorder %s31, 0
      %p346 = por %p344, %p345
      %p347 = scmp.ne.s32.totalorder %s335, %s336
      %p348 = scmp.eq.s32.totalorder %s32, 1
      %p349 = por %p347, %p348
      %p351 = scmp.ne.s32.totalorder %s336, %s350
      %p352 = scmp.eq.s32.totalorder %s32, 0
      %p353 = por %p351, %p352
      %s355 = sadd.s32 %s354, 1
      %p358 = scmp.eq.s32.totalorder %s26, 1
      %p359 = scmp.ne.s32.totalorder %s354, %s356
      %p360 = scmp.eq.s32.totalorder %s26, 0
      %p361 = por %p359, %p360
      %p362 = scmp.ne.s32.totalorder %s354, %s356
      %p363 = scmp.eq.s32.totalorder %s31, 1
      %p364 = por %p362, %p363
      %p365 = scmp.ne.s32.totalorder %s356, %s357
      %p366 = scmp.eq.s32.totalorder %s31, 0
      %p367 = por %p365, %p366
      %p368 = scmp.ne.s32.totalorder %s356, %s357
      %p369 = scmp.eq.s32.totalorder %s32, 1
      %p370 = por %p368, %p369
      %p372 = scmp.ne.s32.totalorder %s357, %s371
      %p373 = scmp.eq.s32.totalorder %s32, 0
      %p374 = por %p372, %p373
      %s376 = sadd.s32 %s375, 1
      %p379 = scmp.eq.s32.totalorder %s26, 1
      %p380 = scmp.ne.s32.totalorder %s375, %s377
      %p381 = scmp.eq.s32.totalorder %s26, 0
      %p382 = por %p380, %p381
      %p383 = scmp.ne.s32.totalorder %s375, %s377
      %p384 = scmp.eq.s32.totalorder %s31, 1
      %p385 = por %p383, %p384
      %p386 = scmp.ne.s32.totalorder %s377, %s378
      %p387 = scmp.eq.s32.totalorder %s31, 0
      %p388 = por %p386, %p387
      %p389 = scmp.ne.s32.totalorder %s377, %s378
      %p390 = scmp.eq.s32.totalorder %s32, 1
      %p391 = por %p389, %p390
      %p393 = scmp.ne.s32.totalorder %s378, %s392
      %p394 = scmp.eq.s32.totalorder %s32, 0
      %p395 = por %p393, %p394
      %s396 = ssub.s32 %s26, %s33
      %p397 = scmp.eq.s32.totalorder %s396, 0
      %s399 = sadd.s32 %s398, 1
      %s400 = scalar_select %p397, %s398, %s399
      %p403 = pneg %p397
      %p404 = scmp.eq.s32.totalorder %s26, 1
      %p405 = por %p403, %p404
      %p406 = scmp.ne.s32.totalorder %s398, %s401
      %p407 = scmp.eq.s32.totalorder %s26, 0
      %p408 = por %p406, %p407
      %p409 = scmp.ne.s32.totalorder %s398, %s401
      %p410 = scmp.eq.s32.totalorder %s31, 1
      %p411 = por %p409, %p410
      %p412 = scmp.ne.s32.totalorder %s401, %s402
      %p413 = scmp.eq.s32.totalorder %s31, 0
      %p414 = por %p412, %p413
      %p415 = scmp.ne.s32.totalorder %s401, %s402
      %p416 = scmp.eq.s32.totalorder %s32, 1
      %p417 = por %p415, %p416
      %p419 = scmp.ne.s32.totalorder %s402, %s418
      %p420 = scmp.eq.s32.totalorder %s32, 0
      %p421 = por %p419, %p420
      %p422 = scmp.le.s32.totalorder 1, %s26
      %p423 = scmp.lt.s32.totalorder %s26, 3
      %p424 = pnand %p422, %p423
      %p425 = pneg %p424
      // Predicated region
      $region9: #{tpu_custom_call.1} parent=5 // pred_check
        _
      $region10: #{tpu_custom_call.1} parent=5 // pred_check_branch
        %427 = sbr.rel (%p424) target = $region12
      $region11: #{tpu_custom_call.1} parent=5 // pred_region
        %s428 = ssub.s32 %s26, 1
        // Predicated region
        $region13: #{tpu_custom_call.1} parent=11 // pred_check
          %p429 = pneg %p73
        $region14: #{tpu_custom_call.1} parent=11 // pred_check_branch
          %431 = sbr.rel (%p429) target = $region16
        $region15: #{tpu_custom_call.1} parent=11 // pred_region
          _
        $region16: #{tpu_custom_call.1} parent=11 // pred_fallthru
          _
        // Predicated region
        $region17: #{tpu_custom_call.1} parent=11 // pred_check
          %p432 = pneg %p94
        $region18: #{tpu_custom_call.1} parent=11 // pred_check_branch
          %434 = sbr.rel (%p432) target = $region20
        $region19: #{tpu_custom_call.1} parent=11 // pred_region
          _
        $region20: #{tpu_custom_call.1} parent=11 // pred_fallthru
          _
        // Predicated region
        $region21: #{tpu_custom_call.1} parent=11 // pred_check
          %p435 = pneg %p115
        $region22: #{tpu_custom_call.1} parent=11 // pred_check_branch
          %437 = sbr.rel (%p435) target = $region24
        $region23: #{tpu_custom_call.1} parent=11 // pred_region
          _
        $region24: #{tpu_custom_call.1} parent=11 // pred_fallthru
          _
        // Predicated region
        $region25: #{tpu_custom_call.1} parent=11 // pred_check
          %p438 = pneg %p136
        $region26: #{tpu_custom_call.1} parent=11 // pred_check_branch
          %440 = sbr.rel (%p438) target = $region28
        $region27: #{tpu_custom_call.1} parent=11 // pred_region
          _
        $region28: #{tpu_custom_call.1} parent=11 // pred_fallthru
          _
        // Predicated region
        $region29: #{tpu_custom_call.1} parent=11 // pred_check
          %p441 = pneg %p157
        $region30: #{tpu_custom_call.1} parent=11 // pred_check_branch
          %443 = sbr.rel (%p441) target = $region32
        $region31: #{tpu_custom_call.1} parent=11 // pred_region
          _
        $region32: #{tpu_custom_call.1} parent=11 // pred_fallthru
          _
        // Predicated region
        $region33: #{tpu_custom_call.1} parent=11 // pred_check
          %p444 = pneg %p178
        $region34: #{tpu_custom_call.1} parent=11 // pred_check_branch
          %446 = sbr.rel (%p444) target = $region36
        $region35: #{tpu_custom_call.1} parent=11 // pred_region
          _
        $region36: #{tpu_custom_call.1} parent=11 // pred_fallthru
          _
        // Predicated region
        $region37: #{tpu_custom_call.1} parent=11 // pred_check
          %p447 = pneg %p199
        $region38: #{tpu_custom_call.1} parent=11 // pred_check_branch
          %449 = sbr.rel (%p447) target = $region40
        $region39: #{tpu_custom_call.1} parent=11 // pred_region
          _
        $region40: #{tpu_custom_call.1} parent=11 // pred_fallthru
          _
        // Predicated region
        $region41: #{tpu_custom_call.1} parent=11 // pred_check
          %p450 = pneg %p220
        $region42: #{tpu_custom_call.1} parent=11 // pred_check_branch
          %452 = sbr.rel (%p450) target = $region44
        $region43: #{tpu_custom_call.1} parent=11 // pred_region
          _
        $region44: #{tpu_custom_call.1} parent=11 // pred_fallthru
          _
        // Predicated region
        $region45: #{tpu_custom_call.1} parent=11 // pred_check
          %p453 = pneg %p241
        $region46: #{tpu_custom_call.1} parent=11 // pred_check_branch
          %455 = sbr.rel (%p453) target = $region48
        $region47: #{tpu_custom_call.1} parent=11 // pred_region
          _
        $region48: #{tpu_custom_call.1} parent=11 // pred_fallthru
          _
        // Predicated region
        $region49: #{tpu_custom_call.1} parent=11 // pred_check
          %p456 = pneg %p262
        $region50: #{tpu_custom_call.1} parent=11 // pred_check_branch
          %458 = sbr.rel (%p456) target = $region52
        $region51: #{tpu_custom_call.1} parent=11 // pred_region
          _
        $region52: #{tpu_custom_call.1} parent=11 // pred_fallthru
          _
        // Predicated region
        $region53: #{tpu_custom_call.1} parent=11 // pred_check
          %p459 = pneg %p283
        $region54: #{tpu_custom_call.1} parent=11 // pred_check_branch
          %461 = sbr.rel (%p459) target = $region56
        $region55: #{tpu_custom_call.1} parent=11 // pred_region
          _
        $region56: #{tpu_custom_call.1} parent=11 // pred_fallthru
          _
        // Predicated region
        $region57: #{tpu_custom_call.1} parent=11 // pred_check
          %p462 = pneg %p304
        $region58: #{tpu_custom_call.1} parent=11 // pred_check_branch
          %464 = sbr.rel (%p462) target = $region60
        $region59: #{tpu_custom_call.1} parent=11 // pred_region
          _
        $region60: #{tpu_custom_call.1} parent=11 // pred_fallthru
          _
        // Predicated region
        $region61: #{tpu_custom_call.1} parent=11 // pred_check
          %p465 = pneg %p325
        $region62: #{tpu_custom_call.1} parent=11 // pred_check_branch
          %467 = sbr.rel (%p465) target = $region64
        $region63: #{tpu_custom_call.1} parent=11 // pred_region
          _
        $region64: #{tpu_custom_call.1} parent=11 // pred_fallthru
          _
        // Predicated region
        $region65: #{tpu_custom_call.1} parent=11 // pred_check
          %p468 = pneg %p346
        $region66: #{tpu_custom_call.1} parent=11 // pred_check_branch
          %470 = sbr.rel (%p468) target = $region68
        $region67: #{tpu_custom_call.1} parent=11 // pred_region
          _
        $region68: #{tpu_custom_call.1} parent=11 // pred_fallthru
          _
        // Predicated region
        $region69: #{tpu_custom_call.1} parent=11 // pred_check
          %p471 = pneg %p367
        $region70: #{tpu_custom_call.1} parent=11 // pred_check_branch
          %473 = sbr.rel (%p471) target = $region72
        $region71: #{tpu_custom_call.1} parent=11 // pred_region
          _
        $region72: #{tpu_custom_call.1} parent=11 // pred_fallthru
          _
        // Predicated region
        $region73: #{tpu_custom_call.1} parent=11 // pred_check
          %p474 = pneg %p388
        $region74: #{tpu_custom_call.1} parent=11 // pred_check_branch
          %476 = sbr.rel (%p474) target = $region76
        $region75: #{tpu_custom_call.1} parent=11 // pred_region
          _
        $region76: #{tpu_custom_call.1} parent=11 // pred_fallthru
          _
      $region12: #{tpu_custom_call.1} parent=5 // pred_fallthru
        _
      %p477 = scmp.lt.s32.totalorder %s26, 2
      // Predicated region
      $region77: #{tpu_custom_call.1} parent=5 // pred_check
        %p478 = pneg %p477
      $region78: #{tpu_custom_call.1} parent=5 // pred_check_branch
        %480 = sbr.rel (%p478) target = $region80
      $region79: #{tpu_custom_call.1} parent=5 // pred_region
        // Predicated region
        $region81: #{tpu_custom_call.1} parent=79 // pred_check
          %p481 = pneg %p46
        $region82: #{tpu_custom_call.1} parent=79 // pred_check_branch
          %483 = sbr.rel (%p481) target = $region84
        $region83: #{tpu_custom_call.1} parent=79 // pred_region
          %p484 = scmp.lt.s32.totalorder %s26, 1
          %s485 = scalar_select %p484, %s26, 1
          %s486 = smul.addr %s485, 8
          %s487 = scalar_lea.vmem %s0, %s486
        $region84: #{tpu_custom_call.1} parent=79 // pred_fallthru
          _
      $region80: #{tpu_custom_call.1} parent=5 // pred_fallthru
        _
      %p488 = scmp.le.s32.totalorder 1, %s26
      %p489 = scmp.lt.s32.totalorder %s26, 3
      %p490 = pnand %p488, %p489
      %p491 = pneg %p490
      // Predicated region
      $region85: #{tpu_custom_call.1} parent=5 // pred_check
        _
      $region86: #{tpu_custom_call.1} parent=5 // pred_check_branch
        %493 = sbr.rel (%p490) target = $region88
      $region87: #{tpu_custom_call.1} parent=5 // pred_region
        %s494 = ssub.s32 %s26, 1
        %p495 = scmp.lt.s32.totalorder %s31, 1
        %s496 = scalar_select %p495, %s31, 1
        %s497 = smul.addr %s496, 8
        %s498 = scalar_lea.vmem %s0, %s497
        %p499 = pneg %p52
        %p500 = pneg %p49
        %p501 = pneg %p73
        %p502 = pneg %p70
        %p503 = pneg %p94
        %p504 = pneg %p91
        %p505 = pneg %p115
        %p506 = pneg %p112
        %p507 = pneg %p136
        %p508 = pneg %p133
        %p509 = pneg %p157
        %p510 = pneg %p154
        %p511 = pneg %p178
        %p512 = pneg %p175
        %p513 = pneg %p199
        %p514 = pneg %p196
        %p515 = pneg %p220
        %p516 = pneg %p217
        %p517 = pneg %p241
        %p518 = pneg %p238
        %p519 = pneg %p262
        %p520 = pneg %p259
        %p521 = pneg %p283
        %p522 = pneg %p280
        %p523 = pneg %p304
        %p524 = pneg %p301
        %p525 = pneg %p325
        %p526 = pneg %p322
        %p527 = pneg %p346
        %p528 = pneg %p343
        %p529 = pneg %p367
        %p530 = pneg %p364
        %p531 = pneg %p388
        %p532 = pneg %p385
        %p533 = pneg %p414
        %p534 = pneg %p411
        %s535 = sand.u32 %s401, 1
        %s536 = scalar_lea.sflag [#allocation3], %s535
        %s537 = sand.u32 %s401, 1
        %s538 = smul.addr %s537, 8
        %s539 = scalar_lea.vmem [#allocation2], %s538
        %p540 = scmp.lt.s32.totalorder %s31, 1
        %s541 = scalar_select %p540, %s31, 1
        %s542 = smul.addr %s541, 8
        %s543 = scalar_lea.vmem %s0, %s542
        %v545 = vld [vmem:[%s543] sm:$0xff]
        %v546 = vld [vmem:[%s1] sm:$0x1]
        %v547 = vld [vmem:[%s2] sm:$0x1]
        %vm548 = vcmask 261120
        %v549 = vsel %vm548, %v545, 0.0
        %550 = vadd.xlane.f32.xlu0 %v549
        %v551 = vpop.xlane.xlu0 %550
        %v552 = vrcp.pop 32.0
        %v553 = vmul.f32 32.0, %v552
        %v554 = vsub.f32 1.0, %v553
        %v555 = vmul.f32 %v552, %v554
        %v556 = vadd.f32 %v552, %v555
        %vm557 = vweird.f32 %v552
        %v558 = vsel %vm557, %v552, %v556
        %v559 = vmul.f32 %v551, %v558
        %v560 = vsub.f32 %v545, %v559
        %v561 = vmul.f32 %v560, %v560
        %v562 = vsel %vm548, %v561, 0.0
        %563 = vadd.xlane.f32.xlu0 %v562
        %v564 = vpop.xlane.xlu0 %563
        %v565 = vmul.f32 %v564, %v558
        %v566 = vadd.f32 %v565, 1e-06
        %v567 = vrsqrt.pop %v566
        %v568 = vmul.f32 %v567, %v566
        %v569 = vmul.f32 %v568, %v567
        %v570 = vmul.f32 0.5, %v569
        %v571 = vsub.f32 1.5, %v570
        %v572 = vmul.f32 %v567, %v571
        %vm573 = vweird.f32 %v566
        %vm574 = vweird.f32 %v567
        %vm575 = vmor %vm573, %vm574
        %v576 = vsel %vm575, %v567, %v572
        %v577 = vmul.f32 %v560, %v576
        %v579 = vperm.slane %v546, 0
        %v581 = vmul.f32 %v577, %v579
        %v583 = vperm.slane %v547, 0
        %v585 = vadd.f32 %v581, %v583
        %v586 = vpack.c.bf16 %v585, %v585
        %v587 = vld [vmem:[%s3] sm:$0xf]
        %v588 = vld [vmem:[%s3 + $0x4] sm:$0xf]
        %v589 = vld [vmem:[%s3 + $0x8] sm:$0xf]
        %v590 = vld [vmem:[%s3 + $0xc] sm:$0xf]
        %v591 = vld [vmem:[%s3 + $0x10] sm:$0xf]
        %v592 = vld [vmem:[%s3 + $0x14] sm:$0xf]
        %v593 = vld [vmem:[%s3 + $0x18] sm:$0xf]
        %v594 = vld [vmem:[%s3 + $0x1c] sm:$0xf]
        %v595 = vld [vmem:[%s3 + $0x20] sm:$0xf]
        %v596 = vld [vmem:[%s3 + $0x24] sm:$0xf]
        %v597 = vld [vmem:[%s3 + $0x28] sm:$0xf]
        %v598 = vld [vmem:[%s3 + $0x2c] sm:$0xf]
        %v599 = vld [vmem:[%s3 + $0x30] sm:$0xf]
        %v600 = vld [vmem:[%s3 + $0x34] sm:$0xf]
        %v601 = vld [vmem:[%s3 + $0x38] sm:$0xf]
        %v602 = vld [vmem:[%s3 + $0x3c] sm:$0xf]
        %v603 = vld [vmem:[%s4] sm:$0x1]
        %v604 = vld [vmem:[%s4 + $0x1] sm:$0x1]
        %v605 = vld [vmem:[%s4 + $0x2] sm:$0x1]
        %v606 = vld [vmem:[%s4 + $0x3] sm:$0x1]
        %v611 = vperm.slane %v603, 0
        %v612 = vperm.slane %v604, 0
        %v613 = vperm.slane %v605, 0
        %v614 = vperm.slane %v606, 0
        %v623 = vunpack.c.l.b16 %v587
        %v624 = vunpack.c.l.b16 %v588
        %v625 = vunpack.c.l.b16 %v589
        %v626 = vunpack.c.l.b16 %v590
        %v627 = vpack.c.b16 %v624, %v623
        %v628 = vpack.c.b16 %v626, %v625
        %v632 = vsel %vm548, %v586, 0
        %634 = vmatpush.bf16.msra.mxu0 0
        %635 = vmatpush.bf16.msra.mxu0 0
        %636 = vmatpush.bf16.msra.mxu0 0
        %637 = vmatpush.bf16.msra.mxu0 0
        %638 = vmatpush.bf16.msra.mxu0 0
        %639 = vmatpush.bf16.msra.mxu0 0
        %640 = vmatpush.bf16.msra.mxu0 %v628
        %641 = vmatpush.bf16.msra.mxu0 %v627
        %642 = vmatmul.bf16.gmra.mxu0 %v632
        %v643 = vpop.f32.mrf.mxu0
        %v644 = vadd.f32 %v611, %v643
        %v645 = vpop.f32.mrf.mxu0
        %646 = vdwg.mxu0
        %v651 = vunpack.c.l.b16 %v591
        %v652 = vunpack.c.l.b16 %v592
        %v653 = vunpack.c.l.b16 %v593
        %v654 = vunpack.c.l.b16 %v594
        %v655 = vpack.c.b16 %v652, %v651
        %v656 = vpack.c.b16 %v654, %v653
        %659 = vmatpush.bf16.msra.mxu0 0
        %660 = vmatpush.bf16.msra.mxu0 0
        %661 = vmatpush.bf16.msra.mxu0 0
        %662 = vmatpush.bf16.msra.mxu0 0
        %663 = vmatpush.bf16.msra.mxu0 0
        %664 = vmatpush.bf16.msra.mxu0 0
        %665 = vmatpush.bf16.msra.mxu0 %v656
        %666 = vmatpush.bf16.msra.mxu0 %v655
        %667 = vmatmul.bf16.gmra.mxu0 %v632
        %v668 = vpop.f32.mrf.mxu0
        %v669 = vadd.f32 %v612, %v668
        %v670 = vpop.f32.mrf.mxu0
        %671 = vdwg.mxu0
        %v676 = vunpack.c.l.b16 %v595
        %v677 = vunpack.c.l.b16 %v596
        %v678 = vunpack.c.l.b16 %v597
        %v679 = vunpack.c.l.b16 %v598
        %v680 = vpack.c.b16 %v677, %v676
        %v681 = vpack.c.b16 %v679, %v678
        %684 = vmatpush.bf16.msra.mxu0 0
        %685 = vmatpush.bf16.msra.mxu0 0
        %686 = vmatpush.bf16.msra.mxu0 0
        %687 = vmatpush.bf16.msra.mxu0 0
        %688 = vmatpush.bf16.msra.mxu0 0
        %689 = vmatpush.bf16.msra.mxu0 0
        %690 = vmatpush.bf16.msra.mxu0 %v681
        %691 = vmatpush.bf16.msra.mxu0 %v680
        %692 = vmatmul.bf16.gmra.mxu0 %v632
        %v693 = vpop.f32.mrf.mxu0
        %v694 = vadd.f32 %v613, %v693
        %v695 = vpop.f32.mrf.mxu0
        %696 = vdwg.mxu0
        %v701 = vunpack.c.l.b16 %v599
        %v702 = vunpack.c.l.b16 %v600
        %v703 = vunpack.c.l.b16 %v601
        %v704 = vunpack.c.l.b16 %v602
        %v705 = vpack.c.b16 %v702, %v701
        %v706 = vpack.c.b16 %v704, %v703
        %709 = vmatpush.bf16.msra.mxu0 0
        %710 = vmatpush.bf16.msra.mxu0 0
        %711 = vmatpush.bf16.msra.mxu0 0
        %712 = vmatpush.bf16.msra.mxu0 0
        %713 = vmatpush.bf16.msra.mxu0 0
        %714 = vmatpush.bf16.msra.mxu0 0
        %715 = vmatpush.bf16.msra.mxu0 %v706
        %716 = vmatpush.bf16.msra.mxu0 %v705
        %717 = vmatmul.bf16.gmra.mxu0 %v632
        %v718 = vpop.f32.mrf.mxu0
        %v719 = vadd.f32 %v614, %v718
        %v720 = vpop.f32.mrf.mxu0
        %721 = vdwg.mxu0
        %v722 = vld [vmem:[%s5] sm:$0xf]
        %v723 = vld [vmem:[%s5 + $0x4] sm:$0xf]
        %v724 = vld [vmem:[%s5 + $0x8] sm:$0xf]
        %v725 = vld [vmem:[%s5 + $0xc] sm:$0xf]
        %v726 = vld [vmem:[%s5 + $0x10] sm:$0xf]
        %v727 = vld [vmem:[%s5 + $0x14] sm:$0xf]
        %v728 = vld [vmem:[%s5 + $0x18] sm:$0xf]
        %v729 = vld [vmem:[%s5 + $0x1c] sm:$0xf]
        %v730 = vld [vmem:[%s5 + $0x20] sm:$0xf]
        %v731 = vld [vmem:[%s5 + $0x24] sm:$0xf]
        %v732 = vld [vmem:[%s5 + $0x28] sm:$0xf]
        %v733 = vld [vmem:[%s5 + $0x2c] sm:$0xf]
        %v734 = vld [vmem:[%s5 + $0x30] sm:$0xf]
        %v735 = vld [vmem:[%s5 + $0x34] sm:$0xf]
        %v736 = vld [vmem:[%s5 + $0x38] sm:$0xf]
        %v737 = vld [vmem:[%s5 + $0x3c] sm:$0xf]
        %v738 = vld [vmem:[%s6] sm:$0x1]
        %v739 = vld [vmem:[%s6 + $0x1] sm:$0x1]
        %v740 = vld [vmem:[%s6 + $0x2] sm:$0x1]
        %v741 = vld [vmem:[%s6 + $0x3] sm:$0x1]
        %v746 = vperm.slane %v738, 0
        %v747 = vperm.slane %v739, 0
        %v748 = vperm.slane %v740, 0
        %v749 = vperm.slane %v741, 0
        %v758 = vunpack.c.l.b16 %v722
        %v759 = vunpack.c.l.b16 %v723
        %v760 = vunpack.c.l.b16 %v724
        %v761 = vunpack.c.l.b16 %v725
        %v762 = vpack.c.b16 %v759, %v758
        %v763 = vpack.c.b16 %v761, %v760
        %766 = vmatpush.bf16.msra.mxu0 0
        %767 = vmatpush.bf16.msra.mxu0 0
        %768 = vmatpush.bf16.msra.mxu0 0
        %769 = vmatpush.bf16.msra.mxu0 0
        %770 = vmatpush.bf16.msra.mxu0 0
        %771 = vmatpush.bf16.msra.mxu0 0
        %772 = vmatpush.bf16.msra.mxu0 %v763
        %773 = vmatpush.bf16.msra.mxu0 %v762
        %774 = vmatmul.bf16.gmra.mxu0 %v632
        %v775 = vpop.f32.mrf.mxu0
        %v776 = vadd.f32 %v746, %v775
        %v777 = vpop.f32.mrf.mxu0
        %778 = vdwg.mxu0
        %v783 = vunpack.c.l.b16 %v726
        %v784 = vunpack.c.l.b16 %v727
        %v785 = vunpack.c.l.b16 %v728
        %v786 = vunpack.c.l.b16 %v729
        %v787 = vpack.c.b16 %v784, %v783
        %v788 = vpack.c.b16 %v786, %v785
        %791 = vmatpush.bf16.msra.mxu0 0
        %792 = vmatpush.bf16.msra.mxu0 0
        %793 = vmatpush.bf16.msra.mxu0 0
        %794 = vmatpush.bf16.msra.mxu0 0
        %795 = vmatpush.bf16.msra.mxu0 0
        %796 = vmatpush.bf16.msra.mxu0 0
        %797 = vmatpush.bf16.msra.mxu0 %v788
        %798 = vmatpush.bf16.msra.mxu0 %v787
        %799 = vmatmul.bf16.gmra.mxu0 %v632
        %v800 = vpop.f32.mrf.mxu0
        %v801 = vadd.f32 %v747, %v800
        %v802 = vpop.f32.mrf.mxu0
        %803 = vdwg.mxu0
        %v808 = vunpack.c.l.b16 %v730
        %v809 = vunpack.c.l.b16 %v731
        %v810 = vunpack.c.l.b16 %v732
        %v811 = vunpack.c.l.b16 %v733
        %v812 = vpack.c.b16 %v809, %v808
        %v813 = vpack.c.b16 %v811, %v810
        %816 = vmatpush.bf16.msra.mxu0 0
        %817 = vmatpush.bf16.msra.mxu0 0
        %818 = vmatpush.bf16.msra.mxu0 0
        %819 = vmatpush.bf16.msra.mxu0 0
        %820 = vmatpush.bf16.msra.mxu0 0
        %821 = vmatpush.bf16.msra.mxu0 0
        %822 = vmatpush.bf16.msra.mxu0 %v813
        %823 = vmatpush.bf16.msra.mxu0 %v812
        %824 = vmatmul.bf16.gmra.mxu0 %v632
        %v825 = vpop.f32.mrf.mxu0
        %v826 = vadd.f32 %v748, %v825
        %v827 = vpop.f32.mrf.mxu0
        %828 = vdwg.mxu0
        %v833 = vunpack.c.l.b16 %v734
        %v834 = vunpack.c.l.b16 %v735
        %v835 = vunpack.c.l.b16 %v736
        %v836 = vunpack.c.l.b16 %v737
        %v837 = vpack.c.b16 %v834, %v833
        %v838 = vpack.c.b16 %v836, %v835
        %841 = vmatpush.bf16.msra.mxu0 0
        %842 = vmatpush.bf16.msra.mxu0 0
        %843 = vmatpush.bf16.msra.mxu0 0
        %844 = vmatpush.bf16.msra.mxu0 0
        %845 = vmatpush.bf16.msra.mxu0 0
        %846 = vmatpush.bf16.msra.mxu0 0
        %847 = vmatpush.bf16.msra.mxu0 %v838
        %848 = vmatpush.bf16.msra.mxu0 %v837
        %849 = vmatmul.bf16.gmra.mxu0 %v632
        %v850 = vpop.f32.mrf.mxu0
        %v851 = vadd.f32 %v749, %v850
        %v852 = vpop.f32.mrf.mxu0
        %853 = vdwg.mxu0
        %v854 = vld [vmem:[%s7] sm:$0xf]
        %v855 = vld [vmem:[%s7 + $0x4] sm:$0xf]
        %v856 = vld [vmem:[%s7 + $0x8] sm:$0xf]
        %v857 = vld [vmem:[%s7 + $0xc] sm:$0xf]
        %v858 = vld [vmem:[%s7 + $0x10] sm:$0xf]
        %v859 = vld [vmem:[%s7 + $0x14] sm:$0xf]
        %v860 = vld [vmem:[%s7 + $0x18] sm:$0xf]
        %v861 = vld [vmem:[%s7 + $0x1c] sm:$0xf]
        %v862 = vld [vmem:[%s7 + $0x20] sm:$0xf]
        %v863 = vld [vmem:[%s7 + $0x24] sm:$0xf]
        %v864 = vld [vmem:[%s7 + $0x28] sm:$0xf]
        %v865 = vld [vmem:[%s7 + $0x2c] sm:$0xf]
        %v866 = vld [vmem:[%s7 + $0x30] sm:$0xf]
        %v867 = vld [vmem:[%s7 + $0x34] sm:$0xf]
        %v868 = vld [vmem:[%s7 + $0x38] sm:$0xf]
        %v869 = vld [vmem:[%s7 + $0x3c] sm:$0xf]
        %v870 = vld [vmem:[%s8] sm:$0x1]
        %v871 = vld [vmem:[%s8 + $0x1] sm:$0x1]
        %v872 = vld [vmem:[%s8 + $0x2] sm:$0x1]
        %v873 = vld [vmem:[%s8 + $0x3] sm:$0x1]
        %v878 = vperm.slane %v870, 0
        %v879 = vperm.slane %v871, 0
        %v880 = vperm.slane %v872, 0
        %v881 = vperm.slane %v873, 0
        %v890 = vunpack.c.l.b16 %v854
        %v891 = vunpack.c.l.b16 %v855
        %v892 = vunpack.c.l.b16 %v856
        %v893 = vunpack.c.l.b16 %v857
        %v894 = vpack.c.b16 %v891, %v890
        %v895 = vpack.c.b16 %v893, %v892
        %898 = vmatpush.bf16.msra.mxu0 0
        %899 = vmatpush.bf16.msra.mxu0 0
        %900 = vmatpush.bf16.msra.mxu0 0
        %901 = vmatpush.bf16.msra.mxu0 0
        %902 = vmatpush.bf16.msra.mxu0 0
        %903 = vmatpush.bf16.msra.mxu0 0
        %904 = vmatpush.bf16.msra.mxu0 %v895
        %905 = vmatpush.bf16.msra.mxu0 %v894
        %906 = vmatmul.bf16.gmra.mxu0 %v632
        %v907 = vpop.f32.mrf.mxu0
        %v908 = vadd.f32 %v878, %v907
        %v909 = vpop.f32.mrf.mxu0
        %910 = vdwg.mxu0
        %v915 = vunpack.c.l.b16 %v858
        %v916 = vunpack.c.l.b16 %v859
        %v917 = vunpack.c.l.b16 %v860
        %v918 = vunpack.c.l.b16 %v861
        %v919 = vpack.c.b16 %v916, %v915
        %v920 = vpack.c.b16 %v918, %v917
        %923 = vmatpush.bf16.msra.mxu0 0
        %924 = vmatpush.bf16.msra.mxu0 0
        %925 = vmatpush.bf16.msra.mxu0 0
        %926 = vmatpush.bf16.msra.mxu0 0
        %927 = vmatpush.bf16.msra.mxu0 0
        %928 = vmatpush.bf16.msra.mxu0 0
        %929 = vmatpush.bf16.msra.mxu0 %v920
        %930 = vmatpush.bf16.msra.mxu0 %v919
        %931 = vmatmul.bf16.gmra.mxu0 %v632
        %v932 = vpop.f32.mrf.mxu0
        %v933 = vadd.f32 %v879, %v932
        %v934 = vpop.f32.mrf.mxu0
        %935 = vdwg.mxu0
        %v940 = vunpack.c.l.b16 %v862
        %v941 = vunpack.c.l.b16 %v863
        %v942 = vunpack.c.l.b16 %v864
        %v943 = vunpack.c.l.b16 %v865
        %v944 = vpack.c.b16 %v941, %v940
        %v945 = vpack.c.b16 %v943, %v942
        %948 = vmatpush.bf16.msra.mxu0 0
        %949 = vmatpush.bf16.msra.mxu0 0
        %950 = vmatpush.bf16.msra.mxu0 0
        %951 = vmatpush.bf16.msra.mxu0 0
        %952 = vmatpush.bf16.msra.mxu0 0
        %953 = vmatpush.bf16.msra.mxu0 0
        %954 = vmatpush.bf16.msra.mxu0 %v945
        %955 = vmatpush.bf16.msra.mxu0 %v944
        %956 = vmatmul.bf16.gmra.mxu0 %v632
        %v957 = vpop.f32.mrf.mxu0
        %v958 = vadd.f32 %v880, %v957
        %v959 = vpop.f32.mrf.mxu0
        %960 = vdwg.mxu0
        %v965 = vunpack.c.l.b16 %v866
        %v966 = vunpack.c.l.b16 %v867
        %v967 = vunpack.c.l.b16 %v868
        %v968 = vunpack.c.l.b16 %v869
        %v969 = vpack.c.b16 %v966, %v965
        %v970 = vpack.c.b16 %v968, %v967
        %973 = vmatpush.bf16.msra.mxu0 0
        %974 = vmatpush.bf16.msra.mxu0 0
        %975 = vmatpush.bf16.msra.mxu0 0
        %976 = vmatpush.bf16.msra.mxu0 0
        %977 = vmatpush.bf16.msra.mxu0 0
        %978 = vmatpush.bf16.msra.mxu0 0
        %979 = vmatpush.bf16.msra.mxu0 %v970
        %980 = vmatpush.bf16.msra.mxu0 %v969
        %981 = vmatmul.bf16.gmra.mxu0 %v632
        %v982 = vpop.f32.mrf.mxu0
        %v983 = vadd.f32 %v881, %v982
        %v984 = vpop.f32.mrf.mxu0
        %985 = vdwg.mxu0
        %v986 = vpack.c.bf16 %v644, %v644
        %v987 = vpack.c.bf16 %v669, %v669
        %v988 = vpack.c.bf16 %v694, %v694
        %v989 = vpack.c.bf16 %v719, %v719
        %v990 = vpack.c.bf16 %v776, %v776
        %v991 = vpack.c.bf16 %v801, %v801
        %v992 = vpack.c.bf16 %v826, %v826
        %v993 = vpack.c.bf16 %v851, %v851
        %vm994 = vcmask 64512
        %v996 = vsel %vm994, %v986, 0
        %v999 = vsel %vm994, %v990, 0
        %1001 = vmatpush.bf16.xpose.msra.mxu0 0
        %1002 = vmatpush.bf16.xpose.msra.mxu0 0
        %1003 = vmatpush.bf16.xpose.msra.mxu0 0
        %1004 = vmatpush.bf16.xpose.msra.mxu0 0
        %1005 = vmatpush.bf16.xpose.msra.mxu0 0
        %1006 = vmatpush.bf16.xpose.msra.mxu0 0
        %1007 = vmatpush.bf16.xpose.msra.mxu0 0
        %1008 = vmatpush.bf16.xpose.msra.mxu0 %v999
        %1009 = vmatmul.bf16.gmra.mxu0 %v996
        %v1010 = vpop.f32.mrf.mxu0
        %v1011 = vadd.f32 0.0, %v1010
        %v1012 = vpop.f32.mrf.mxu0
        %1013 = vdwg.mxu0
        %v1015 = vsel %vm994, %v987, 0
        %v1018 = vsel %vm994, %v991, 0
        %1020 = vmatpush.bf16.xpose.msra.mxu0 0
        %1021 = vmatpush.bf16.xpose.msra.mxu0 0
        %1022 = vmatpush.bf16.xpose.msra.mxu0 0
        %1023 = vmatpush.bf16.xpose.msra.mxu0 0
        %1024 = vmatpush.bf16.xpose.msra.mxu0 0
        %1025 = vmatpush.bf16.xpose.msra.mxu0 0
        %1026 = vmatpush.bf16.xpose.msra.mxu0 0
        %1027 = vmatpush.bf16.xpose.msra.mxu0 %v1018
        %1028 = vmatmul.bf16.gmra.mxu0 %v1015
        %v1029 = vpop.f32.mrf.mxu0
        %v1030 = vadd.f32 0.0, %v1029
        %v1031 = vpop.f32.mrf.mxu0
        %1032 = vdwg.mxu0
        %v1034 = vsel %vm994, %v988, 0
        %v1037 = vsel %vm994, %v992, 0
        %1039 = vmatpush.bf16.xpose.msra.mxu0 0
        %1040 = vmatpush.bf16.xpose.msra.mxu0 0
        %1041 = vmatpush.bf16.xpose.msra.mxu0 0
        %1042 = vmatpush.bf16.xpose.msra.mxu0 0
        %1043 = vmatpush.bf16.xpose.msra.mxu0 0
        %1044 = vmatpush.bf16.xpose.msra.mxu0 0
        %1045 = vmatpush.bf16.xpose.msra.mxu0 0
        %1046 = vmatpush.bf16.xpose.msra.mxu0 %v1037
        %1047 = vmatmul.bf16.gmra.mxu0 %v1034
        %v1048 = vpop.f32.mrf.mxu0
        %v1049 = vadd.f32 0.0, %v1048
        %v1050 = vpop.f32.mrf.mxu0
        %1051 = vdwg.mxu0
        %v1053 = vsel %vm994, %v989, 0
        %v1056 = vsel %vm994, %v993, 0
        %1058 = vmatpush.bf16.xpose.msra.mxu0 0
        %1059 = vmatpush.bf16.xpose.msra.mxu0 0
        %1060 = vmatpush.bf16.xpose.msra.mxu0 0
        %1061 = vmatpush.bf16.xpose.msra.mxu0 0
        %1062 = vmatpush.bf16.xpose.msra.mxu0 0
        %1063 = vmatpush.bf16.xpose.msra.mxu0 0
        %1064 = vmatpush.bf16.xpose.msra.mxu0 0
        %1065 = vmatpush.bf16.xpose.msra.mxu0 %v1056
        %1066 = vmatmul.bf16.gmra.mxu0 %v1053
        %v1067 = vpop.f32.mrf.mxu0
        %v1068 = vadd.f32 0.0, %v1067
        %v1069 = vpop.f32.mrf.mxu0
        %1070 = vdwg.mxu0
        %v1071 = vsel %vm994, %v1011, -inf
        %1072 = vmax.xlane.f32.xlu0 %v1071
        %v1073 = vpop.xlane.xlu0 %1072
        %v1074 = vsel %vm994, %v1030, -inf
        %1075 = vmax.xlane.f32.xlu0 %v1074
        %v1076 = vpop.xlane.xlu0 %1075
        %v1077 = vsel %vm994, %v1049, -inf
        %1078 = vmax.xlane.f32.xlu0 %v1077
        %v1079 = vpop.xlane.xlu0 %1078
        %v1080 = vsel %vm994, %v1068, -inf
        %1081 = vmax.xlane.f32.xlu0 %v1080
        %v1082 = vpop.xlane.xlu0 %1081
        %v1083 = vsub.f32 %v1011, %v1073
        %v1084 = vsub.f32 %v1030, %v1076
        %v1085 = vsub.f32 %v1049, %v1079
        %v1086 = vsub.f32 %v1068, %v1082
        %v1087 = vmul.f32 %v1083, 1.442695
        %v1088 = vpow.pop %v1087
        %v1089 = vmul.f32 %v1084, 1.442695
        %v1090 = vpow.pop %v1089
        %v1091 = vmul.f32 %v1085, 1.442695
        %v1092 = vpow.pop %v1091
        %v1093 = vmul.f32 %v1086, 1.442695
        %v1094 = vpow.pop %v1093
        %v1095 = vsel %vm994, %v1088, 0.0
        %1096 = vadd.xlane.f32.xlu0 %v1095
        %v1097 = vpop.xlane.xlu0 %1096
        %v1098 = vsel %vm994, %v1090, 0.0
        %1099 = vadd.xlane.f32.xlu0 %v1098
        %v1100 = vpop.xlane.xlu0 %1099
        %v1101 = vsel %vm994, %v1092, 0.0
        %1102 = vadd.xlane.f32.xlu0 %v1101
        %v1103 = vpop.xlane.xlu0 %1102
        %v1104 = vsel %vm994, %v1094, 0.0
        %1105 = vadd.xlane.f32.xlu0 %v1104
        %v1106 = vpop.xlane.xlu0 %1105
        %v1107 = vrcp.pop %v1097
        %v1108 = vrcp.pop %v1100
        %v1109 = vrcp.pop %v1103
        %v1110 = vrcp.pop %v1106
        %v1111 = vmul.f32 %v1088, %v1107
        %v1112 = vmul.f32 %v1090, %v1108
        %v1113 = vmul.f32 %v1092, %v1109
        %v1114 = vmul.f32 %v1094, %v1110
        %v1115 = vpack.c.bf16 %v1111, %v1111
        %v1116 = vpack.c.bf16 %v1112, %v1112
        %v1117 = vpack.c.bf16 %v1113, %v1113
        %v1118 = vpack.c.bf16 %v1114, %v1114
        %v1119 = vpack.c.bf16 %v908, %v908
        %v1120 = vpack.c.bf16 %v933, %v933
        %v1121 = vpack.c.bf16 %v958, %v958
        %v1122 = vpack.c.bf16 %v983, %v983
        %v1124 = vsel %vm994, %v1115, 0
        %vm1126 = vcmask 1043456
        %v1128 = vsel %vm1126, %v1119, 0
        %1130 = vmatpush.bf16.msra.mxu0 0
        %1131 = vmatpush.bf16.msra.mxu0 0
        %1132 = vmatpush.bf16.msra.mxu0 0
        %1133 = vmatpush.bf16.msra.mxu0 0
        %1134 = vmatpush.bf16.msra.mxu0 0
        %1135 = vmatpush.bf16.msra.mxu0 0
        %1136 = vmatpush.bf16.msra.mxu0 0
        %1137 = vmatpush.bf16.msra.mxu0 %v1128
        %1138 = vmatmul.bf16.gmra.mxu0 %v1124
        %v1139 = vpop.f32.mrf.mxu0
        %v1140 = vadd.f32 0.0, %v1139
        %v1141 = vpop.f32.mrf.mxu0
        %1142 = vdwg.mxu0
        %v1144 = vsel %vm994, %v1116, 0
        %v1147 = vsel %vm1126, %v1120, 0
        %1149 = vmatpush.bf16.msra.mxu0 0
        %1150 = vmatpush.bf16.msra.mxu0 0
        %1151 = vmatpush.bf16.msra.mxu0 0
        %1152 = vmatpush.bf16.msra.mxu0 0
        %1153 = vmatpush.bf16.msra.mxu0 0
        %1154 = vmatpush.bf16.msra.mxu0 0
        %1155 = vmatpush.bf16.msra.mxu0 0
        %1156 = vmatpush.bf16.msra.mxu0 %v1147
        %1157 = vmatmul.bf16.gmra.mxu0 %v1144
        %v1158 = vpop.f32.mrf.mxu0
        %v1159 = vadd.f32 0.0, %v1158
        %v1160 = vpop.f32.mrf.mxu0
        %1161 = vdwg.mxu0
        %v1163 = vsel %vm994, %v1117, 0
        %v1166 = vsel %vm1126, %v1121, 0
        %1168 = vmatpush.bf16.msra.mxu0 0
        %1169 = vmatpush.bf16.msra.mxu0 0
        %1170 = vmatpush.bf16.msra.mxu0 0
        %1171 = vmatpush.bf16.msra.mxu0 0
        %1172 = vmatpush.bf16.msra.mxu0 0
        %1173 = vmatpush.bf16.msra.mxu0 0
        %1174 = vmatpush.bf16.msra.mxu0 0
        %1175 = vmatpush.bf16.msra.mxu0 %v1166
        %1176 = vmatmul.bf16.gmra.mxu0 %v1163
        %v1177 = vpop.f32.mrf.mxu0
        %v1178 = vadd.f32 0.0, %v1177
        %v1179 = vpop.f32.mrf.mxu0
        %1180 = vdwg.mxu0
        %v1182 = vsel %vm994, %v1118, 0
        %v1185 = vsel %vm1126, %v1122, 0
        %1187 = vmatpush.bf16.msra.mxu0 0
        %1188 = vmatpush.bf16.msra.mxu0 0
        %1189 = vmatpush.bf16.msra.mxu0 0
        %1190 = vmatpush.bf16.msra.mxu0 0
        %1191 = vmatpush.bf16.msra.mxu0 0
        %1192 = vmatpush.bf16.msra.mxu0 0
        %1193 = vmatpush.bf16.msra.mxu0 0
        %1194 = vmatpush.bf16.msra.mxu0 %v1185
        %1195 = vmatmul.bf16.gmra.mxu0 %v1182
        %v1196 = vpop.f32.mrf.mxu0
        %v1197 = vadd.f32 0.0, %v1196
        %v1198 = vpop.f32.mrf.mxu0
        %1199 = vdwg.mxu0
        %v1200 = vpack.c.bf16 %v1140, %v1140
        %v1201 = vpack.c.bf16 %v1159, %v1159
        %v1202 = vpack.c.bf16 %v1178, %v1178
        %v1203 = vpack.c.bf16 %v1197, %v1197
        %v1204 = vld [vmem:[%s9] sm:$0xf]
        %v1205 = vld [vmem:[%s9 + $0x4] sm:$0xf]
        %v1206 = vld [vmem:[%s9 + $0x8] sm:$0xf]
        %v1207 = vld [vmem:[%s9 + $0xc] sm:$0xf]
        %v1209 = vsel %vm994, %v1200, 0
        %v1212 = vsel %vm1126, %v1204, 0
        %1214 = vmatpush.bf16.msra.mxu0 0
        %1215 = vmatpush.bf16.msra.mxu0 0
        %1216 = vmatpush.bf16.msra.mxu0 0
        %1217 = vmatpush.bf16.msra.mxu0 0
        %1218 = vmatpush.bf16.msra.mxu0 0
        %1219 = vmatpush.bf16.msra.mxu0 0
        %1220 = vmatpush.bf16.msra.mxu0 0
        %1221 = vmatpush.bf16.msra.mxu0 %v1212
        %1222 = vmatmul.bf16.gmra.mxu0 %v1209
        %v1223 = vpop.f32.mrf.mxu0
        %v1224 = vadd.f32 0.0, %v1223
        %v1225 = vpop.f32.mrf.mxu0
        %1226 = vdwg.mxu0
        %v1228 = vsel %vm994, %v1201, 0
        %v1231 = vsel %vm1126, %v1205, 0
        %1233 = vmatpush.bf16.msra.mxu0 0
        %1234 = vmatpush.bf16.msra.mxu0 0
        %1235 = vmatpush.bf16.msra.mxu0 0
        %1236 = vmatpush.bf16.msra.mxu0 0
        %1237 = vmatpush.bf16.msra.mxu0 0
        %1238 = vmatpush.bf16.msra.mxu0 0
        %1239 = vmatpush.bf16.msra.mxu0 0
        %1240 = vmatpush.bf16.msra.mxu0 %v1231
        %1241 = vmatmul.bf16.gmra.mxu0 %v1228
        %v1242 = vpop.f32.mrf.mxu0
        %v1243 = vadd.f32 0.0, %v1242
        %v1244 = vpop.f32.mrf.mxu0
        %1245 = vdwg.mxu0
        %v1247 = vsel %vm994, %v1202, 0
        %v1250 = vsel %vm1126, %v1206, 0
        %1252 = vmatpush.bf16.msra.mxu0 0
        %1253 = vmatpush.bf16.msra.mxu0 0
        %1254 = vmatpush.bf16.msra.mxu0 0
        %1255 = vmatpush.bf16.msra.mxu0 0
        %1256 = vmatpush.bf16.msra.mxu0 0
        %1257 = vmatpush.bf16.msra.mxu0 0
        %1258 = vmatpush.bf16.msra.mxu0 0
        %1259 = vmatpush.bf16.msra.mxu0 %v1250
        %1260 = vmatmul.bf16.gmra.mxu0 %v1247
        %v1261 = vpop.f32.mrf.mxu0
        %v1262 = vadd.f32 0.0, %v1261
        %v1263 = vpop.f32.mrf.mxu0
        %1264 = vdwg.mxu0
        %v1266 = vsel %vm994, %v1203, 0
        %v1269 = vsel %vm1126, %v1207, 0
        %1271 = vmatpush.bf16.msra.mxu0 0
        %1272 = vmatpush.bf16.msra.mxu0 0
        %1273 = vmatpush.bf16.msra.mxu0 0
        %1274 = vmatpush.bf16.msra.mxu0 0
        %1275 = vmatpush.bf16.msra.mxu0 0
        %1276 = vmatpush.bf16.msra.mxu0 0
        %1277 = vmatpush.bf16.msra.mxu0 0
        %1278 = vmatpush.bf16.msra.mxu0 %v1269
        %1279 = vmatmul.bf16.gmra.mxu0 %v1266
        %v1280 = vpop.f32.mrf.mxu0
        %v1281 = vadd.f32 0.0, %v1280
        %v1282 = vpop.f32.mrf.mxu0
        %1283 = vdwg.mxu0
        %v1284 = vsel %vm548, %v1224, 0.0
        %v1285 = vsel %vm548, %v1243, 0.0
        %v1286 = vadd.f32 %v1284, %v1285
        %v1287 = vsel %vm548, %v1262, 0.0
        %v1288 = vadd.f32 %v1286, %v1287
        %v1289 = vsel %vm548, %v1281, 0.0
        %v1290 = vadd.f32 %v1288, %v1289
        %v1291 = vld [vmem:[%s10] sm:$0x1]
        %v1293 = vperm.slane %v1291, 0
        %v1295 = vadd.f32 %v1290, %v1293
        %v1296 = vadd.f32 %v545, %v1295
        %v1297 = vld [vmem:[%s11] sm:$0x1]
        %v1298 = vld [vmem:[%s12] sm:$0x1]
        %v1299 = vsel %vm548, %v1296, 0.0
        %1300 = vadd.xlane.f32.xlu0 %v1299
        %v1301 = vpop.xlane.xlu0 %1300
        %v1302 = vmul.f32 %v1301, %v558
        %v1303 = vsub.f32 %v1296, %v1302
        %v1304 = vmul.f32 %v1303, %v1303
        %v1305 = vsel %vm548, %v1304, 0.0
        %1306 = vadd.xlane.f32.xlu0 %v1305
        %v1307 = vpop.xlane.xlu0 %1306
        %v1308 = vmul.f32 %v1307, %v558
        %v1309 = vadd.f32 %v1308, 1e-06
        %v1310 = vrsqrt.pop %v1309
        %v1311 = vmul.f32 %v1310, %v1309
        %v1312 = vmul.f32 %v1311, %v1310
        %v1313 = vmul.f32 0.5, %v1312
        %v1314 = vsub.f32 1.5, %v1313
        %v1315 = vmul.f32 %v1310, %v1314
        %vm1316 = vweird.f32 %v1309
        %vm1317 = vweird.f32 %v1310
        %vm1318 = vmor %vm1316, %vm1317
        %v1319 = vsel %vm1318, %v1310, %v1315
        %v1320 = vmul.f32 %v1303, %v1319
        %v1322 = vperm.slane %v1297, 0
        %v1324 = vmul.f32 %v1320, %v1322
        %v1326 = vperm.slane %v1298, 0
        %v1328 = vadd.f32 %v1324, %v1326
        %v1329 = vpack.c.bf16 %v1328, %v1328
        %v1330 = vld [vmem:[%s13] sm:$0xf]
        %v1331 = vld [vmem:[%s13 + $0x4] sm:$0xf]
        %v1332 = vld [vmem:[%s13 + $0x8] sm:$0xf]
        %v1333 = vld [vmem:[%s13 + $0xc] sm:$0xf]
        %v1334 = vld [vmem:[%s14] sm:$0x1]
        %v1336 = vperm.slane %v1334, 0
        %v1342 = vunpack.c.l.b16 %v1330
        %v1343 = vunpack.c.l.b16 %v1331
        %v1344 = vunpack.c.l.b16 %v1332
        %v1345 = vunpack.c.l.b16 %v1333
        %v1346 = vpack.c.b16 %v1343, %v1342
        %v1347 = vpack.c.b16 %v1345, %v1344
        %v1351 = vsel %vm548, %v1329, 0
        %1353 = vmatpush.bf16.msra.mxu0 0
        %1354 = vmatpush.bf16.msra.mxu0 0
        %1355 = vmatpush.bf16.msra.mxu0 0
        %1356 = vmatpush.bf16.msra.mxu0 0
        %1357 = vmatpush.bf16.msra.mxu0 0
        %1358 = vmatpush.bf16.msra.mxu0 0
        %1359 = vmatpush.bf16.msra.mxu0 %v1347
        %1360 = vmatpush.bf16.msra.mxu0 %v1346
        %1361 = vmatmul.bf16.gmra.mxu0 %v1351
        %v1362 = vpop.f32.mrf.mxu0
        %v1363 = vadd.f32 %v1336, %v1362
        %v1364 = vpop.f32.mrf.mxu0
        %1365 = vdwg.mxu0
        %v1366 = vmul.f32 %v1363, 1.702
        %v1367 = vxor.u32 %v1366, 2147483648
        %v1368 = vmul.f32 %v1367, 1.442695
        %v1369 = vpow.pop %v1368
        %v1370 = vadd.f32 %v1369, 1.0
        %v1371 = vrcp.pop %v1370
        %v1372 = vmul.f32 %v1370, %v1371
        %v1373 = vsub.f32 1.0, %v1372
        %v1374 = vmul.f32 %v1371, %v1373
        %v1375 = vadd.f32 %v1371, %v1374
        %vm1376 = vweird.f32 %v1370
        %vm1377 = vweird.f32 %v1371
        %vm1378 = vmor %vm1376, %vm1377
        %v1379 = vsel %vm1378, %v1371, %v1375
        %v1380 = vand.u32 2147483647, %v1370
        %vm1381 = vcmp.eq.f32.partialorder %v1380, 8.507059e+37
        %v1382 = vand.u32 %v1370, 2147483648
        %v1383 = vor.u32 1.1754944e-38, %v1382
        %v1384 = vsel %vm1381, %v1383, %v1379
        %v1385 = vmul.f32 1.0, %v1384
        %v1386 = vmul.f32 %v1363, %v1385
        %v1387 = vpack.c.bf16 %v1386, %v1386
        %v1388 = vld [vmem:[%s15] sm:$0xf]
        %v1389 = vld [vmem:[%s15 + $0x4] sm:$0xf]
        %v1390 = vld [vmem:[%s15 + $0x8] sm:$0xf]
        %v1391 = vld [vmem:[%s15 + $0xc] sm:$0xf]
        %v1392 = vld [vmem:[%s15 + $0x10] sm:$0xf]
        %v1393 = vld [vmem:[%s15 + $0x14] sm:$0xf]
        %v1394 = vld [vmem:[%s15 + $0x18] sm:$0xf]
        %v1395 = vld [vmem:[%s15 + $0x1c] sm:$0xf]
        %v1396 = vld [vmem:[%s16] sm:$0x1]
        %v1398 = vperm.slane %v1396, 0
        %v1408 = vunpack.c.l.b16 %v1388
        %v1409 = vunpack.c.l.b16 %v1389
        %v1410 = vunpack.c.l.b16 %v1390
        %v1411 = vunpack.c.l.b16 %v1391
        %v1412 = vunpack.c.l.b16 %v1392
        %v1413 = vunpack.c.l.b16 %v1393
        %v1414 = vunpack.c.l.b16 %v1394
        %v1415 = vunpack.c.l.b16 %v1395
        %v1416 = vpack.c.b16 %v1409, %v1408
        %v1417 = vpack.c.b16 %v1411, %v1410
        %v1418 = vpack.c.b16 %v1413, %v1412
        %v1419 = vpack.c.b16 %v1415, %v1414
        %vm1424 = vcmask 523264
        %v1426 = vsel %vm1424, %v1387, 0
        %1428 = vmatpush.bf16.msra.mxu0 0
        %1429 = vmatpush.bf16.msra.mxu0 0
        %1430 = vmatpush.bf16.msra.mxu0 0
        %1431 = vmatpush.bf16.msra.mxu0 0
        %1432 = vmatpush.bf16.msra.mxu0 %v1419
        %1433 = vmatpush.bf16.msra.mxu0 %v1418
        %1434 = vmatpush.bf16.msra.mxu0 %v1417
        %1435 = vmatpush.bf16.msra.mxu0 %v1416
        %1436 = vmatmul.bf16.gmra.mxu0 %v1426
        %v1437 = vpop.f32.mrf.mxu0
        %v1438 = vadd.f32 %v1398, %v1437
        %v1439 = vpop.f32.mrf.mxu0
        %1440 = vdwg.mxu0
        %v1441 = vadd.f32 %v1296, %v1438
        %1442 = vst.msk [vmem:[%s539] sm:$0xff] %vm548, %v1441
        %s1443 = sand.u32 %s401, 1
        %s1444 = scalar_lea.sflag [#allocation3], %s1443
        %s1445 = sand.u32 %s401, 1
        %s1446 = smul.addr %s1445, 8
        %s1447 = scalar_lea.vmem [#allocation2], %s1446
        // Predicated region
        $region89: #{tpu_custom_call.1} parent=87 // pred_check
          %p1448 = pneg %p411
        $region90: #{tpu_custom_call.1} parent=87 // pred_check_branch
          %1450 = sbr.rel (%p1448) target = $region92
        $region91: #{tpu_custom_call.1} parent=87 // pred_region
          %1452 = vsyncadd %s1444, 0
          %s1453 = smul.addr %s31, 8
          %s1454 = scalar_lea.hbm %s17, %s1453
          %s1456 = sshll.u32 %s1447, 4
          %s1457 = int_to_ptr.vmem [resolvable:$true] %s1456
          %s1458 = sshll.u32 %s1454, 4
          %s1459 = int_to_ptr.hbm [resolvable:$true] %s1458
          %1461 = dma.vmem_to_hbm [thread:$0]  %s1457, 128, %s1459, %s1444
        $region92: #{tpu_custom_call.1} parent=87 // pred_fallthru
          _
      $region88: #{tpu_custom_call.1} parent=5 // pred_fallthru
        _
      %p1462 = scmp.le.s32.totalorder 2, %s26
      // Predicated region
      $region93: #{tpu_custom_call.1} parent=5 // pred_check
        %p1463 = pneg %p1462
      $region94: #{tpu_custom_call.1} parent=5 // pred_check_branch
        %1465 = sbr.rel (%p1463) target = $region96
      $region95: #{tpu_custom_call.1} parent=5 // pred_region
        %s1466 = ssub.s32 %s26, 2
        // Predicated region
        $region97: #{tpu_custom_call.1} parent=95 // pred_check
          %p1467 = pneg %p417
        $region98: #{tpu_custom_call.1} parent=95 // pred_check_branch
          %1469 = sbr.rel (%p1467) target = $region100
        $region99: #{tpu_custom_call.1} parent=95 // pred_region
          %s1470 = sand.u32 %s402, 1
          %s1471 = scalar_lea.sflag [#allocation3], %s1470
          %s1472 = sand.u32 %s402, 1
          %s1473 = smul.addr %s1472, 8
          %s1474 = scalar_lea.vmem [#allocation2], %s1473
          %1476 = dma.done %s1471, 128
        $region100: #{tpu_custom_call.1} parent=95 // pred_fallthru
          _
      $region96: #{tpu_custom_call.1} parent=5 // pred_fallthru
        _
    $region6: #{tpu_custom_call.1} parent=1 // loop_footer
      %s30 = sadd.s32 1, %s26
    $region7: #{tpu_custom_call.1} parent=1 // loop_footer_branch
      %25 = sbr.rel target = $region3
    $region8: #{tpu_custom_call.1} parent=1 // loop_exit
      _
    %1477 = vsyncpa [#allocation3], 1
    %s1478 = scalar_lea.sflag [#allocation3], 1
    %1479 = vsyncpa %s1478, 1

</llo_original>
